<compile_context>
chip_gen: v7x
topology: tpu7x:2x2x1
jax: 0.10.0
libtpu: 0.0.40
codegen_flags: <defaults>
</compile_context>

<pallas_src>
import functools

import jax
import jax.numpy as jnp
from jax.experimental import pallas as pl
from jax.experimental.pallas import tpu as pltpu

# ----------------------- small config consistent with the module -----------------------
IMG_SIZE = 16
PATCH = 4
STRIDE = 4
IN_CHANS = 3
BASE_DIMS = [4, 4]
DEPTH = [1, 1]
HEADS = [2, 4]
MLP_RATIO = 2.0
NUM_CLASSES = 10
BATCH = 2

POOL_STRIDE = 2
POOL_K = POOL_STRIDE + 1
POOL_PAD = POOL_STRIDE // 2


# --------------------------------- in-kernel helpers ------------------------------------
def _layernorm(x, g, b, eps):
    mu = jnp.mean(x, axis=-1, keepdims=True)
    xc = x - mu
    var = jnp.mean(xc * xc, axis=-1, keepdims=True)
    return xc * jax.lax.rsqrt(var + eps) * g + b


def _gelu_tanh(x):
    # tanh-form GELU: tanh runs on the EUP slot, freeing the VALU in the MLP tail.
    c = 0.7978845608028654  # sqrt(2/pi)
    return 0.5 * x * (1.0 + jnp.tanh(c * (x + 0.044715 * x * x * x)))


# ------------------------------- fused per-stage kernel ----------------------------------
def _stage_kernel(*refs, H, D, depth, eps, patch_embed, final_head):
    """One full transformer stage for one batch element, everything in vregs/VMEM.

    Ref order (must match run_fused_stage):
      [xin(,pe_w,emb_add)] seg segT {12 block refs}*depth [norm_g norm_b head_w head_b]
      wmix(SMEM) bmix(SMEM) o_ref
    """
    C = H * D
    idx = 0

    def nxt():
        nonlocal idx
        r = refs[idx]
        idx += 1
        return r

    if patch_embed:
        xin_ref, pe_w, emb_add = nxt(), nxt(), nxt()
    else:
        xin_ref = nxt()
    seg_ref, segT_ref = nxt(), nxt()
    blk_refs = [tuple(nxt() for _ in range(12)) for _ in range(depth)]
    if final_head:
        norm_g, norm_b, head_w, head_b = nxt(), nxt(), nxt(), nxt()
    wmix_ref, bmix_ref = nxt(), nxt()
    o_ref = nxt()

    if patch_embed:
        # row 0 of xin is all-zero padding, so row 0 of the result is exactly the cls token
        # (emb_add = [cls ; pos + conv_bias], assembled outside the kernel from params).
        x = (jnp.dot(xin_ref[0], pe_w[...], preferred_element_type=jnp.float32)
             + emb_add[...])                                           # (N, C)
    else:
        x = xin_ref[0]                                                 # (N, C)

    seg = seg_ref[...]                                                 # (C, H) 0/1

    for bi, (ln1g, ln1b, wqkv, bqkv, wproj, bproj,
             ln2g, ln2b, wfc1, bfc1, wfc2, bfc2) in enumerate(blk_refs):
        # ---- LN1 -> QKV (heads contiguous along channels: q|k|v, each (H, D)) ----------
        h1 = _layernorm(x, ln1g[...], ln1b[...], eps)
        qkv = jnp.dot(h1, wqkv[...], preferred_element_type=jnp.float32) + bqkv[...]
        q = qkv[:, :C]
        k = qkv[:, C:2 * C]
        v = qkv[:, 2 * C:]

        # ---- per-head squared norms for the Grassmann branch, all heads at once --------
        q2 = jnp.dot(q * q, seg, preferred_element_type=jnp.float32)          # (N, H)
        k2t = jnp.einsum("hc,nc->hn", segT_ref[...], k * k,
                         preferred_element_type=jnp.float32)                  # (H, N)
        qinv2 = 1.0 / (q2 + 1e-12)
        kinv2t = 1.0 / (k2t + 1e-12)

        # ---- per-head Eucl / Riem / Grassmann score maps (SSA lists of (N, N)) ----------
        eucl, riem, grass = [], [], []
        for h in range(H):
            mask = segT_ref[h:h + 1, :]                                        # (1, C) 0/1
            s = jnp.einsum("nc,mc->nm", q * mask, k,
                           preferred_element_type=jnp.float32)                 # q_h . k_h
            s2 = s * s                                                         # (q_h.k_h)^2
            eucl.append(s)
            riem.append(s2)
            # (q^ . k^)^2 == (q.k)^2 / (|q|^2 |k|^2): rescale rows/cols of s^2
            grass.append(s2 * qinv2[:, h:h + 1] * kinv2t[h:h + 1, :])

        # ---- 1x1-conv (+BN) channel mix as per-head scalar weighted sums (SMEM scalars),
        #      softmax, attn @ (head-masked V) summed into the merged context -------------
        woff = bi * 3 * H * H
        boff = bi * H
        ctx = None
        for h in range(H):
            row = woff + h * 3 * H
            acc = eucl[0] * wmix_ref[row + 0]
            for c in range(1, H):
                acc = acc + eucl[c] * wmix_ref[row + c]
            for c in range(H):
                acc = acc + riem[c] * wmix_ref[row + H + c]
            for c in range(H):
                acc = acc + grass[c] * wmix_ref[row + 2 * H + c]
            acc = acc + bmix_ref[boff + h]
            mrow = jnp.max(acc, axis=-1, keepdims=True)
            e = jnp.exp(acc - mrow)
            a = e * pl.reciprocal(jnp.sum(e, axis=-1, keepdims=True), approx=True)
            part = jnp.dot(a, v * segT_ref[h:h + 1, :],
                           preferred_element_type=jnp.float32)                 # (N, C)
            ctx = part if ctx is None else ctx + part

        # ---- output projection + residual ----------------------------------------------
        x = x + jnp.dot(ctx, wproj[...], preferred_element_type=jnp.float32) + bproj[...]

        # ---- LN2 -> MLP (fc1 -> GELU -> fc2) + residual ---------------------------------
        h2 = _layernorm(x, ln2g[...], ln2b[...], eps)
        f = jnp.dot(h2, wfc1[...], preferred_element_type=jnp.float32) + bfc1[...]
        f = _gelu_tanh(f)
        x = x + jnp.dot(f, wfc2[...], preferred_element_type=jnp.float32) + bfc2[...]

    if final_head:
        cl = _layernorm(x[0:1, :], norm_g[...], norm_b[...], eps)              # cls row only
        o_ref[0] = (jnp.dot(cl, head_w[...], preferred_element_type=jnp.float32)
                    + head_b[...])
    else:
        o_ref[0] = x


def run_fused_stage(params, stage, x_in, *, H, patch_embed, final_head):
    """x_in: zero-row-padded patches (B, N, F) if patch_embed else tokens (B, N, C)."""
    B = x_in.shape[0]
    blocks = stage["blocks"]
    depth = len(blocks)
    C = blocks[0]["w_proj"].shape[0]
    D = C // H
    N = x_in.shape[1]

    args, specs = [], []

    def add_batch(arr, shape):
        args.append(arr)
        specs.append(pl.BlockSpec(shape, lambda b, _n=len(shape): (b,) + (0,) * (_n - 1)))

    def add_const(arr):  # whole weight, VMEM-resident across the batch grid
        args.append(arr)
        specs.append(pl.BlockSpec(arr.shape, lambda b, _nd=arr.ndim: (0,) * _nd))

    def add_smem(arr):   # tiny scalar table for the channel-mix weights
        args.append(arr)
        specs.append(pl.BlockSpec(memory_space=pltpu.MemorySpace.SMEM))

    if patch_embed:
        F = x_in.shape[2]
        add_batch(x_in, (1, N, F))
        add_const(params["pe_w"])
        # emb_add row 0 = cls token, rows 1.. = pos_embed + conv bias (param-only XLA glue)
        emb_add = jnp.concatenate(
            [params["cls_token"], params["pos_tok"] + params["pe_b"]], axis=0)
        add_const(emb_add)
    else:
        add_batch(x_in, (1, N, C))

    add_const(stage["seg"])
    add_const(stage["segT"])
    for blk in blocks:
        for name in ("ln1_g", "ln1_b", "w_qkv", "b_qkv", "w_proj", "b_proj",
                     "ln2_g", "ln2_b", "w_fc1", "b_fc1", "w_fc2", "b_fc2"):
            add_const(blk[name])
    if final_head:
        add_const(params["norm_g"])
        add_const(params["norm_b"])
        add_const(params["head_w"])
        add_const(params["head_b"])
    add_smem(stage["w_mix_flat"])
    add_smem(stage["b_mix_flat"])

    if final_head:
        out_shape = jax.ShapeDtypeStruct((B, 1, NUM_CLASSES), jnp.float32)
        out_spec = pl.BlockSpec((1, 1, NUM_CLASSES), lambda b: (b, 0, 0))
    else:
        out_shape = jax.ShapeDtypeStruct((B, N, C), jnp.float32)
        out_spec = pl.BlockSpec((1, N, C), lambda b: (b, 0, 0))

    kernel = functools.partial(_stage_kernel, H=H, D=D, depth=depth, eps=1e-6,
                               patch_embed=patch_embed, final_head=final_head)
    # grid over batch kept "parallel": uses both TCs on v7x; negligible (~0.35us/step)
    # serialization cost on single-TC v5e/v6e at this size.
    return pl.pallas_call(
        kernel,
        out_shape=out_shape,
        grid=(B,),
        in_specs=specs,
        out_specs=out_spec,
        compiler_params=pltpu.CompilerParams(dimension_semantics=("parallel",)),
    )(*args)


# ------------------------------------ head pooling --------------------------------------
def conv_head_pooling(p, spatial_tokens, cls, side):
    """spatial_tokens: (B, side*side, C) in row-major (H, W) order (== NCHW flatten(2))."""
    B, _, C = spatial_tokens.shape
    out_f = p["w_fc"].shape[1]
    x_nhwc = spatial_tokens.reshape(B, side, side, C)
    y = jax.lax.conv_general_dilated(
        x_nhwc, p["w_conv_hwio"],
        window_strides=(POOL_STRIDE, POOL_STRIDE),
        padding=[(POOL_PAD, POOL_PAD), (POOL_PAD, POOL_PAD)],
        dimension_numbers=("NHWC", "HWIO", "NHWC"),
        feature_group_count=C)
    y = y + p["b_conv"].reshape(1, 1, 1, out_f)
    new_side = y.shape[1]
    new_spatial = y.reshape(B, new_side * new_side, out_f)
    # tiny (B,1,C)@(C,out) cls projection kept in plain XLA (per perf review)
    new_cls = jnp.matmul(cls, p["w_fc"]) + p["b_fc"].reshape(1, 1, out_f)
    return new_spatial, new_cls, new_side


# ------------------------------------ forward pass --------------------------------------
def forward(params, x):
    B = x.shape[0]
    feat = (IMG_SIZE - PATCH) // STRIDE + 1
    P = feat * feat
    F = IN_CHANS * PATCH * PATCH
    # non-overlapping patch extraction (stride == patch, pad 0): pure reshape/transpose,
    # feature order (C, ph, pw) matches the conv-as-matmul weight layout.
    patches = x.reshape(B, IN_CHANS, feat, PATCH, feat, PATCH)
    patches = patches.transpose(0, 2, 4, 1, 3, 5).reshape(B, P, F)
    # prepend an all-zero row so row 0 of (patches_pad @ pe_w + emb_add) is the cls token
    patches_pad = jnp.pad(patches, ((0, 0), (1, 0), (0, 0)))

    n_stages = len(params["stages"])
    side = feat
    tokens = None
    for si, stage in enumerate(params["stages"]):
        is_first = si == 0
        is_last = si == n_stages - 1
        x_in = patches_pad if is_first else tokens
        out = run_fused_stage(params, stage, x_in, H=HEADS[si],
                              patch_embed=is_first, final_head=is_last)
        if is_last:
            return out.reshape(B, NUM_CLASSES)
        tokens = out
        if "pool" in stage:
            spatial, cls, side = conv_head_pooling(
                stage["pool"], tokens[:, 1:], tokens[:, :1], side)
            tokens = jnp.concatenate([cls, spatial], axis=1)
    return tokens  # unreachable for this config


# --------------------------------- parameters -------------------------------------------
def init_params(key):
    keys = list(jax.random.split(key, 128))
    kidx = [0]

    def randn(shape, std=0.02):
        k = keys[kidx[0]]
        kidx[0] += 1
        return (std * jax.random.normal(k, shape)).astype(jnp.float32)

    C0 = BASE_DIMS[0] * HEADS[0]
    feat = (IMG_SIZE - PATCH) // STRIDE + 1
    pos_nchw = randn((1, C0, feat, feat))
    params = {
        # positional embedding stored in token layout (HW, C) == NCHW pos_embed flattened
        "pos_tok": pos_nchw[0].reshape(C0, feat * feat).T,
        "cls_token": randn((1, C0)),
        "pe_w": randn((IN_CHANS * PATCH * PATCH, C0)),
        "pe_b": randn((1, C0)),
    }
    stages = []
    for s in range(len(DEPTH)):
        dim = BASE_DIMS[s] * HEADS[s]
        H = HEADS[s]
        hd = dim // H
        hidden = int(dim * MLP_RATIO)
        blocks, wmix_list, bmix_list = [], [], []
        for _ in range(DEPTH[s]):
            # conv_attn (1x1 conv + BatchNorm2d eval) and the three learnable scales are
            # folded into one (H, 3H) mixing matrix + (H,) bias, used as SMEM scalars.
            wc = randn((H, 3 * H))
            bc = randn((H,))
            gamma = jnp.ones((H,), jnp.float32)
            beta = jnp.zeros((H,), jnp.float32)
            run_mean = jnp.zeros((H,), jnp.float32)
            run_var = jnp.ones((H,), jnp.float32)
            bn_scale = gamma / jnp.sqrt(run_var + 1e-5)
            scale = riem_scale = grass_scale = hd ** -0.5
            col_scale = jnp.concatenate(
                [jnp.full((H,), scale), jnp.full((H,), riem_scale),
                 jnp.full((H,), grass_scale)]).astype(jnp.float32)
            w_mix = wc * bn_scale[:, None] * col_scale[None, :]
            b_mix = (bc - run_mean) * bn_scale + beta
            wmix_list.append(w_mix.reshape(-1))
            bmix_list.append(b_mix.reshape(-1))
            blocks.append({
                "ln1_g": jnp.ones((1, dim), jnp.float32),
                "ln1_b": jnp.zeros((1, dim), jnp.float32),
                "ln2_g": jnp.ones((1, dim), jnp.float32),
                "ln2_b": jnp.zeros((1, dim), jnp.float32),
                "w_qkv": randn((dim, 3 * dim)),
                "b_qkv": randn((1, 3 * dim)),
                "w_proj": randn((dim, dim)),
                "b_proj": randn((1, dim)),
                "w_fc1": randn((dim, hidden)),
                "b_fc1": randn((1, hidden)),
                "w_fc2": randn((hidden, dim)),
                "b_fc2": randn((1, dim)),
            })
        # (C, H) 0/1 head-segment matrix for batched per-head norms / head masks
        seg = (jnp.arange(dim)[:, None] // hd == jnp.arange(H)[None, :]).astype(jnp.float32)
        stage = {
            "blocks": blocks,
            "seg": seg,
            "segT": seg.T,
            "w_mix_flat": jnp.concatenate(wmix_list),
            "b_mix_flat": jnp.concatenate(bmix_list),
        }
        if s < len(HEADS) - 1:
            in_f = BASE_DIMS[s] * HEADS[s]
            out_f = BASE_DIMS[s + 1] * HEADS[s + 1]
            w_dw = randn((out_f, 1, POOL_K, POOL_K))   # PyTorch depthwise layout (O, 1, kh, kw)
            stage["pool"] = {
                "w_conv_hwio": jnp.transpose(w_dw, (2, 3, 1, 0)),  # (kh, kw, 1, O) for NHWC
                "b_conv": randn((out_f,)),
                "w_fc": randn((in_f, out_f)),
                "b_fc": randn((out_f,)),
            }
        stages.append(stage)
    params["stages"] = stages
    Cl = BASE_DIMS[-1] * HEADS[-1]
    params["norm_g"] = jnp.ones((1, Cl), jnp.float32)
    params["norm_b"] = jnp.zeros((1, Cl), jnp.float32)
    params["head_w"] = randn((Cl, NUM_CLASSES))
    params["head_b"] = randn((1, NUM_CLASSES))
    return params


if __name__ == "__main__":
    key = jax.random.PRNGKey(0)
    pkey, xkey = jax.random.split(key)
    params = init_params(pkey)
    x = jax.random.normal(xkey, (BATCH, IN_CHANS, IMG_SIZE, IMG_SIZE), jnp.float32)
    fwd = jax.jit(forward)
    logits = fwd(params, x)
    jax.block_until_ready(logits)
    assert logits.shape == (BATCH, NUM_CLASSES)
    print("KERNEL_OK")
</pallas_src>

<mosaic_0001>
module attributes {stable_mosaic.version = 11 : i64} {
  func.func @_stage_kernel(%arg0: i32, %arg1: memref<1x17x48xf32, #tpu.memory_space<vmem>>, %arg2: memref<48x8xf32, #tpu.memory_space<vmem>>, %arg3: memref<17x8xf32, #tpu.memory_space<vmem>>, %arg4: memref<8x2xf32, #tpu.memory_space<vmem>>, %arg5: memref<2x8xf32, #tpu.memory_space<vmem>>, %arg6: memref<1x8xf32, #tpu.memory_space<vmem>>, %arg7: memref<1x8xf32, #tpu.memory_space<vmem>>, %arg8: memref<8x24xf32, #tpu.memory_space<vmem>>, %arg9: memref<1x24xf32, #tpu.memory_space<vmem>>, %arg10: memref<8x8xf32, #tpu.memory_space<vmem>>, %arg11: memref<1x8xf32, #tpu.memory_space<vmem>>, %arg12: memref<1x8xf32, #tpu.memory_space<vmem>>, %arg13: memref<1x8xf32, #tpu.memory_space<vmem>>, %arg14: memref<8x16xf32, #tpu.memory_space<vmem>>, %arg15: memref<1x16xf32, #tpu.memory_space<vmem>>, %arg16: memref<16x8xf32, #tpu.memory_space<vmem>>, %arg17: memref<1x8xf32, #tpu.memory_space<vmem>>, %arg18: memref<12xf32, #tpu.memory_space<smem>>, %arg19: memref<2xf32, #tpu.memory_space<smem>>, %arg20: memref<1x17x8xf32, #tpu.memory_space<vmem>>) attributes {dimension_semantics = [#tpu.dimension_semantics<parallel>], iteration_bounds = array<i64: 2>, scalar_prefetch = 0 : i64, scratch_operands = 0 : i64, tpu.core_type = #tpu.core_type<tc>, window_params = [{transform_indices = @transform_0, window_bounds = array<i64: 1, 17, 48>}, {pipeline_mode = #tpu.pipeline_mode<synchronous>, transform_indices = @transform_1, window_bounds = array<i64: 48, 8>}, {pipeline_mode = #tpu.pipeline_mode<synchronous>, transform_indices = @transform_2, window_bounds = array<i64: 17, 8>}, {pipeline_mode = #tpu.pipeline_mode<synchronous>, transform_indices = @transform_3, window_bounds = array<i64: 8, 2>}, {pipeline_mode = #tpu.pipeline_mode<synchronous>, transform_indices = @transform_4, window_bounds = array<i64: 2, 8>}, {pipeline_mode = #tpu.pipeline_mode<synchronous>, transform_indices = @transform_5, window_bounds = array<i64: 1, 8>}, {pipeline_mode = #tpu.pipeline_mode<synchronous>, transform_indices = @transform_6, window_bounds = array<i64: 1, 8>}, {pipeline_mode = #tpu.pipeline_mode<synchronous>, transform_indices = @transform_7, window_bounds = array<i64: 8, 24>}, {pipeline_mode = #tpu.pipeline_mode<synchronous>, transform_indices = @transform_8, window_bounds = array<i64: 1, 24>}, {pipeline_mode = #tpu.pipeline_mode<synchronous>, transform_indices = @transform_9, window_bounds = array<i64: 8, 8>}, {pipeline_mode = #tpu.pipeline_mode<synchronous>, transform_indices = @transform_10, window_bounds = array<i64: 1, 8>}, {pipeline_mode = #tpu.pipeline_mode<synchronous>, transform_indices = @transform_11, window_bounds = array<i64: 1, 8>}, {pipeline_mode = #tpu.pipeline_mode<synchronous>, transform_indices = @transform_12, window_bounds = array<i64: 1, 8>}, {pipeline_mode = #tpu.pipeline_mode<synchronous>, transform_indices = @transform_13, window_bounds = array<i64: 8, 16>}, {pipeline_mode = #tpu.pipeline_mode<synchronous>, transform_indices = @transform_14, window_bounds = array<i64: 1, 16>}, {pipeline_mode = #tpu.pipeline_mode<synchronous>, transform_indices = @transform_15, window_bounds = array<i64: 16, 8>}, {pipeline_mode = #tpu.pipeline_mode<synchronous>, transform_indices = @transform_16, window_bounds = array<i64: 1, 8>}, {transform_indices = @transform_17, window_bounds = array<i64: 12>}, {transform_indices = @transform_18, window_bounds = array<i64: 2>}, {transform_indices = @transform_19, window_bounds = array<i64: 1, 17, 8>}]} {
    %c0 = arith.constant 0 : index
    %c0_0 = arith.constant 0 : index
    %c0_1 = arith.constant 0 : index
    %0 = vector.load %arg1[%c0, %c0_0, %c0_1] : memref<1x17x48xf32, #tpu.memory_space<vmem>>, vector<1x17x48xf32>
    %1 = vector.shape_cast %0 : vector<1x17x48xf32> to vector<17x48xf32>
    %c0_2 = arith.constant 0 : index
    %c0_3 = arith.constant 0 : index
    %2 = vector.load %arg2[%c0_2, %c0_3] : memref<48x8xf32, #tpu.memory_space<vmem>>, vector<48x8xf32>
    %cst = arith.constant dense<0.000000e+00> : vector<17x8xf32>
    %3 = tpu.matmul %1, %2, %cst {dimension_numbers = #tpu.dot_dimension_numbers<[1], [0], [0], [1], [0, 0, 1, 1], [], []>} : vector<17x48xf32>, vector<48x8xf32>, vector<17x8xf32> -> vector<17x8xf32>
    %c0_4 = arith.constant 0 : index
    %c0_5 = arith.constant 0 : index
    %4 = vector.load %arg3[%c0_4, %c0_5] : memref<17x8xf32, #tpu.memory_space<vmem>>, vector<17x8xf32>
    %5 = arith.addf %3, %4 : vector<17x8xf32>
    %c0_6 = arith.constant 0 : index
    %c0_7 = arith.constant 0 : index
    %6 = vector.load %arg4[%c0_6, %c0_7] : memref<8x2xf32, #tpu.memory_space<vmem>>, vector<8x2xf32>
    %c0_8 = arith.constant 0 : index
    %c0_9 = arith.constant 0 : index
    %7 = vector.load %arg6[%c0_8, %c0_9] : memref<1x8xf32, #tpu.memory_space<vmem>>, vector<1x8xf32>
    %c0_10 = arith.constant 0 : index
    %c0_11 = arith.constant 0 : index
    %8 = vector.load %arg7[%c0_10, %c0_11] : memref<1x8xf32, #tpu.memory_space<vmem>>, vector<1x8xf32>
    %cst_12 = arith.constant dense<0.000000e+00> : vector<17xf32>
    %9 = vector.multi_reduction <add>, %5, %cst_12 [1] : vector<17x8xf32> to vector<17xf32>
    %10 = vector.shape_cast %9 : vector<17xf32> to vector<17x1xf32>
    %cst_13 = arith.constant 8.000000e+00 : f32
    %11 = vector.broadcast %cst_13 : f32 to vector<17x1xf32>
    %12 = arith.divf %10, %11 : vector<17x1xf32>
    %13 = vector.broadcast %12 : vector<17x1xf32> to vector<17x8xf32>
    %14 = arith.subf %5, %13 : vector<17x8xf32>
    %15 = arith.mulf %14, %14 : vector<17x8xf32>
    %cst_14 = arith.constant dense<0.000000e+00> : vector<17xf32>
    %16 = vector.multi_reduction <add>, %15, %cst_14 [1] : vector<17x8xf32> to vector<17xf32>
    %17 = vector.shape_cast %16 : vector<17xf32> to vector<17x1xf32>
    %cst_15 = arith.constant 8.000000e+00 : f32
    %18 = vector.broadcast %cst_15 : f32 to vector<17x1xf32>
    %19 = arith.divf %17, %18 : vector<17x1xf32>
    %cst_16 = arith.constant 9.99999997E-7 : f32
    %20 = vector.broadcast %cst_16 : f32 to vector<17x1xf32>
    %21 = arith.addf %19, %20 : vector<17x1xf32>
    %22 = math.rsqrt %21 : vector<17x1xf32>
    %23 = vector.broadcast %22 : vector<17x1xf32> to vector<17x8xf32>
    %24 = arith.mulf %14, %23 : vector<17x8xf32>
    %25 = vector.broadcast %7 : vector<1x8xf32> to vector<17x8xf32>
    %26 = arith.mulf %24, %25 : vector<17x8xf32>
    %27 = vector.broadcast %8 : vector<1x8xf32> to vector<17x8xf32>
    %28 = arith.addf %26, %27 : vector<17x8xf32>
    %c0_17 = arith.constant 0 : index
    %c0_18 = arith.constant 0 : index
    %29 = vector.load %arg8[%c0_17, %c0_18] : memref<8x24xf32, #tpu.memory_space<vmem>>, vector<8x24xf32>
    %cst_19 = arith.constant dense<0.000000e+00> : vector<17x24xf32>
    %30 = tpu.matmul %28, %29, %cst_19 {dimension_numbers = #tpu.dot_dimension_numbers<[1], [0], [0], [1], [0, 0, 1, 1], [], []>} : vector<17x8xf32>, vector<8x24xf32>, vector<17x24xf32> -> vector<17x24xf32>
    %c0_20 = arith.constant 0 : index
    %c0_21 = arith.constant 0 : index
    %31 = vector.load %arg9[%c0_20, %c0_21] : memref<1x24xf32, #tpu.memory_space<vmem>>, vector<1x24xf32>
    %32 = vector.broadcast %31 : vector<1x24xf32> to vector<17x24xf32>
    %33 = arith.addf %30, %32 : vector<17x24xf32>
    %34 = vector.extract_strided_slice %33 {offsets = [0, 0], sizes = [17, 8], strides = [1, 1]} : vector<17x24xf32> to vector<17x8xf32>
    %35 = vector.extract_strided_slice %33 {offsets = [0, 8], sizes = [17, 8], strides = [1, 1]} : vector<17x24xf32> to vector<17x8xf32>
    %36 = vector.extract_strided_slice %33 {offsets = [0, 16], sizes = [17, 8], strides = [1, 1]} : vector<17x24xf32> to vector<17x8xf32>
    %37 = arith.mulf %34, %34 : vector<17x8xf32>
    %cst_22 = arith.constant dense<0.000000e+00> : vector<17x2xf32>
    %38 = tpu.matmul %37, %6, %cst_22 {dimension_numbers = #tpu.dot_dimension_numbers<[1], [0], [0], [1], [0, 0, 1, 1], [], []>} : vector<17x8xf32>, vector<8x2xf32>, vector<17x2xf32> -> vector<17x2xf32>
    %c0_23 = arith.constant 0 : index
    %c0_24 = arith.constant 0 : index
    %39 = vector.load %arg5[%c0_23, %c0_24] : memref<2x8xf32, #tpu.memory_space<vmem>>, vector<2x8xf32>
    %40 = arith.mulf %35, %35 : vector<17x8xf32>
    "tpu.trace_start"() <{level = 10 : i32, message = "hc,nc->hn"}> : () -> ()
    %cst_25 = arith.constant dense<0.000000e+00> : vector<2x17xf32>
    %41 = tpu.matmul %39, %40, %cst_25 {dimension_numbers = #tpu.dot_dimension_numbers<[1], [1], [0], [0], [0, 0, 1, 0], [], []>} : vector<2x8xf32>, vector<17x8xf32>, vector<2x17xf32> -> vector<2x17xf32>
    "tpu.trace_stop"() : () -> ()
    %cst_26 = arith.constant 9.99999996E-13 : f32
    %42 = vector.broadcast %cst_26 : f32 to vector<17x2xf32>
    %43 = arith.addf %38, %42 : vector<17x2xf32>
    %cst_27 = arith.constant 1.000000e+00 : f32
    %44 = vector.broadcast %cst_27 : f32 to vector<17x2xf32>
    %45 = arith.divf %44, %43 : vector<17x2xf32>
    %cst_28 = arith.constant 9.99999996E-13 : f32
    %46 = vector.broadcast %cst_28 : f32 to vector<2x17xf32>
    %47 = arith.addf %41, %46 : vector<2x17xf32>
    %cst_29 = arith.constant 1.000000e+00 : f32
    %48 = vector.broadcast %cst_29 : f32 to vector<2x17xf32>
    %49 = arith.divf %48, %47 : vector<2x17xf32>
    %c0_30 = arith.constant 0 : index
    %c0_31 = arith.constant 0 : index
    %50 = vector.load %arg5[%c0_30, %c0_31] : memref<2x8xf32, #tpu.memory_space<vmem>>, vector<1x8xf32>
    %51 = vector.broadcast %50 : vector<1x8xf32> to vector<17x8xf32>
    %52 = arith.mulf %34, %51 : vector<17x8xf32>
    "tpu.trace_start"() <{level = 10 : i32, message = "nc,mc->nm"}> : () -> ()
    %cst_32 = arith.constant dense<0.000000e+00> : vector<17x17xf32>
    %53 = tpu.matmul %52, %35, %cst_32 {dimension_numbers = #tpu.dot_dimension_numbers<[1], [1], [0], [0], [0, 0, 1, 0], [], []>} : vector<17x8xf32>, vector<17x8xf32>, vector<17x17xf32> -> vector<17x17xf32>
    "tpu.trace_stop"() : () -> ()
    %54 = arith.mulf %53, %53 : vector<17x17xf32>
    %55 = vector.extract_strided_slice %45 {offsets = [0, 0], sizes = [17, 1], strides = [1, 1]} : vector<17x2xf32> to vector<17x1xf32>
    %56 = vector.broadcast %55 : vector<17x1xf32> to vector<17x17xf32>
    %57 = arith.mulf %54, %56 : vector<17x17xf32>
    %58 = vector.extract_strided_slice %49 {offsets = [0, 0], sizes = [1, 17], strides = [1, 1]} : vector<2x17xf32> to vector<1x17xf32>
    %59 = vector.broadcast %58 : vector<1x17xf32> to vector<17x17xf32>
    %60 = arith.mulf %57, %59 : vector<17x17xf32>
    %c1 = arith.constant 1 : index
    %c0_33 = arith.constant 0 : index
    %61 = vector.load %arg5[%c1, %c0_33] : memref<2x8xf32, #tpu.memory_space<vmem>>, vector<1x8xf32>
    %62 = vector.broadcast %61 : vector<1x8xf32> to vector<17x8xf32>
    %63 = arith.mulf %34, %62 : vector<17x8xf32>
    "tpu.trace_start"() <{level = 10 : i32, message = "nc,mc->nm"}> : () -> ()
    %cst_34 = arith.constant dense<0.000000e+00> : vector<17x17xf32>
    %64 = tpu.matmul %63, %35, %cst_34 {dimension_numbers = #tpu.dot_dimension_numbers<[1], [1], [0], [0], [0, 0, 1, 0], [], []>} : vector<17x8xf32>, vector<17x8xf32>, vector<17x17xf32> -> vector<17x17xf32>
    "tpu.trace_stop"() : () -> ()
    %65 = arith.mulf %64, %64 : vector<17x17xf32>
    %66 = vector.extract_strided_slice %45 {offsets = [0, 1], sizes = [17, 1], strides = [1, 1]} : vector<17x2xf32> to vector<17x1xf32>
    %67 = vector.broadcast %66 : vector<17x1xf32> to vector<17x17xf32>
    %68 = arith.mulf %65, %67 : vector<17x17xf32>
    %69 = vector.extract_strided_slice %49 {offsets = [1, 0], sizes = [1, 17], strides = [1, 1]} : vector<2x17xf32> to vector<1x17xf32>
    %70 = vector.broadcast %69 : vector<1x17xf32> to vector<17x17xf32>
    %71 = arith.mulf %68, %70 : vector<17x17xf32>
    %c0_35 = arith.constant 0 : index
    %72 = memref.load %arg18[%c0_35] : memref<12xf32, #tpu.memory_space<smem>>
    %73 = vector.broadcast %72 : f32 to vector<17x17xf32>
    %74 = arith.mulf %53, %73 : vector<17x17xf32>
    %c1_36 = arith.constant 1 : index
    %75 = memref.load %arg18[%c1_36] : memref<12xf32, #tpu.memory_space<smem>>
    %76 = vector.broadcast %75 : f32 to vector<17x17xf32>
    %77 = arith.mulf %64, %76 : vector<17x17xf32>
    %78 = arith.addf %74, %77 : vector<17x17xf32>
    %c2 = arith.constant 2 : index
    %79 = memref.load %arg18[%c2] : memref<12xf32, #tpu.memory_space<smem>>
    %80 = vector.broadcast %79 : f32 to vector<17x17xf32>
    %81 = arith.mulf %54, %80 : vector<17x17xf32>
    %82 = arith.addf %78, %81 : vector<17x17xf32>
    %c3 = arith.constant 3 : index
    %83 = memref.load %arg18[%c3] : memref<12xf32, #tpu.memory_space<smem>>
    %84 = vector.broadcast %83 : f32 to vector<17x17xf32>
    %85 = arith.mulf %65, %84 : vector<17x17xf32>
    %86 = arith.addf %82, %85 : vector<17x17xf32>
    %c4 = arith.constant 4 : index
    %87 = memref.load %arg18[%c4] : memref<12xf32, #tpu.memory_space<smem>>
    %88 = vector.broadcast %87 : f32 to vector<17x17xf32>
    %89 = arith.mulf %60, %88 : vector<17x17xf32>
    %90 = arith.addf %86, %89 : vector<17x17xf32>
    %c5 = arith.constant 5 : index
    %91 = memref.load %arg18[%c5] : memref<12xf32, #tpu.memory_space<smem>>
    %92 = vector.broadcast %91 : f32 to vector<17x17xf32>
    %93 = arith.mulf %71, %92 : vector<17x17xf32>
    %94 = arith.addf %90, %93 : vector<17x17xf32>
    %c0_37 = arith.constant 0 : index
    %95 = memref.load %arg19[%c0_37] : memref<2xf32, #tpu.memory_space<smem>>
    %96 = vector.broadcast %95 : f32 to vector<17x17xf32>
    %97 = arith.addf %94, %96 : vector<17x17xf32>
    %cst_38 = arith.constant dense<0xFF800000> : vector<17xf32>
    %98 = vector.multi_reduction <maximumf>, %97, %cst_38 [1] : vector<17x17xf32> to vector<17xf32>
    %99 = vector.shape_cast %98 : vector<17xf32> to vector<17x1xf32>
    %100 = vector.broadcast %99 : vector<17x1xf32> to vector<17x17xf32>
    %101 = arith.subf %97, %100 : vector<17x17xf32>
    %102 = math.exp %101 : vector<17x17xf32>
    %cst_39 = arith.constant dense<0.000000e+00> : vector<17xf32>
    %103 = vector.multi_reduction <add>, %102, %cst_39 [1] : vector<17x17xf32> to vector<17xf32>
    %104 = vector.shape_cast %103 : vector<17xf32> to vector<17x1xf32>
    %105 = tpu.reciprocal %104 {approx = true} : vector<17x1xf32> -> vector<17x1xf32>
    %106 = vector.broadcast %105 : vector<17x1xf32> to vector<17x17xf32>
    %107 = arith.mulf %102, %106 : vector<17x17xf32>
    %c0_40 = arith.constant 0 : index
    %c0_41 = arith.constant 0 : index
    %108 = vector.load %arg5[%c0_40, %c0_41] : memref<2x8xf32, #tpu.memory_space<vmem>>, vector<1x8xf32>
    %109 = vector.broadcast %108 : vector<1x8xf32> to vector<17x8xf32>
    %110 = arith.mulf %36, %109 : vector<17x8xf32>
    %cst_42 = arith.constant dense<0.000000e+00> : vector<17x8xf32>
    %111 = tpu.matmul %107, %110, %cst_42 {dimension_numbers = #tpu.dot_dimension_numbers<[1], [0], [0], [1], [0, 0, 1, 1], [], []>} : vector<17x17xf32>, vector<17x8xf32>, vector<17x8xf32> -> vector<17x8xf32>
    %c6 = arith.constant 6 : index
    %112 = memref.load %arg18[%c6] : memref<12xf32, #tpu.memory_space<smem>>
    %113 = vector.broadcast %112 : f32 to vector<17x17xf32>
    %114 = arith.mulf %53, %113 : vector<17x17xf32>
    %c7 = arith.constant 7 : index
    %115 = memref.load %arg18[%c7] : memref<12xf32, #tpu.memory_space<smem>>
    %116 = vector.broadcast %115 : f32 to vector<17x17xf32>
    %117 = arith.mulf %64, %116 : vector<17x17xf32>
    %118 = arith.addf %114, %117 : vector<17x17xf32>
    %c8 = arith.constant 8 : index
    %119 = memref.load %arg18[%c8] : memref<12xf32, #tpu.memory_space<smem>>
    %120 = vector.broadcast %119 : f32 to vector<17x17xf32>
    %121 = arith.mulf %54, %120 : vector<17x17xf32>
    %122 = arith.addf %118, %121 : vector<17x17xf32>
    %c9 = arith.constant 9 : index
    %123 = memref.load %arg18[%c9] : memref<12xf32, #tpu.memory_space<smem>>
    %124 = vector.broadcast %123 : f32 to vector<17x17xf32>
    %125 = arith.mulf %65, %124 : vector<17x17xf32>
    %126 = arith.addf %122, %125 : vector<17x17xf32>
    %c10 = arith.constant 10 : index
    %127 = memref.load %arg18[%c10] : memref<12xf32, #tpu.memory_space<smem>>
    %128 = vector.broadcast %127 : f32 to vector<17x17xf32>
    %129 = arith.mulf %60, %128 : vector<17x17xf32>
    %130 = arith.addf %126, %129 : vector<17x17xf32>
    %c11 = arith.constant 11 : index
    %131 = memref.load %arg18[%c11] : memref<12xf32, #tpu.memory_space<smem>>
    %132 = vector.broadcast %131 : f32 to vector<17x17xf32>
    %133 = arith.mulf %71, %132 : vector<17x17xf32>
    %134 = arith.addf %130, %133 : vector<17x17xf32>
    %c1_43 = arith.constant 1 : index
    %135 = memref.load %arg19[%c1_43] : memref<2xf32, #tpu.memory_space<smem>>
    %136 = vector.broadcast %135 : f32 to vector<17x17xf32>
    %137 = arith.addf %134, %136 : vector<17x17xf32>
    %cst_44 = arith.constant dense<0xFF800000> : vector<17xf32>
    %138 = vector.multi_reduction <maximumf>, %137, %cst_44 [1] : vector<17x17xf32> to vector<17xf32>
    %139 = vector.shape_cast %138 : vector<17xf32> to vector<17x1xf32>
    %140 = vector.broadcast %139 : vector<17x1xf32> to vector<17x17xf32>
    %141 = arith.subf %137, %140 : vector<17x17xf32>
    %142 = math.exp %141 : vector<17x17xf32>
    %cst_45 = arith.constant dense<0.000000e+00> : vector<17xf32>
    %143 = vector.multi_reduction <add>, %142, %cst_45 [1] : vector<17x17xf32> to vector<17xf32>
    %144 = vector.shape_cast %143 : vector<17xf32> to vector<17x1xf32>
    %145 = tpu.reciprocal %144 {approx = true} : vector<17x1xf32> -> vector<17x1xf32>
    %146 = vector.broadcast %145 : vector<17x1xf32> to vector<17x17xf32>
    %147 = arith.mulf %142, %146 : vector<17x17xf32>
    %c1_46 = arith.constant 1 : index
    %c0_47 = arith.constant 0 : index
    %148 = vector.load %arg5[%c1_46, %c0_47] : memref<2x8xf32, #tpu.memory_space<vmem>>, vector<1x8xf32>
    %149 = vector.broadcast %148 : vector<1x8xf32> to vector<17x8xf32>
    %150 = arith.mulf %36, %149 : vector<17x8xf32>
    %cst_48 = arith.constant dense<0.000000e+00> : vector<17x8xf32>
    %151 = tpu.matmul %147, %150, %cst_48 {dimension_numbers = #tpu.dot_dimension_numbers<[1], [0], [0], [1], [0, 0, 1, 1], [], []>} : vector<17x17xf32>, vector<17x8xf32>, vector<17x8xf32> -> vector<17x8xf32>
    %152 = arith.addf %111, %151 : vector<17x8xf32>
    %c0_49 = arith.constant 0 : index
    %c0_50 = arith.constant 0 : index
    %153 = vector.load %arg10[%c0_49, %c0_50] : memref<8x8xf32, #tpu.memory_space<vmem>>, vector<8x8xf32>
    %cst_51 = arith.constant dense<0.000000e+00> : vector<17x8xf32>
    %154 = tpu.matmul %152, %153, %cst_51 {dimension_numbers = #tpu.dot_dimension_numbers<[1], [0], [0], [1], [0, 0, 1, 1], [], []>} : vector<17x8xf32>, vector<8x8xf32>, vector<17x8xf32> -> vector<17x8xf32>
    %155 = arith.addf %5, %154 : vector<17x8xf32>
    %c0_52 = arith.constant 0 : index
    %c0_53 = arith.constant 0 : index
    %156 = vector.load %arg11[%c0_52, %c0_53] : memref<1x8xf32, #tpu.memory_space<vmem>>, vector<1x8xf32>
    %157 = vector.broadcast %156 : vector<1x8xf32> to vector<17x8xf32>
    %158 = arith.addf %155, %157 : vector<17x8xf32>
    %c0_54 = arith.constant 0 : index
    %c0_55 = arith.constant 0 : index
    %159 = vector.load %arg12[%c0_54, %c0_55] : memref<1x8xf32, #tpu.memory_space<vmem>>, vector<1x8xf32>
    %c0_56 = arith.constant 0 : index
    %c0_57 = arith.constant 0 : index
    %160 = vector.load %arg13[%c0_56, %c0_57] : memref<1x8xf32, #tpu.memory_space<vmem>>, vector<1x8xf32>
    %cst_58 = arith.constant dense<0.000000e+00> : vector<17xf32>
    %161 = vector.multi_reduction <add>, %158, %cst_58 [1] : vector<17x8xf32> to vector<17xf32>
    %162 = vector.shape_cast %161 : vector<17xf32> to vector<17x1xf32>
    %cst_59 = arith.constant 8.000000e+00 : f32
    %163 = vector.broadcast %cst_59 : f32 to vector<17x1xf32>
    %164 = arith.divf %162, %163 : vector<17x1xf32>
    %165 = vector.broadcast %164 : vector<17x1xf32> to vector<17x8xf32>
    %166 = arith.subf %158, %165 : vector<17x8xf32>
    %167 = arith.mulf %166, %166 : vector<17x8xf32>
    %cst_60 = arith.constant dense<0.000000e+00> : vector<17xf32>
    %168 = vector.multi_reduction <add>, %167, %cst_60 [1] : vector<17x8xf32> to vector<17xf32>
    %169 = vector.shape_cast %168 : vector<17xf32> to vector<17x1xf32>
    %cst_61 = arith.constant 8.000000e+00 : f32
    %170 = vector.broadcast %cst_61 : f32 to vector<17x1xf32>
    %171 = arith.divf %169, %170 : vector<17x1xf32>
    %cst_62 = arith.constant 9.99999997E-7 : f32
    %172 = vector.broadcast %cst_62 : f32 to vector<17x1xf32>
    %173 = arith.addf %171, %172 : vector<17x1xf32>
    %174 = math.rsqrt %173 : vector<17x1xf32>
    %175 = vector.broadcast %174 : vector<17x1xf32> to vector<17x8xf32>
    %176 = arith.mulf %166, %175 : vector<17x8xf32>
    %177 = vector.broadcast %159 : vector<1x8xf32> to vector<17x8xf32>
    %178 = arith.mulf %176, %177 : vector<17x8xf32>
    %179 = vector.broadcast %160 : vector<1x8xf32> to vector<17x8xf32>
    %180 = arith.addf %178, %179 : vector<17x8xf32>
    %c0_63 = arith.constant 0 : index
    %c0_64 = arith.constant 0 : index
    %181 = vector.load %arg14[%c0_63, %c0_64] : memref<8x16xf32, #tpu.memory_space<vmem>>, vector<8x16xf32>
    %cst_65 = arith.constant dense<0.000000e+00> : vector<17x16xf32>
    %182 = tpu.matmul %180, %181, %cst_65 {dimension_numbers = #tpu.dot_dimension_numbers<[1], [0], [0], [1], [0, 0, 1, 1], [], []>} : vector<17x8xf32>, vector<8x16xf32>, vector<17x16xf32> -> vector<17x16xf32>
    %c0_66 = arith.constant 0 : index
    %c0_67 = arith.constant 0 : index
    %183 = vector.load %arg15[%c0_66, %c0_67] : memref<1x16xf32, #tpu.memory_space<vmem>>, vector<1x16xf32>
    %184 = vector.broadcast %183 : vector<1x16xf32> to vector<17x16xf32>
    %185 = arith.addf %182, %184 : vector<17x16xf32>
    %cst_68 = arith.constant 5.000000e-01 : f32
    %186 = vector.broadcast %cst_68 : f32 to vector<17x16xf32>
    %187 = arith.mulf %186, %185 : vector<17x16xf32>
    %cst_69 = arith.constant 4.471500e-02 : f32
    %188 = vector.broadcast %cst_69 : f32 to vector<17x16xf32>
    %189 = arith.mulf %188, %185 : vector<17x16xf32>
    %190 = arith.mulf %189, %185 : vector<17x16xf32>
    %191 = arith.mulf %190, %185 : vector<17x16xf32>
    %192 = arith.addf %185, %191 : vector<17x16xf32>
    %cst_70 = arith.constant 0.797884583 : f32
    %193 = vector.broadcast %cst_70 : f32 to vector<17x16xf32>
    %194 = arith.mulf %193, %192 : vector<17x16xf32>
    %195 = math.tanh %194 : vector<17x16xf32>
    %cst_71 = arith.constant 1.000000e+00 : f32
    %196 = vector.broadcast %cst_71 : f32 to vector<17x16xf32>
    %197 = arith.addf %196, %195 : vector<17x16xf32>
    %198 = arith.mulf %187, %197 : vector<17x16xf32>
    %c0_72 = arith.constant 0 : index
    %c0_73 = arith.constant 0 : index
    %199 = vector.load %arg16[%c0_72, %c0_73] : memref<16x8xf32, #tpu.memory_space<vmem>>, vector<16x8xf32>
    %cst_74 = arith.constant dense<0.000000e+00> : vector<17x8xf32>
    %200 = tpu.matmul %198, %199, %cst_74 {dimension_numbers = #tpu.dot_dimension_numbers<[1], [0], [0], [1], [0, 0, 1, 1], [], []>} : vector<17x16xf32>, vector<16x8xf32>, vector<17x8xf32> -> vector<17x8xf32>
    %201 = arith.addf %158, %200 : vector<17x8xf32>
    %c0_75 = arith.constant 0 : index
    %c0_76 = arith.constant 0 : index
    %202 = vector.load %arg17[%c0_75, %c0_76] : memref<1x8xf32, #tpu.memory_space<vmem>>, vector<1x8xf32>
    %203 = vector.broadcast %202 : vector<1x8xf32> to vector<17x8xf32>
    %204 = arith.addf %201, %203 : vector<17x8xf32>
    %c0_77 = arith.constant 0 : index
    %c0_78 = arith.constant 0 : index
    %c0_79 = arith.constant 0 : index
    %205 = vector.load %arg20[%c0_77, %c0_78, %c0_79] : memref<1x17x8xf32, #tpu.memory_space<vmem>>, vector<1x17x8xf32>
    %206 = vector.shape_cast %205 : vector<1x17x8xf32> to vector<17x8xf32>
    %207 = vector.shape_cast %204 : vector<17x8xf32> to vector<1x17x8xf32>
    tpu.vector_store %arg20[%c0_77, %c0_78, %c0_79], %207 {strides = array<i32>} : memref<1x17x8xf32, #tpu.memory_space<vmem>>, vector<1x17x8xf32>,
    return
  }
  func.func @transform_0(%arg0: i32) -> (i32, i32, i32) {
    %c0_i32 = arith.constant 0 : i32
    %c0_i32_0 = arith.constant 0 : i32
    %c0_i32_1 = arith.constant 0 : i32
    return %arg0, %c0_i32, %c0_i32_0 : i32, i32, i32
  }
  func.func @transform_1(%arg0: i32) -> (i32, i32) {
    %c0_i32 = arith.constant 0 : i32
    %c0_i32_0 = arith.constant 0 : i32
    %c0_i32_1 = arith.constant 0 : i32
    return %c0_i32, %c0_i32_0 : i32, i32
  }
  func.func @transform_2(%arg0: i32) -> (i32, i32) {
    %c0_i32 = arith.constant 0 : i32
    %c0_i32_0 = arith.constant 0 : i32
    %c0_i32_1 = arith.constant 0 : i32
    return %c0_i32, %c0_i32_0 : i32, i32
  }
  func.func @transform_3(%arg0: i32) -> (i32, i32) {
    %c0_i32 = arith.constant 0 : i32
    %c0_i32_0 = arith.constant 0 : i32
    %c0_i32_1 = arith.constant 0 : i32
    return %c0_i32, %c0_i32_0 : i32, i32
  }
  func.func @transform_4(%arg0: i32) -> (i32, i32) {
    %c0_i32 = arith.constant 0 : i32
    %c0_i32_0 = arith.constant 0 : i32
    %c0_i32_1 = arith.constant 0 : i32
    return %c0_i32, %c0_i32_0 : i32, i32
  }
  func.func @transform_5(%arg0: i32) -> (i32, i32) {
    %c0_i32 = arith.constant 0 : i32
    %c0_i32_0 = arith.constant 0 : i32
    %c0_i32_1 = arith.constant 0 : i32
    return %c0_i32, %c0_i32_0 : i32, i32
  }
  func.func @transform_6(%arg0: i32) -> (i32, i32) {
    %c0_i32 = arith.constant 0 : i32
    %c0_i32_0 = arith.constant 0 : i32
    %c0_i32_1 = arith.constant 0 : i32
    return %c0_i32, %c0_i32_0 : i32, i32
  }
  func.func @transform_7(%arg0: i32) -> (i32, i32) {
    %c0_i32 = arith.constant 0 : i32
    %c0_i32_0 = arith.constant 0 : i32
    %c0_i32_1 = arith.constant 0 : i32
    return %c0_i32, %c0_i32_0 : i32, i32
  }
  func.func @transform_8(%arg0: i32) -> (i32, i32) {
    %c0_i32 = arith.constant 0 : i32
    %c0_i32_0 = arith.constant 0 : i32
    %c0_i32_1 = arith.constant 0 : i32
    return %c0_i32, %c0_i32_0 : i32, i32
  }
  func.func @transform_9(%arg0: i32) -> (i32, i32) {
    %c0_i32 = arith.constant 0 : i32
    %c0_i32_0 = arith.constant 0 : i32
    %c0_i32_1 = arith.constant 0 : i32
    return %c0_i32, %c0_i32_0 : i32, i32
  }
  func.func @transform_10(%arg0: i32) -> (i32, i32) {
    %c0_i32 = arith.constant 0 : i32
    %c0_i32_0 = arith.constant 0 : i32
    %c0_i32_1 = arith.constant 0 : i32
    return %c0_i32, %c0_i32_0 : i32, i32
  }
  func.func @transform_11(%arg0: i32) -> (i32, i32) {
    %c0_i32 = arith.constant 0 : i32
    %c0_i32_0 = arith.constant 0 : i32
    %c0_i32_1 = arith.constant 0 : i32
    return %c0_i32, %c0_i32_0 : i32, i32
  }
  func.func @transform_12(%arg0: i32) -> (i32, i32) {
    %c0_i32 = arith.constant 0 : i32
    %c0_i32_0 = arith.constant 0 : i32
    %c0_i32_1 = arith.constant 0 : i32
    return %c0_i32, %c0_i32_0 : i32, i32
  }
  func.func @transform_13(%arg0: i32) -> (i32, i32) {
    %c0_i32 = arith.constant 0 : i32
    %c0_i32_0 = arith.constant 0 : i32
    %c0_i32_1 = arith.constant 0 : i32
    return %c0_i32, %c0_i32_0 : i32, i32
  }
  func.func @transform_14(%arg0: i32) -> (i32, i32) {
    %c0_i32 = arith.constant 0 : i32
    %c0_i32_0 = arith.constant 0 : i32
    %c0_i32_1 = arith.constant 0 : i32
    return %c0_i32, %c0_i32_0 : i32, i32
  }
  func.func @transform_15(%arg0: i32) -> (i32, i32) {
    %c0_i32 = arith.constant 0 : i32
    %c0_i32_0 = arith.constant 0 : i32
    %c0_i32_1 = arith.constant 0 : i32
    return %c0_i32, %c0_i32_0 : i32, i32
  }
  func.func @transform_16(%arg0: i32) -> (i32, i32) {
    %c0_i32 = arith.constant 0 : i32
    %c0_i32_0 = arith.constant 0 : i32
    %c0_i32_1 = arith.constant 0 : i32
    return %c0_i32, %c0_i32_0 : i32, i32
  }
  func.func @transform_17(%arg0: i32) -> i32 {
    %c0_i32 = arith.constant 0 : i32
    %c0_i32_0 = arith.constant 0 : i32
    return %c0_i32 : i32
  }
  func.func @transform_18(%arg0: i32) -> i32 {
    %c0_i32 = arith.constant 0 : i32
    %c0_i32_0 = arith.constant 0 : i32
    return %c0_i32 : i32
  }
  func.func @transform_19(%arg0: i32) -> (i32, i32, i32) {
    %c0_i32 = arith.constant 0 : i32
    %c0_i32_0 = arith.constant 0 : i32
    %c0_i32_1 = arith.constant 0 : i32
    return %arg0, %c0_i32, %c0_i32_0 : i32, i32, i32
  }
}

module attributes {stable_mosaic.version = 11 : i64} {
  func.func @_stage_kernel(%arg0: i32, %arg1: memref<1x5x16xf32, #tpu.memory_space<vmem>>, %arg2: memref<16x4xf32, #tpu.memory_space<vmem>>, %arg3: memref<4x16xf32, #tpu.memory_space<vmem>>, %arg4: memref<1x16xf32, #tpu.memory_space<vmem>>, %arg5: memref<1x16xf32, #tpu.memory_space<vmem>>, %arg6: memref<16x48xf32, #tpu.memory_space<vmem>>, %arg7: memref<1x48xf32, #tpu.memory_space<vmem>>, %arg8: memref<16x16xf32, #tpu.memory_space<vmem>>, %arg9: memref<1x16xf32, #tpu.memory_space<vmem>>, %arg10: memref<1x16xf32, #tpu.memory_space<vmem>>, %arg11: memref<1x16xf32, #tpu.memory_space<vmem>>, %arg12: memref<16x32xf32, #tpu.memory_space<vmem>>, %arg13: memref<1x32xf32, #tpu.memory_space<vmem>>, %arg14: memref<32x16xf32, #tpu.memory_space<vmem>>, %arg15: memref<1x16xf32, #tpu.memory_space<vmem>>, %arg16: memref<1x16xf32, #tpu.memory_space<vmem>>, %arg17: memref<1x16xf32, #tpu.memory_space<vmem>>, %arg18: memref<16x10xf32, #tpu.memory_space<vmem>>, %arg19: memref<1x10xf32, #tpu.memory_space<vmem>>, %arg20: memref<48xf32, #tpu.memory_space<smem>>, %arg21: memref<4xf32, #tpu.memory_space<smem>>, %arg22: memref<1x1x10xf32, #tpu.memory_space<vmem>>) attributes {dimension_semantics = [#tpu.dimension_semantics<parallel>], iteration_bounds = array<i64: 2>, scalar_prefetch = 0 : i64, scratch_operands = 0 : i64, tpu.core_type = #tpu.core_type<tc>, window_params = [{transform_indices = @transform_0, window_bounds = array<i64: 1, 5, 16>}, {pipeline_mode = #tpu.pipeline_mode<synchronous>, transform_indices = @transform_1, window_bounds = array<i64: 16, 4>}, {pipeline_mode = #tpu.pipeline_mode<synchronous>, transform_indices = @transform_2, window_bounds = array<i64: 4, 16>}, {pipeline_mode = #tpu.pipeline_mode<synchronous>, transform_indices = @transform_3, window_bounds = array<i64: 1, 16>}, {pipeline_mode = #tpu.pipeline_mode<synchronous>, transform_indices = @transform_4, window_bounds = array<i64: 1, 16>}, {pipeline_mode = #tpu.pipeline_mode<synchronous>, transform_indices = @transform_5, window_bounds = array<i64: 16, 48>}, {pipeline_mode = #tpu.pipeline_mode<synchronous>, transform_indices = @transform_6, window_bounds = array<i64: 1, 48>}, {pipeline_mode = #tpu.pipeline_mode<synchronous>, transform_indices = @transform_7, window_bounds = array<i64: 16, 16>}, {pipeline_mode = #tpu.pipeline_mode<synchronous>, transform_indices = @transform_8, window_bounds = array<i64: 1, 16>}, {pipeline_mode = #tpu.pipeline_mode<synchronous>, transform_indices = @transform_9, window_bounds = array<i64: 1, 16>}, {pipeline_mode = #tpu.pipeline_mode<synchronous>, transform_indices = @transform_10, window_bounds = array<i64: 1, 16>}, {pipeline_mode = #tpu.pipeline_mode<synchronous>, transform_indices = @transform_11, window_bounds = array<i64: 16, 32>}, {pipeline_mode = #tpu.pipeline_mode<synchronous>, transform_indices = @transform_12, window_bounds = array<i64: 1, 32>}, {pipeline_mode = #tpu.pipeline_mode<synchronous>, transform_indices = @transform_13, window_bounds = array<i64: 32, 16>}, {pipeline_mode = #tpu.pipeline_mode<synchronous>, transform_indices = @transform_14, window_bounds = array<i64: 1, 16>}, {pipeline_mode = #tpu.pipeline_mode<synchronous>, transform_indices = @transform_15, window_bounds = array<i64: 1, 16>}, {pipeline_mode = #tpu.pipeline_mode<synchronous>, transform_indices = @transform_16, window_bounds = array<i64: 1, 16>}, {pipeline_mode = #tpu.pipeline_mode<synchronous>, transform_indices = @transform_17, window_bounds = array<i64: 16, 10>}, {pipeline_mode = #tpu.pipeline_mode<synchronous>, transform_indices = @transform_18, window_bounds = array<i64: 1, 10>}, {transform_indices = @transform_19, window_bounds = array<i64: 48>}, {transform_indices = @transform_20, window_bounds = array<i64: 4>}, {transform_indices = @transform_21, window_bounds = array<i64: 1, 1, 10>}]} {
    %c0 = arith.constant 0 : index
    %c0_0 = arith.constant 0 : index
    %c0_1 = arith.constant 0 : index
    %0 = vector.load %arg1[%c0, %c0_0, %c0_1] : memref<1x5x16xf32, #tpu.memory_space<vmem>>, vector<1x5x16xf32>
    %1 = vector.shape_cast %0 : vector<1x5x16xf32> to vector<5x16xf32>
    %c0_2 = arith.constant 0 : index
    %c0_3 = arith.constant 0 : index
    %2 = vector.load %arg2[%c0_2, %c0_3] : memref<16x4xf32, #tpu.memory_space<vmem>>, vector<16x4xf32>
    %c0_4 = arith.constant 0 : index
    %c0_5 = arith.constant 0 : index
    %3 = vector.load %arg4[%c0_4, %c0_5] : memref<1x16xf32, #tpu.memory_space<vmem>>, vector<1x16xf32>
    %c0_6 = arith.constant 0 : index
    %c0_7 = arith.constant 0 : index
    %4 = vector.load %arg5[%c0_6, %c0_7] : memref<1x16xf32, #tpu.memory_space<vmem>>, vector<1x16xf32>
    %cst = arith.constant dense<0.000000e+00> : vector<5xf32>
    %5 = vector.multi_reduction <add>, %1, %cst [1] : vector<5x16xf32> to vector<5xf32>
    %6 = vector.shape_cast %5 : vector<5xf32> to vector<5x1xf32>
    %cst_8 = arith.constant 1.600000e+01 : f32
    %7 = vector.broadcast %cst_8 : f32 to vector<5x1xf32>
    %8 = arith.divf %6, %7 : vector<5x1xf32>
    %9 = vector.broadcast %8 : vector<5x1xf32> to vector<5x16xf32>
    %10 = arith.subf %1, %9 : vector<5x16xf32>
    %11 = arith.mulf %10, %10 : vector<5x16xf32>
    %cst_9 = arith.constant dense<0.000000e+00> : vector<5xf32>
    %12 = vector.multi_reduction <add>, %11, %cst_9 [1] : vector<5x16xf32> to vector<5xf32>
    %13 = vector.shape_cast %12 : vector<5xf32> to vector<5x1xf32>
    %cst_10 = arith.constant 1.600000e+01 : f32
    %14 = vector.broadcast %cst_10 : f32 to vector<5x1xf32>
    %15 = arith.divf %13, %14 : vector<5x1xf32>
    %cst_11 = arith.constant 9.99999997E-7 : f32
    %16 = vector.broadcast %cst_11 : f32 to vector<5x1xf32>
    %17 = arith.addf %15, %16 : vector<5x1xf32>
    %18 = math.rsqrt %17 : vector<5x1xf32>
    %19 = vector.broadcast %18 : vector<5x1xf32> to vector<5x16xf32>
    %20 = arith.mulf %10, %19 : vector<5x16xf32>
    %21 = vector.broadcast %3 : vector<1x16xf32> to vector<5x16xf32>
    %22 = arith.mulf %20, %21 : vector<5x16xf32>
    %23 = vector.broadcast %4 : vector<1x16xf32> to vector<5x16xf32>
    %24 = arith.addf %22, %23 : vector<5x16xf32>
    %c0_12 = arith.constant 0 : index
    %c0_13 = arith.constant 0 : index
    %25 = vector.load %arg6[%c0_12, %c0_13] : memref<16x48xf32, #tpu.memory_space<vmem>>, vector<16x48xf32>
    %cst_14 = arith.constant dense<0.000000e+00> : vector<5x48xf32>
    %26 = tpu.matmul %24, %25, %cst_14 {dimension_numbers = #tpu.dot_dimension_numbers<[1], [0], [0], [1], [0, 0, 1, 1], [], []>} : vector<5x16xf32>, vector<16x48xf32>, vector<5x48xf32> -> vector<5x48xf32>
    %c0_15 = arith.constant 0 : index
    %c0_16 = arith.constant 0 : index
    %27 = vector.load %arg7[%c0_15, %c0_16] : memref<1x48xf32, #tpu.memory_space<vmem>>, vector<1x48xf32>
    %28 = vector.broadcast %27 : vector<1x48xf32> to vector<5x48xf32>
    %29 = arith.addf %26, %28 : vector<5x48xf32>
    %30 = vector.extract_strided_slice %29 {offsets = [0, 0], sizes = [5, 16], strides = [1, 1]} : vector<5x48xf32> to vector<5x16xf32>
    %31 = vector.extract_strided_slice %29 {offsets = [0, 16], sizes = [5, 16], strides = [1, 1]} : vector<5x48xf32> to vector<5x16xf32>
    %32 = vector.extract_strided_slice %29 {offsets = [0, 32], sizes = [5, 16], strides = [1, 1]} : vector<5x48xf32> to vector<5x16xf32>
    %33 = arith.mulf %30, %30 : vector<5x16xf32>
    %cst_17 = arith.constant dense<0.000000e+00> : vector<5x4xf32>
    %34 = tpu.matmul %33, %2, %cst_17 {dimension_numbers = #tpu.dot_dimension_numbers<[1], [0], [0], [1], [0, 0, 1, 1], [], []>} : vector<5x16xf32>, vector<16x4xf32>, vector<5x4xf32> -> vector<5x4xf32>
    %c0_18 = arith.constant 0 : index
    %c0_19 = arith.constant 0 : index
    %35 = vector.load %arg3[%c0_18, %c0_19] : memref<4x16xf32, #tpu.memory_space<vmem>>, vector<4x16xf32>
    %36 = arith.mulf %31, %31 : vector<5x16xf32>
    "tpu.trace_start"() <{level = 10 : i32, message = "hc,nc->hn"}> : () -> ()
    %cst_20 = arith.constant dense<0.000000e+00> : vector<4x5xf32>
    %37 = tpu.matmul %35, %36, %cst_20 {dimension_numbers = #tpu.dot_dimension_numbers<[1], [1], [0], [0], [0, 0, 1, 0], [], []>} : vector<4x16xf32>, vector<5x16xf32>, vector<4x5xf32> -> vector<4x5xf32>
    "tpu.trace_stop"() : () -> ()
    %cst_21 = arith.constant 9.99999996E-13 : f32
    %38 = vector.broadcast %cst_21 : f32 to vector<5x4xf32>
    %39 = arith.addf %34, %38 : vector<5x4xf32>
    %cst_22 = arith.constant 1.000000e+00 : f32
    %40 = vector.broadcast %cst_22 : f32 to vector<5x4xf32>
    %41 = arith.divf %40, %39 : vector<5x4xf32>
    %cst_23 = arith.constant 9.99999996E-13 : f32
    %42 = vector.broadcast %cst_23 : f32 to vector<4x5xf32>
    %43 = arith.addf %37, %42 : vector<4x5xf32>
    %cst_24 = arith.constant 1.000000e+00 : f32
    %44 = vector.broadcast %cst_24 : f32 to vector<4x5xf32>
    %45 = arith.divf %44, %43 : vector<4x5xf32>
    %c0_25 = arith.constant 0 : index
    %c0_26 = arith.constant 0 : index
    %46 = vector.load %arg3[%c0_25, %c0_26] : memref<4x16xf32, #tpu.memory_space<vmem>>, vector<1x16xf32>
    %47 = vector.broadcast %46 : vector<1x16xf32> to vector<5x16xf32>
    %48 = arith.mulf %30, %47 : vector<5x16xf32>
    "tpu.trace_start"() <{level = 10 : i32, message = "nc,mc->nm"}> : () -> ()
    %cst_27 = arith.constant dense<0.000000e+00> : vector<5x5xf32>
    %49 = tpu.matmul %48, %31, %cst_27 {dimension_numbers = #tpu.dot_dimension_numbers<[1], [1], [0], [0], [0, 0, 1, 0], [], []>} : vector<5x16xf32>, vector<5x16xf32>, vector<5x5xf32> -> vector<5x5xf32>
    "tpu.trace_stop"() : () -> ()
    %50 = arith.mulf %49, %49 : vector<5x5xf32>
    %51 = vector.extract_strided_slice %41 {offsets = [0, 0], sizes = [5, 1], strides = [1, 1]} : vector<5x4xf32> to vector<5x1xf32>
    %52 = vector.broadcast %51 : vector<5x1xf32> to vector<5x5xf32>
    %53 = arith.mulf %50, %52 : vector<5x5xf32>
    %54 = vector.extract_strided_slice %45 {offsets = [0, 0], sizes = [1, 5], strides = [1, 1]} : vector<4x5xf32> to vector<1x5xf32>
    %55 = vector.broadcast %54 : vector<1x5xf32> to vector<5x5xf32>
    %56 = arith.mulf %53, %55 : vector<5x5xf32>
    %c1 = arith.constant 1 : index
    %c0_28 = arith.constant 0 : index
    %57 = vector.load %arg3[%c1, %c0_28] : memref<4x16xf32, #tpu.memory_space<vmem>>, vector<1x16xf32>
    %58 = vector.broadcast %57 : vector<1x16xf32> to vector<5x16xf32>
    %59 = arith.mulf %30, %58 : vector<5x16xf32>
    "tpu.trace_start"() <{level = 10 : i32, message = "nc,mc->nm"}> : () -> ()
    %cst_29 = arith.constant dense<0.000000e+00> : vector<5x5xf32>
    %60 = tpu.matmul %59, %31, %cst_29 {dimension_numbers = #tpu.dot_dimension_numbers<[1], [1], [0], [0], [0, 0, 1, 0], [], []>} : vector<5x16xf32>, vector<5x16xf32>, vector<5x5xf32> -> vector<5x5xf32>
    "tpu.trace_stop"() : () -> ()
    %61 = arith.mulf %60, %60 : vector<5x5xf32>
    %62 = vector.extract_strided_slice %41 {offsets = [0, 1], sizes = [5, 1], strides = [1, 1]} : vector<5x4xf32> to vector<5x1xf32>
    %63 = vector.broadcast %62 : vector<5x1xf32> to vector<5x5xf32>
    %64 = arith.mulf %61, %63 : vector<5x5xf32>
    %65 = vector.extract_strided_slice %45 {offsets = [1, 0], sizes = [1, 5], strides = [1, 1]} : vector<4x5xf32> to vector<1x5xf32>
    %66 = vector.broadcast %65 : vector<1x5xf32> to vector<5x5xf32>
    %67 = arith.mulf %64, %66 : vector<5x5xf32>
    %c2 = arith.constant 2 : index
    %c0_30 = arith.constant 0 : index
    %68 = vector.load %arg3[%c2, %c0_30] : memref<4x16xf32, #tpu.memory_space<vmem>>, vector<1x16xf32>
    %69 = vector.broadcast %68 : vector<1x16xf32> to vector<5x16xf32>
    %70 = arith.mulf %30, %69 : vector<5x16xf32>
    "tpu.trace_start"() <{level = 10 : i32, message = "nc,mc->nm"}> : () -> ()
    %cst_31 = arith.constant dense<0.000000e+00> : vector<5x5xf32>
    %71 = tpu.matmul %70, %31, %cst_31 {dimension_numbers = #tpu.dot_dimension_numbers<[1], [1], [0], [0], [0, 0, 1, 0], [], []>} : vector<5x16xf32>, vector<5x16xf32>, vector<5x5xf32> -> vector<5x5xf32>
    "tpu.trace_stop"() : () -> ()
    %72 = arith.mulf %71, %71 : vector<5x5xf32>
    %73 = vector.extract_strided_slice %41 {offsets = [0, 2], sizes = [5, 1], strides = [1, 1]} : vector<5x4xf32> to vector<5x1xf32>
    %74 = vector.broadcast %73 : vector<5x1xf32> to vector<5x5xf32>
    %75 = arith.mulf %72, %74 : vector<5x5xf32>
    %76 = vector.extract_strided_slice %45 {offsets = [2, 0], sizes = [1, 5], strides = [1, 1]} : vector<4x5xf32> to vector<1x5xf32>
    %77 = vector.broadcast %76 : vector<1x5xf32> to vector<5x5xf32>
    %78 = arith.mulf %75, %77 : vector<5x5xf32>
    %c3 = arith.constant 3 : index
    %c0_32 = arith.constant 0 : index
    %79 = vector.load %arg3[%c3, %c0_32] : memref<4x16xf32, #tpu.memory_space<vmem>>, vector<1x16xf32>
    %80 = vector.broadcast %79 : vector<1x16xf32> to vector<5x16xf32>
    %81 = arith.mulf %30, %80 : vector<5x16xf32>
    "tpu.trace_start"() <{level = 10 : i32, message = "nc,mc->nm"}> : () -> ()
    %cst_33 = arith.constant dense<0.000000e+00> : vector<5x5xf32>
    %82 = tpu.matmul %81, %31, %cst_33 {dimension_numbers = #tpu.dot_dimension_numbers<[1], [1], [0], [0], [0, 0, 1, 0], [], []>} : vector<5x16xf32>, vector<5x16xf32>, vector<5x5xf32> -> vector<5x5xf32>
    "tpu.trace_stop"() : () -> ()
    %83 = arith.mulf %82, %82 : vector<5x5xf32>
    %84 = vector.extract_strided_slice %41 {offsets = [0, 3], sizes = [5, 1], strides = [1, 1]} : vector<5x4xf32> to vector<5x1xf32>
    %85 = vector.broadcast %84 : vector<5x1xf32> to vector<5x5xf32>
    %86 = arith.mulf %83, %85 : vector<5x5xf32>
    %87 = vector.extract_strided_slice %45 {offsets = [3, 0], sizes = [1, 5], strides = [1, 1]} : vector<4x5xf32> to vector<1x5xf32>
    %88 = vector.broadcast %87 : vector<1x5xf32> to vector<5x5xf32>
    %89 = arith.mulf %86, %88 : vector<5x5xf32>
    %c0_34 = arith.constant 0 : index
    %90 = memref.load %arg20[%c0_34] : memref<48xf32, #tpu.memory_space<smem>>
    %91 = vector.broadcast %90 : f32 to vector<5x5xf32>
    %92 = arith.mulf %49, %91 : vector<5x5xf32>
    %c1_35 = arith.constant 1 : index
    %93 = memref.load %arg20[%c1_35] : memref<48xf32, #tpu.memory_space<smem>>
    %94 = vector.broadcast %93 : f32 to vector<5x5xf32>
    %95 = arith.mulf %60, %94 : vector<5x5xf32>
    %96 = arith.addf %92, %95 : vector<5x5xf32>
    %c2_36 = arith.constant 2 : index
    %97 = memref.load %arg20[%c2_36] : memref<48xf32, #tpu.memory_space<smem>>
    %98 = vector.broadcast %97 : f32 to vector<5x5xf32>
    %99 = arith.mulf %71, %98 : vector<5x5xf32>
    %100 = arith.addf %96, %99 : vector<5x5xf32>
    %c3_37 = arith.constant 3 : index
    %101 = memref.load %arg20[%c3_37] : memref<48xf32, #tpu.memory_space<smem>>
    %102 = vector.broadcast %101 : f32 to vector<5x5xf32>
    %103 = arith.mulf %82, %102 : vector<5x5xf32>
    %104 = arith.addf %100, %103 : vector<5x5xf32>
    %c4 = arith.constant 4 : index
    %105 = memref.load %arg20[%c4] : memref<48xf32, #tpu.memory_space<smem>>
    %106 = vector.broadcast %105 : f32 to vector<5x5xf32>
    %107 = arith.mulf %50, %106 : vector<5x5xf32>
    %108 = arith.addf %104, %107 : vector<5x5xf32>
    %c5 = arith.constant 5 : index
    %109 = memref.load %arg20[%c5] : memref<48xf32, #tpu.memory_space<smem>>
    %110 = vector.broadcast %109 : f32 to vector<5x5xf32>
    %111 = arith.mulf %61, %110 : vector<5x5xf32>
    %112 = arith.addf %108, %111 : vector<5x5xf32>
    %c6 = arith.constant 6 : index
    %113 = memref.load %arg20[%c6] : memref<48xf32, #tpu.memory_space<smem>>
    %114 = vector.broadcast %113 : f32 to vector<5x5xf32>
    %115 = arith.mulf %72, %114 : vector<5x5xf32>
    %116 = arith.addf %112, %115 : vector<5x5xf32>
    %c7 = arith.constant 7 : index
    %117 = memref.load %arg20[%c7] : memref<48xf32, #tpu.memory_space<smem>>
    %118 = vector.broadcast %117 : f32 to vector<5x5xf32>
    %119 = arith.mulf %83, %118 : vector<5x5xf32>
    %120 = arith.addf %116, %119 : vector<5x5xf32>
    %c8 = arith.constant 8 : index
    %121 = memref.load %arg20[%c8] : memref<48xf32, #tpu.memory_space<smem>>
    %122 = vector.broadcast %121 : f32 to vector<5x5xf32>
    %123 = arith.mulf %56, %122 : vector<5x5xf32>
    %124 = arith.addf %120, %123 : vector<5x5xf32>
    %c9 = arith.constant 9 : index
    %125 = memref.load %arg20[%c9] : memref<48xf32, #tpu.memory_space<smem>>
    %126 = vector.broadcast %125 : f32 to vector<5x5xf32>
    %127 = arith.mulf %67, %126 : vector<5x5xf32>
    %128 = arith.addf %124, %127 : vector<5x5xf32>
    %c10 = arith.constant 10 : index
    %129 = memref.load %arg20[%c10] : memref<48xf32, #tpu.memory_space<smem>>
    %130 = vector.broadcast %129 : f32 to vector<5x5xf32>
    %131 = arith.mulf %78, %130 : vector<5x5xf32>
    %132 = arith.addf %128, %131 : vector<5x5xf32>
    %c11 = arith.constant 11 : index
    %133 = memref.load %arg20[%c11] : memref<48xf32, #tpu.memory_space<smem>>
    %134 = vector.broadcast %133 : f32 to vector<5x5xf32>
    %135 = arith.mulf %89, %134 : vector<5x5xf32>
    %136 = arith.addf %132, %135 : vector<5x5xf32>
    %c0_38 = arith.constant 0 : index
    %137 = memref.load %arg21[%c0_38] : memref<4xf32, #tpu.memory_space<smem>>
    %138 = vector.broadcast %137 : f32 to vector<5x5xf32>
    %139 = arith.addf %136, %138 : vector<5x5xf32>
    %cst_39 = arith.constant dense<0xFF800000> : vector<5xf32>
    %140 = vector.multi_reduction <maximumf>, %139, %cst_39 [1] : vector<5x5xf32> to vector<5xf32>
    %141 = vector.shape_cast %140 : vector<5xf32> to vector<5x1xf32>
    %142 = vector.broadcast %141 : vector<5x1xf32> to vector<5x5xf32>
    %143 = arith.subf %139, %142 : vector<5x5xf32>
    %144 = math.exp %143 : vector<5x5xf32>
    %cst_40 = arith.constant dense<0.000000e+00> : vector<5xf32>
    %145 = vector.multi_reduction <add>, %144, %cst_40 [1] : vector<5x5xf32> to vector<5xf32>
    %146 = vector.shape_cast %145 : vector<5xf32> to vector<5x1xf32>
    %147 = tpu.reciprocal %146 {approx = true} : vector<5x1xf32> -> vector<5x1xf32>
    %148 = vector.broadcast %147 : vector<5x1xf32> to vector<5x5xf32>
    %149 = arith.mulf %144, %148 : vector<5x5xf32>
    %c0_41 = arith.constant 0 : index
    %c0_42 = arith.constant 0 : index
    %150 = vector.load %arg3[%c0_41, %c0_42] : memref<4x16xf32, #tpu.memory_space<vmem>>, vector<1x16xf32>
    %151 = vector.broadcast %150 : vector<1x16xf32> to vector<5x16xf32>
    %152 = arith.mulf %32, %151 : vector<5x16xf32>
    %cst_43 = arith.constant dense<0.000000e+00> : vector<5x16xf32>
    %153 = tpu.matmul %149, %152, %cst_43 {dimension_numbers = #tpu.dot_dimension_numbers<[1], [0], [0], [1], [0, 0, 1, 1], [], []>} : vector<5x5xf32>, vector<5x16xf32>, vector<5x16xf32> -> vector<5x16xf32>
    %c12 = arith.constant 12 : index
    %154 = memref.load %arg20[%c12] : memref<48xf32, #tpu.memory_space<smem>>
    %155 = vector.broadcast %154 : f32 to vector<5x5xf32>
    %156 = arith.mulf %49, %155 : vector<5x5xf32>
    %c13 = arith.constant 13 : index
    %157 = memref.load %arg20[%c13] : memref<48xf32, #tpu.memory_space<smem>>
    %158 = vector.broadcast %157 : f32 to vector<5x5xf32>
    %159 = arith.mulf %60, %158 : vector<5x5xf32>
    %160 = arith.addf %156, %159 : vector<5x5xf32>
    %c14 = arith.constant 14 : index
    %161 = memref.load %arg20[%c14] : memref<48xf32, #tpu.memory_space<smem>>
    %162 = vector.broadcast %161 : f32 to vector<5x5xf32>
    %163 = arith.mulf %71, %162 : vector<5x5xf32>
    %164 = arith.addf %160, %163 : vector<5x5xf32>
    %c15 = arith.constant 15 : index
    %165 = memref.load %arg20[%c15] : memref<48xf32, #tpu.memory_space<smem>>
    %166 = vector.broadcast %165 : f32 to vector<5x5xf32>
    %167 = arith.mulf %82, %166 : vector<5x5xf32>
    %168 = arith.addf %164, %167 : vector<5x5xf32>
    %c16 = arith.constant 16 : index
    %169 = memref.load %arg20[%c16] : memref<48xf32, #tpu.memory_space<smem>>
    %170 = vector.broadcast %169 : f32 to vector<5x5xf32>
    %171 = arith.mulf %50, %170 : vector<5x5xf32>
    %172 = arith.addf %168, %171 : vector<5x5xf32>
    %c17 = arith.constant 17 : index
    %173 = memref.load %arg20[%c17] : memref<48xf32, #tpu.memory_space<smem>>
    %174 = vector.broadcast %173 : f32 to vector<5x5xf32>
    %175 = arith.mulf %61, %174 : vector<5x5xf32>
    %176 = arith.addf %172, %175 : vector<5x5xf32>
    %c18 = arith.constant 18 : index
    %177 = memref.load %arg20[%c18] : memref<48xf32, #tpu.memory_space<smem>>
    %178 = vector.broadcast %177 : f32 to vector<5x5xf32>
    %179 = arith.mulf %72, %178 : vector<5x5xf32>
    %180 = arith.addf %176, %179 : vector<5x5xf32>
    %c19 = arith.constant 19 : index
    %181 = memref.load %arg20[%c19] : memref<48xf32, #tpu.memory_space<smem>>
    %182 = vector.broadcast %181 : f32 to vector<5x5xf32>
    %183 = arith.mulf %83, %182 : vector<5x5xf32>
    %184 = arith.addf %180, %183 : vector<5x5xf32>
    %c20 = arith.constant 20 : index
    %185 = memref.load %arg20[%c20] : memref<48xf32, #tpu.memory_space<smem>>
    %186 = vector.broadcast %185 : f32 to vector<5x5xf32>
    %187 = arith.mulf %56, %186 : vector<5x5xf32>
    %188 = arith.addf %184, %187 : vector<5x5xf32>
    %c21 = arith.constant 21 : index
    %189 = memref.load %arg20[%c21] : memref<48xf32, #tpu.memory_space<smem>>
    %190 = vector.broadcast %189 : f32 to vector<5x5xf32>
    %191 = arith.mulf %67, %190 : vector<5x5xf32>
    %192 = arith.addf %188, %191 : vector<5x5xf32>
    %c22 = arith.constant 22 : index
    %193 = memref.load %arg20[%c22] : memref<48xf32, #tpu.memory_space<smem>>
    %194 = vector.broadcast %193 : f32 to vector<5x5xf32>
    %195 = arith.mulf %78, %194 : vector<5x5xf32>
    %196 = arith.addf %192, %195 : vector<5x5xf32>
    %c23 = arith.constant 23 : index
    %197 = memref.load %arg20[%c23] : memref<48xf32, #tpu.memory_space<smem>>
    %198 = vector.broadcast %197 : f32 to vector<5x5xf32>
    %199 = arith.mulf %89, %198 : vector<5x5xf32>
    %200 = arith.addf %196, %199 : vector<5x5xf32>
    %c1_44 = arith.constant 1 : index
    %201 = memref.load %arg21[%c1_44] : memref<4xf32, #tpu.memory_space<smem>>
    %202 = vector.broadcast %201 : f32 to vector<5x5xf32>
    %203 = arith.addf %200, %202 : vector<5x5xf32>
    %cst_45 = arith.constant dense<0xFF800000> : vector<5xf32>
    %204 = vector.multi_reduction <maximumf>, %203, %cst_45 [1] : vector<5x5xf32> to vector<5xf32>
    %205 = vector.shape_cast %204 : vector<5xf32> to vector<5x1xf32>
    %206 = vector.broadcast %205 : vector<5x1xf32> to vector<5x5xf32>
    %207 = arith.subf %203, %206 : vector<5x5xf32>
    %208 = math.exp %207 : vector<5x5xf32>
    %cst_46 = arith.constant dense<0.000000e+00> : vector<5xf32>
    %209 = vector.multi_reduction <add>, %208, %cst_46 [1] : vector<5x5xf32> to vector<5xf32>
    %210 = vector.shape_cast %209 : vector<5xf32> to vector<5x1xf32>
    %211 = tpu.reciprocal %210 {approx = true} : vector<5x1xf32> -> vector<5x1xf32>
    %212 = vector.broadcast %211 : vector<5x1xf32> to vector<5x5xf32>
    %213 = arith.mulf %208, %212 : vector<5x5xf32>
    %c1_47 = arith.constant 1 : index
    %c0_48 = arith.constant 0 : index
    %214 = vector.load %arg3[%c1_47, %c0_48] : memref<4x16xf32, #tpu.memory_space<vmem>>, vector<1x16xf32>
    %215 = vector.broadcast %214 : vector<1x16xf32> to vector<5x16xf32>
    %216 = arith.mulf %32, %215 : vector<5x16xf32>
    %cst_49 = arith.constant dense<0.000000e+00> : vector<5x16xf32>
    %217 = tpu.matmul %213, %216, %cst_49 {dimension_numbers = #tpu.dot_dimension_numbers<[1], [0], [0], [1], [0, 0, 1, 1], [], []>} : vector<5x5xf32>, vector<5x16xf32>, vector<5x16xf32> -> vector<5x16xf32>
    %218 = arith.addf %153, %217 : vector<5x16xf32>
    %c24 = arith.constant 24 : index
    %219 = memref.load %arg20[%c24] : memref<48xf32, #tpu.memory_space<smem>>
    %220 = vector.broadcast %219 : f32 to vector<5x5xf32>
    %221 = arith.mulf %49, %220 : vector<5x5xf32>
    %c25 = arith.constant 25 : index
    %222 = memref.load %arg20[%c25] : memref<48xf32, #tpu.memory_space<smem>>
    %223 = vector.broadcast %222 : f32 to vector<5x5xf32>
    %224 = arith.mulf %60, %223 : vector<5x5xf32>
    %225 = arith.addf %221, %224 : vector<5x5xf32>
    %c26 = arith.constant 26 : index
    %226 = memref.load %arg20[%c26] : memref<48xf32, #tpu.memory_space<smem>>
    %227 = vector.broadcast %226 : f32 to vector<5x5xf32>
    %228 = arith.mulf %71, %227 : vector<5x5xf32>
    %229 = arith.addf %225, %228 : vector<5x5xf32>
    %c27 = arith.constant 27 : index
    %230 = memref.load %arg20[%c27] : memref<48xf32, #tpu.memory_space<smem>>
    %231 = vector.broadcast %230 : f32 to vector<5x5xf32>
    %232 = arith.mulf %82, %231 : vector<5x5xf32>
    %233 = arith.addf %229, %232 : vector<5x5xf32>
    %c28 = arith.constant 28 : index
    %234 = memref.load %arg20[%c28] : memref<48xf32, #tpu.memory_space<smem>>
    %235 = vector.broadcast %234 : f32 to vector<5x5xf32>
    %236 = arith.mulf %50, %235 : vector<5x5xf32>
    %237 = arith.addf %233, %236 : vector<5x5xf32>
    %c29 = arith.constant 29 : index
    %238 = memref.load %arg20[%c29] : memref<48xf32, #tpu.memory_space<smem>>
    %239 = vector.broadcast %238 : f32 to vector<5x5xf32>
    %240 = arith.mulf %61, %239 : vector<5x5xf32>
    %241 = arith.addf %237, %240 : vector<5x5xf32>
    %c30 = arith.constant 30 : index
    %242 = memref.load %arg20[%c30] : memref<48xf32, #tpu.memory_space<smem>>
    %243 = vector.broadcast %242 : f32 to vector<5x5xf32>
    %244 = arith.mulf %72, %243 : vector<5x5xf32>
    %245 = arith.addf %241, %244 : vector<5x5xf32>
    %c31 = arith.constant 31 : index
    %246 = memref.load %arg20[%c31] : memref<48xf32, #tpu.memory_space<smem>>
    %247 = vector.broadcast %246 : f32 to vector<5x5xf32>
    %248 = arith.mulf %83, %247 : vector<5x5xf32>
    %249 = arith.addf %245, %248 : vector<5x5xf32>
    %c32 = arith.constant 32 : index
    %250 = memref.load %arg20[%c32] : memref<48xf32, #tpu.memory_space<smem>>
    %251 = vector.broadcast %250 : f32 to vector<5x5xf32>
    %252 = arith.mulf %56, %251 : vector<5x5xf32>
    %253 = arith.addf %249, %252 : vector<5x5xf32>
    %c33 = arith.constant 33 : index
    %254 = memref.load %arg20[%c33] : memref<48xf32, #tpu.memory_space<smem>>
    %255 = vector.broadcast %254 : f32 to vector<5x5xf32>
    %256 = arith.mulf %67, %255 : vector<5x5xf32>
    %257 = arith.addf %253, %256 : vector<5x5xf32>
    %c34 = arith.constant 34 : index
    %258 = memref.load %arg20[%c34] : memref<48xf32, #tpu.memory_space<smem>>
    %259 = vector.broadcast %258 : f32 to vector<5x5xf32>
    %260 = arith.mulf %78, %259 : vector<5x5xf32>
    %261 = arith.addf %257, %260 : vector<5x5xf32>
    %c35 = arith.constant 35 : index
    %262 = memref.load %arg20[%c35] : memref<48xf32, #tpu.memory_space<smem>>
    %263 = vector.broadcast %262 : f32 to vector<5x5xf32>
    %264 = arith.mulf %89, %263 : vector<5x5xf32>
    %265 = arith.addf %261, %264 : vector<5x5xf32>
    %c2_50 = arith.constant 2 : index
    %266 = memref.load %arg21[%c2_50] : memref<4xf32, #tpu.memory_space<smem>>
    %267 = vector.broadcast %266 : f32 to vector<5x5xf32>
    %268 = arith.addf %265, %267 : vector<5x5xf32>
    %cst_51 = arith.constant dense<0xFF800000> : vector<5xf32>
    %269 = vector.multi_reduction <maximumf>, %268, %cst_51 [1] : vector<5x5xf32> to vector<5xf32>
    %270 = vector.shape_cast %269 : vector<5xf32> to vector<5x1xf32>
    %271 = vector.broadcast %270 : vector<5x1xf32> to vector<5x5xf32>
    %272 = arith.subf %268, %271 : vector<5x5xf32>
    %273 = math.exp %272 : vector<5x5xf32>
    %cst_52 = arith.constant dense<0.000000e+00> : vector<5xf32>
    %274 = vector.multi_reduction <add>, %273, %cst_52 [1] : vector<5x5xf32> to vector<5xf32>
    %275 = vector.shape_cast %274 : vector<5xf32> to vector<5x1xf32>
    %276 = tpu.reciprocal %275 {approx = true} : vector<5x1xf32> -> vector<5x1xf32>
    %277 = vector.broadcast %276 : vector<5x1xf32> to vector<5x5xf32>
    %278 = arith.mulf %273, %277 : vector<5x5xf32>
    %c2_53 = arith.constant 2 : index
    %c0_54 = arith.constant 0 : index
    %279 = vector.load %arg3[%c2_53, %c0_54] : memref<4x16xf32, #tpu.memory_space<vmem>>, vector<1x16xf32>
    %280 = vector.broadcast %279 : vector<1x16xf32> to vector<5x16xf32>
    %281 = arith.mulf %32, %280 : vector<5x16xf32>
    %cst_55 = arith.constant dense<0.000000e+00> : vector<5x16xf32>
    %282 = tpu.matmul %278, %281, %cst_55 {dimension_numbers = #tpu.dot_dimension_numbers<[1], [0], [0], [1], [0, 0, 1, 1], [], []>} : vector<5x5xf32>, vector<5x16xf32>, vector<5x16xf32> -> vector<5x16xf32>
    %283 = arith.addf %218, %282 : vector<5x16xf32>
    %c36 = arith.constant 36 : index
    %284 = memref.load %arg20[%c36] : memref<48xf32, #tpu.memory_space<smem>>
    %285 = vector.broadcast %284 : f32 to vector<5x5xf32>
    %286 = arith.mulf %49, %285 : vector<5x5xf32>
    %c37 = arith.constant 37 : index
    %287 = memref.load %arg20[%c37] : memref<48xf32, #tpu.memory_space<smem>>
    %288 = vector.broadcast %287 : f32 to vector<5x5xf32>
    %289 = arith.mulf %60, %288 : vector<5x5xf32>
    %290 = arith.addf %286, %289 : vector<5x5xf32>
    %c38 = arith.constant 38 : index
    %291 = memref.load %arg20[%c38] : memref<48xf32, #tpu.memory_space<smem>>
    %292 = vector.broadcast %291 : f32 to vector<5x5xf32>
    %293 = arith.mulf %71, %292 : vector<5x5xf32>
    %294 = arith.addf %290, %293 : vector<5x5xf32>
    %c39 = arith.constant 39 : index
    %295 = memref.load %arg20[%c39] : memref<48xf32, #tpu.memory_space<smem>>
    %296 = vector.broadcast %295 : f32 to vector<5x5xf32>
    %297 = arith.mulf %82, %296 : vector<5x5xf32>
    %298 = arith.addf %294, %297 : vector<5x5xf32>
    %c40 = arith.constant 40 : index
    %299 = memref.load %arg20[%c40] : memref<48xf32, #tpu.memory_space<smem>>
    %300 = vector.broadcast %299 : f32 to vector<5x5xf32>
    %301 = arith.mulf %50, %300 : vector<5x5xf32>
    %302 = arith.addf %298, %301 : vector<5x5xf32>
    %c41 = arith.constant 41 : index
    %303 = memref.load %arg20[%c41] : memref<48xf32, #tpu.memory_space<smem>>
    %304 = vector.broadcast %303 : f32 to vector<5x5xf32>
    %305 = arith.mulf %61, %304 : vector<5x5xf32>
    %306 = arith.addf %302, %305 : vector<5x5xf32>
    %c42 = arith.constant 42 : index
    %307 = memref.load %arg20[%c42] : memref<48xf32, #tpu.memory_space<smem>>
    %308 = vector.broadcast %307 : f32 to vector<5x5xf32>
    %309 = arith.mulf %72, %308 : vector<5x5xf32>
    %310 = arith.addf %306, %309 : vector<5x5xf32>
    %c43 = arith.constant 43 : index
    %311 = memref.load %arg20[%c43] : memref<48xf32, #tpu.memory_space<smem>>
    %312 = vector.broadcast %311 : f32 to vector<5x5xf32>
    %313 = arith.mulf %83, %312 : vector<5x5xf32>
    %314 = arith.addf %310, %313 : vector<5x5xf32>
    %c44 = arith.constant 44 : index
    %315 = memref.load %arg20[%c44] : memref<48xf32, #tpu.memory_space<smem>>
    %316 = vector.broadcast %315 : f32 to vector<5x5xf32>
    %317 = arith.mulf %56, %316 : vector<5x5xf32>
    %318 = arith.addf %314, %317 : vector<5x5xf32>
    %c45 = arith.constant 45 : index
    %319 = memref.load %arg20[%c45] : memref<48xf32, #tpu.memory_space<smem>>
    %320 = vector.broadcast %319 : f32 to vector<5x5xf32>
    %321 = arith.mulf %67, %320 : vector<5x5xf32>
    %322 = arith.addf %318, %321 : vector<5x5xf32>
    %c46 = arith.constant 46 : index
    %323 = memref.load %arg20[%c46] : memref<48xf32, #tpu.memory_space<smem>>
    %324 = vector.broadcast %323 : f32 to vector<5x5xf32>
    %325 = arith.mulf %78, %324 : vector<5x5xf32>
    %326 = arith.addf %322, %325 : vector<5x5xf32>
    %c47 = arith.constant 47 : index
    %327 = memref.load %arg20[%c47] : memref<48xf32, #tpu.memory_space<smem>>
    %328 = vector.broadcast %327 : f32 to vector<5x5xf32>
    %329 = arith.mulf %89, %328 : vector<5x5xf32>
    %330 = arith.addf %326, %329 : vector<5x5xf32>
    %c3_56 = arith.constant 3 : index
    %331 = memref.load %arg21[%c3_56] : memref<4xf32, #tpu.memory_space<smem>>
    %332 = vector.broadcast %331 : f32 to vector<5x5xf32>
    %333 = arith.addf %330, %332 : vector<5x5xf32>
    %cst_57 = arith.constant dense<0xFF800000> : vector<5xf32>
    %334 = vector.multi_reduction <maximumf>, %333, %cst_57 [1] : vector<5x5xf32> to vector<5xf32>
    %335 = vector.shape_cast %334 : vector<5xf32> to vector<5x1xf32>
    %336 = vector.broadcast %335 : vector<5x1xf32> to vector<5x5xf32>
    %337 = arith.subf %333, %336 : vector<5x5xf32>
    %338 = math.exp %337 : vector<5x5xf32>
    %cst_58 = arith.constant dense<0.000000e+00> : vector<5xf32>
    %339 = vector.multi_reduction <add>, %338, %cst_58 [1] : vector<5x5xf32> to vector<5xf32>
    %340 = vector.shape_cast %339 : vector<5xf32> to vector<5x1xf32>
    %341 = tpu.reciprocal %340 {approx = true} : vector<5x1xf32> -> vector<5x1xf32>
    %342 = vector.broadcast %341 : vector<5x1xf32> to vector<5x5xf32>
    %343 = arith.mulf %338, %342 : vector<5x5xf32>
    %c3_59 = arith.constant 3 : index
    %c0_60 = arith.constant 0 : index
    %344 = vector.load %arg3[%c3_59, %c0_60] : memref<4x16xf32, #tpu.memory_space<vmem>>, vector<1x16xf32>
    %345 = vector.broadcast %344 : vector<1x16xf32> to vector<5x16xf32>
    %346 = arith.mulf %32, %345 : vector<5x16xf32>
    %cst_61 = arith.constant dense<0.000000e+00> : vector<5x16xf32>
    %347 = tpu.matmul %343, %346, %cst_61 {dimension_numbers = #tpu.dot_dimension_numbers<[1], [0], [0], [1], [0, 0, 1, 1], [], []>} : vector<5x5xf32>, vector<5x16xf32>, vector<5x16xf32> -> vector<5x16xf32>
    %348 = arith.addf %283, %347 : vector<5x16xf32>
    %c0_62 = arith.constant 0 : index
    %c0_63 = arith.constant 0 : index
    %349 = vector.load %arg8[%c0_62, %c0_63] : memref<16x16xf32, #tpu.memory_space<vmem>>, vector<16x16xf32>
    %cst_64 = arith.constant dense<0.000000e+00> : vector<5x16xf32>
    %350 = tpu.matmul %348, %349, %cst_64 {dimension_numbers = #tpu.dot_dimension_numbers<[1], [0], [0], [1], [0, 0, 1, 1], [], []>} : vector<5x16xf32>, vector<16x16xf32>, vector<5x16xf32> -> vector<5x16xf32>
    %351 = arith.addf %1, %350 : vector<5x16xf32>
    %c0_65 = arith.constant 0 : index
    %c0_66 = arith.constant 0 : index
    %352 = vector.load %arg9[%c0_65, %c0_66] : memref<1x16xf32, #tpu.memory_space<vmem>>, vector<1x16xf32>
    %353 = vector.broadcast %352 : vector<1x16xf32> to vector<5x16xf32>
    %354 = arith.addf %351, %353 : vector<5x16xf32>
    %c0_67 = arith.constant 0 : index
    %c0_68 = arith.constant 0 : index
    %355 = vector.load %arg10[%c0_67, %c0_68] : memref<1x16xf32, #tpu.memory_space<vmem>>, vector<1x16xf32>
    %c0_69 = arith.constant 0 : index
    %c0_70 = arith.constant 0 : index
    %356 = vector.load %arg11[%c0_69, %c0_70] : memref<1x16xf32, #tpu.memory_space<vmem>>, vector<1x16xf32>
    %cst_71 = arith.constant dense<0.000000e+00> : vector<5xf32>
    %357 = vector.multi_reduction <add>, %354, %cst_71 [1] : vector<5x16xf32> to vector<5xf32>
    %358 = vector.shape_cast %357 : vector<5xf32> to vector<5x1xf32>
    %cst_72 = arith.constant 1.600000e+01 : f32
    %359 = vector.broadcast %cst_72 : f32 to vector<5x1xf32>
    %360 = arith.divf %358, %359 : vector<5x1xf32>
    %361 = vector.broadcast %360 : vector<5x1xf32> to vector<5x16xf32>
    %362 = arith.subf %354, %361 : vector<5x16xf32>
    %363 = arith.mulf %362, %362 : vector<5x16xf32>
    %cst_73 = arith.constant dense<0.000000e+00> : vector<5xf32>
    %364 = vector.multi_reduction <add>, %363, %cst_73 [1] : vector<5x16xf32> to vector<5xf32>
    %365 = vector.shape_cast %364 : vector<5xf32> to vector<5x1xf32>
    %cst_74 = arith.constant 1.600000e+01 : f32
    %366 = vector.broadcast %cst_74 : f32 to vector<5x1xf32>
    %367 = arith.divf %365, %366 : vector<5x1xf32>
    %cst_75 = arith.constant 9.99999997E-7 : f32
    %368 = vector.broadcast %cst_75 : f32 to vector<5x1xf32>
    %369 = arith.addf %367, %368 : vector<5x1xf32>
    %370 = math.rsqrt %369 : vector<5x1xf32>
    %371 = vector.broadcast %370 : vector<5x1xf32> to vector<5x16xf32>
    %372 = arith.mulf %362, %371 : vector<5x16xf32>
    %373 = vector.broadcast %355 : vector<1x16xf32> to vector<5x16xf32>
    %374 = arith.mulf %372, %373 : vector<5x16xf32>
    %375 = vector.broadcast %356 : vector<1x16xf32> to vector<5x16xf32>
    %376 = arith.addf %374, %375 : vector<5x16xf32>
    %c0_76 = arith.constant 0 : index
    %c0_77 = arith.constant 0 : index
    %377 = vector.load %arg12[%c0_76, %c0_77] : memref<16x32xf32, #tpu.memory_space<vmem>>, vector<16x32xf32>
    %cst_78 = arith.constant dense<0.000000e+00> : vector<5x32xf32>
    %378 = tpu.matmul %376, %377, %cst_78 {dimension_numbers = #tpu.dot_dimension_numbers<[1], [0], [0], [1], [0, 0, 1, 1], [], []>} : vector<5x16xf32>, vector<16x32xf32>, vector<5x32xf32> -> vector<5x32xf32>
    %c0_79 = arith.constant 0 : index
    %c0_80 = arith.constant 0 : index
    %379 = vector.load %arg13[%c0_79, %c0_80] : memref<1x32xf32, #tpu.memory_space<vmem>>, vector<1x32xf32>
    %380 = vector.broadcast %379 : vector<1x32xf32> to vector<5x32xf32>
    %381 = arith.addf %378, %380 : vector<5x32xf32>
    %cst_81 = arith.constant 5.000000e-01 : f32
    %382 = vector.broadcast %cst_81 : f32 to vector<5x32xf32>
    %383 = arith.mulf %382, %381 : vector<5x32xf32>
    %cst_82 = arith.constant 4.471500e-02 : f32
    %384 = vector.broadcast %cst_82 : f32 to vector<5x32xf32>
    %385 = arith.mulf %384, %381 : vector<5x32xf32>
    %386 = arith.mulf %385, %381 : vector<5x32xf32>
    %387 = arith.mulf %386, %381 : vector<5x32xf32>
    %388 = arith.addf %381, %387 : vector<5x32xf32>
    %cst_83 = arith.constant 0.797884583 : f32
    %389 = vector.broadcast %cst_83 : f32 to vector<5x32xf32>
    %390 = arith.mulf %389, %388 : vector<5x32xf32>
    %391 = math.tanh %390 : vector<5x32xf32>
    %cst_84 = arith.constant 1.000000e+00 : f32
    %392 = vector.broadcast %cst_84 : f32 to vector<5x32xf32>
    %393 = arith.addf %392, %391 : vector<5x32xf32>
    %394 = arith.mulf %383, %393 : vector<5x32xf32>
    %c0_85 = arith.constant 0 : index
    %c0_86 = arith.constant 0 : index
    %395 = vector.load %arg14[%c0_85, %c0_86] : memref<32x16xf32, #tpu.memory_space<vmem>>, vector<32x16xf32>
    %cst_87 = arith.constant dense<0.000000e+00> : vector<5x16xf32>
    %396 = tpu.matmul %394, %395, %cst_87 {dimension_numbers = #tpu.dot_dimension_numbers<[1], [0], [0], [1], [0, 0, 1, 1], [], []>} : vector<5x32xf32>, vector<32x16xf32>, vector<5x16xf32> -> vector<5x16xf32>
    %397 = arith.addf %354, %396 : vector<5x16xf32>
    %c0_88 = arith.constant 0 : index
    %c0_89 = arith.constant 0 : index
    %398 = vector.load %arg15[%c0_88, %c0_89] : memref<1x16xf32, #tpu.memory_space<vmem>>, vector<1x16xf32>
    %399 = vector.broadcast %398 : vector<1x16xf32> to vector<5x16xf32>
    %400 = arith.addf %397, %399 : vector<5x16xf32>
    %401 = vector.extract_strided_slice %400 {offsets = [0, 0], sizes = [1, 16], strides = [1, 1]} : vector<5x16xf32> to vector<1x16xf32>
    %c0_90 = arith.constant 0 : index
    %c0_91 = arith.constant 0 : index
    %402 = vector.load %arg16[%c0_90, %c0_91] : memref<1x16xf32, #tpu.memory_space<vmem>>, vector<1x16xf32>
    %c0_92 = arith.constant 0 : index
    %c0_93 = arith.constant 0 : index
    %403 = vector.load %arg17[%c0_92, %c0_93] : memref<1x16xf32, #tpu.memory_space<vmem>>, vector<1x16xf32>
    %cst_94 = arith.constant dense<0.000000e+00> : vector<1xf32>
    %404 = vector.multi_reduction <add>, %401, %cst_94 [1] : vector<1x16xf32> to vector<1xf32>
    %405 = vector.shape_cast %404 : vector<1xf32> to vector<1x1xf32>
    %cst_95 = arith.constant 1.600000e+01 : f32
    %406 = vector.broadcast %cst_95 : f32 to vector<1x1xf32>
    %407 = arith.divf %405, %406 : vector<1x1xf32>
    %408 = vector.broadcast %407 : vector<1x1xf32> to vector<1x16xf32>
    %409 = arith.subf %401, %408 : vector<1x16xf32>
    %410 = arith.mulf %409, %409 : vector<1x16xf32>
    %cst_96 = arith.constant dense<0.000000e+00> : vector<1xf32>
    %411 = vector.multi_reduction <add>, %410, %cst_96 [1] : vector<1x16xf32> to vector<1xf32>
    %412 = vector.shape_cast %411 : vector<1xf32> to vector<1x1xf32>
    %cst_97 = arith.constant 1.600000e+01 : f32
    %413 = vector.broadcast %cst_97 : f32 to vector<1x1xf32>
    %414 = arith.divf %412, %413 : vector<1x1xf32>
    %cst_98 = arith.constant 9.99999997E-7 : f32
    %415 = vector.broadcast %cst_98 : f32 to vector<1x1xf32>
    %416 = arith.addf %414, %415 : vector<1x1xf32>
    %417 = math.rsqrt %416 : vector<1x1xf32>
    %418 = vector.broadcast %417 : vector<1x1xf32> to vector<1x16xf32>
    %419 = arith.mulf %409, %418 : vector<1x16xf32>
    %420 = arith.mulf %419, %402 : vector<1x16xf32>
    %421 = arith.addf %420, %403 : vector<1x16xf32>
    %c0_99 = arith.constant 0 : index
    %c0_100 = arith.constant 0 : index
    %422 = vector.load %arg18[%c0_99, %c0_100] : memref<16x10xf32, #tpu.memory_space<vmem>>, vector<16x10xf32>
    %cst_101 = arith.constant dense<0.000000e+00> : vector<1x10xf32>
    %423 = tpu.matmul %421, %422, %cst_101 {dimension_numbers = #tpu.dot_dimension_numbers<[1], [0], [0], [1], [0, 0, 1, 1], [], []>} : vector<1x16xf32>, vector<16x10xf32>, vector<1x10xf32> -> vector<1x10xf32>
    %c0_102 = arith.constant 0 : index
    %c0_103 = arith.constant 0 : index
    %424 = vector.load %arg19[%c0_102, %c0_103] : memref<1x10xf32, #tpu.memory_space<vmem>>, vector<1x10xf32>
    %425 = arith.addf %423, %424 : vector<1x10xf32>
    %c0_104 = arith.constant 0 : index
    %c0_105 = arith.constant 0 : index
    %c0_106 = arith.constant 0 : index
    %426 = vector.load %arg22[%c0_104, %c0_105, %c0_106] : memref<1x1x10xf32, #tpu.memory_space<vmem>>, vector<1x1x10xf32>
    %427 = vector.shape_cast %426 : vector<1x1x10xf32> to vector<1x10xf32>
    %428 = vector.shape_cast %425 : vector<1x10xf32> to vector<1x1x10xf32>
    tpu.vector_store %arg22[%c0_104, %c0_105, %c0_106], %428 {strides = array<i32>} : memref<1x1x10xf32, #tpu.memory_space<vmem>>, vector<1x1x10xf32>,
    return
  }
  func.func @transform_0(%arg0: i32) -> (i32, i32, i32) {
    %c0_i32 = arith.constant 0 : i32
    %c0_i32_0 = arith.constant 0 : i32
    %c0_i32_1 = arith.constant 0 : i32
    return %arg0, %c0_i32, %c0_i32_0 : i32, i32, i32
  }
  func.func @transform_1(%arg0: i32) -> (i32, i32) {
    %c0_i32 = arith.constant 0 : i32
    %c0_i32_0 = arith.constant 0 : i32
    %c0_i32_1 = arith.constant 0 : i32
    return %c0_i32, %c0_i32_0 : i32, i32
  }
  func.func @transform_2(%arg0: i32) -> (i32, i32) {
    %c0_i32 = arith.constant 0 : i32
    %c0_i32_0 = arith.constant 0 : i32
    %c0_i32_1 = arith.constant 0 : i32
    return %c0_i32, %c0_i32_0 : i32, i32
  }
  func.func @transform_3(%arg0: i32) -> (i32, i32) {
    %c0_i32 = arith.constant 0 : i32
    %c0_i32_0 = arith.constant 0 : i32
    %c0_i32_1 = arith.constant 0 : i32
    return %c0_i32, %c0_i32_0 : i32, i32
  }
  func.func @transform_4(%arg0: i32) -> (i32, i32) {
    %c0_i32 = arith.constant 0 : i32
    %c0_i32_0 = arith.constant 0 : i32
    %c0_i32_1 = arith.constant 0 : i32
    return %c0_i32, %c0_i32_0 : i32, i32
  }
  func.func @transform_5(%arg0: i32) -> (i32, i32) {
    %c0_i32 = arith.constant 0 : i32
    %c0_i32_0 = arith.constant 0 : i32
    %c0_i32_1 = arith.constant 0 : i32
    return %c0_i32, %c0_i32_0 : i32, i32
  }
  func.func @transform_6(%arg0: i32) -> (i32, i32) {
    %c0_i32 = arith.constant 0 : i32
    %c0_i32_0 = arith.constant 0 : i32
    %c0_i32_1 = arith.constant 0 : i32
    return %c0_i32, %c0_i32_0 : i32, i32
  }
  func.func @transform_7(%arg0: i32) -> (i32, i32) {
    %c0_i32 = arith.constant 0 : i32
    %c0_i32_0 = arith.constant 0 : i32
    %c0_i32_1 = arith.constant 0 : i32
    return %c0_i32, %c0_i32_0 : i32, i32
  }
  func.func @transform_8(%arg0: i32) -> (i32, i32) {
    %c0_i32 = arith.constant 0 : i32
    %c0_i32_0 = arith.constant 0 : i32
    %c0_i32_1 = arith.constant 0 : i32
    return %c0_i32, %c0_i32_0 : i32, i32
  }
  func.func @transform_9(%arg0: i32) -> (i32, i32) {
    %c0_i32 = arith.constant 0 : i32
    %c0_i32_0 = arith.constant 0 : i32
    %c0_i32_1 = arith.constant 0 : i32
    return %c0_i32, %c0_i32_0 : i32, i32
  }
  func.func @transform_10(%arg0: i32) -> (i32, i32) {
    %c0_i32 = arith.constant 0 : i32
    %c0_i32_0 = arith.constant 0 : i32
    %c0_i32_1 = arith.constant 0 : i32
    return %c0_i32, %c0_i32_0 : i32, i32
  }
  func.func @transform_11(%arg0: i32) -> (i32, i32) {
    %c0_i32 = arith.constant 0 : i32
    %c0_i32_0 = arith.constant 0 : i32
    %c0_i32_1 = arith.constant 0 : i32
    return %c0_i32, %c0_i32_0 : i32, i32
  }
  func.func @transform_12(%arg0: i32) -> (i32, i32) {
    %c0_i32 = arith.constant 0 : i32
    %c0_i32_0 = arith.constant 0 : i32
    %c0_i32_1 = arith.constant 0 : i32
    return %c0_i32, %c0_i32_0 : i32, i32
  }
  func.func @transform_13(%arg0: i32) -> (i32, i32) {
    %c0_i32 = arith.constant 0 : i32
    %c0_i32_0 = arith.constant 0 : i32
    %c0_i32_1 = arith.constant 0 : i32
    return %c0_i32, %c0_i32_0 : i32, i32
  }
  func.func @transform_14(%arg0: i32) -> (i32, i32) {
    %c0_i32 = arith.constant 0 : i32
    %c0_i32_0 = arith.constant 0 : i32
    %c0_i32_1 = arith.constant 0 : i32
    return %c0_i32, %c0_i32_0 : i32, i32
  }
  func.func @transform_15(%arg0: i32) -> (i32, i32) {
    %c0_i32 = arith.constant 0 : i32
    %c0_i32_0 = arith.constant 0 : i32
    %c0_i32_1 = arith.constant 0 : i32
    return %c0_i32, %c0_i32_0 : i32, i32
  }
  func.func @transform_16(%arg0: i32) -> (i32, i32) {
    %c0_i32 = arith.constant 0 : i32
    %c0_i32_0 = arith.constant 0 : i32
    %c0_i32_1 = arith.constant 0 : i32
    return %c0_i32, %c0_i32_0 : i32, i32
  }
  func.func @transform_17(%arg0: i32) -> (i32, i32) {
    %c0_i32 = arith.constant 0 : i32
    %c0_i32_0 = arith.constant 0 : i32
    %c0_i32_1 = arith.constant 0 : i32
    return %c0_i32, %c0_i32_0 : i32, i32
  }
  func.func @transform_18(%arg0: i32) -> (i32, i32) {
    %c0_i32 = arith.constant 0 : i32
    %c0_i32_0 = arith.constant 0 : i32
    %c0_i32_1 = arith.constant 0 : i32
    return %c0_i32, %c0_i32_0 : i32, i32
  }
  func.func @transform_19(%arg0: i32) -> i32 {
    %c0_i32 = arith.constant 0 : i32
    %c0_i32_0 = arith.constant 0 : i32
    return %c0_i32 : i32
  }
  func.func @transform_20(%arg0: i32) -> i32 {
    %c0_i32 = arith.constant 0 : i32
    %c0_i32_0 = arith.constant 0 : i32
    return %c0_i32 : i32
  }
  func.func @transform_21(%arg0: i32) -> (i32, i32, i32) {
    %c0_i32 = arith.constant 0 : i32
    %c0_i32_0 = arith.constant 0 : i32
    %c0_i32_1 = arith.constant 0 : i32
    return %arg0, %c0_i32, %c0_i32_0 : i32, i32, i32
  }
}

</mosaic_0001>

<llo_original>
// kernel: forward.2
$region0: #{forward.2}
  #allocation0 [shape = 'u32[]', space=smem, size = 0x4, offset = 0x4, fixed_abs, tag = 'smem constant byte address 0x4 - core index']
  #allocation1 [shape = 'u32[144,128]{1,0:T(1,128)}', space=vmem, size = 0x12000, scoped, tag = 'internal scratch']
  %s0 = inlined_call_operand.vmem [shape: f32[2,17,48], index: 0, kind: input, shape index: {}]
  %s1 = inlined_call_operand.vmem [shape: f32[48,8], index: 1, kind: input, shape index: {}]
  %s2 = inlined_call_operand.vmem [shape: f32[17,8], index: 2, kind: input, shape index: {}]
  %s3 = inlined_call_operand.vmem [shape: f32[8,2], index: 3, kind: input, shape index: {}]
  %s4 = inlined_call_operand.vmem [shape: f32[2,8], index: 4, kind: input, shape index: {}]
  %s5 = inlined_call_operand.vmem [shape: f32[1,8], index: 5, kind: input, shape index: {}]
  %s6 = inlined_call_operand.vmem [shape: f32[1,8], index: 6, kind: input, shape index: {}]
  %s7 = inlined_call_operand.vmem [shape: f32[8,24], index: 7, kind: input, shape index: {}]
  %s8 = inlined_call_operand.vmem [shape: f32[1,24], index: 8, kind: input, shape index: {}]
  %s9 = inlined_call_operand.vmem [shape: f32[8,8], index: 9, kind: input, shape index: {}]
  %s10 = inlined_call_operand.vmem [shape: f32[1,8], index: 10, kind: input, shape index: {}]
  %s11 = inlined_call_operand.vmem [shape: f32[1,8], index: 11, kind: input, shape index: {}]
  %s12 = inlined_call_operand.vmem [shape: f32[1,8], index: 12, kind: input, shape index: {}]
  %s13 = inlined_call_operand.vmem [shape: f32[8,16], index: 13, kind: input, shape index: {}]
  %s14 = inlined_call_operand.vmem [shape: f32[1,16], index: 14, kind: input, shape index: {}]
  %s15 = inlined_call_operand.vmem [shape: f32[16,8], index: 15, kind: input, shape index: {}]
  %s16 = inlined_call_operand.vmem [shape: f32[1,8], index: 16, kind: input, shape index: {}]
  %s17 = inlined_call_operand.vmem [shape: f32[12], index: 17, kind: input, shape index: {}]
  %s18 = inlined_call_operand.vmem [shape: f32[2], index: 18, kind: input, shape index: {}]
  %s19 = inlined_call_operand.vmem [shape: f32[2,17,8], index: 19, kind: output, shape index: {}]
  %s20 = sld [smem:[#allocation0]]
  $region117: #{forward.2} parent=0
    _
  %s22 = ssub.s32 1, %s20
  %s23 = scalar_select 0, %s22, %s20
  $region1: #{forward.2} parent=0
    #allocation2 [shape = 'u8[512]{0}', space=smem, size = 0x200, scoped, tag = 'input window, operand 17, single buffered']
    #allocation3 [shape = 's32[2]{0}', space=sflag, size = 0x8, scoped, tag = 'scoped memory for forward.2']
    #allocation4 [shape = 'u8[512]{0}', space=smem, size = 0x200, scoped, tag = 'input window, operand 18, single buffered']
    #allocation5 [shape = 's32[1]{0}', space=sflag, size = 0x4, scoped, tag = 'scoped memory for forward.2']
    %24 = vsyncpa [#allocation3], 0
    %25 = vsyncpa [#allocation5], 0
    loop: start=0, step=1, limit=4
    $region2: #{forward.2} parent=1 // loop_pre_header
      _
    $region3: #{forward.2} parent=1 // loop_header
      %s27 = sphi 0, %s31
      %p28 = scmp.ge.s32.totalorder %s27, 4
      %s37 = sphi 0, %s39
      %s40 = sphi 0, %s37
      %s41 = sphi 0, %s40
      %s57 = sphi 0, %s41
      %s61 = sphi 0, %s61
      %s63 = sphi 0, %s61
      %s64 = sphi 0, %s63
      %s78 = sphi 0, %s64
      %s82 = sphi 0, %s82
      %s84 = sphi 0, %s82
      %s85 = sphi 0, %s84
      %s99 = sphi 0, %s85
      %s103 = sphi 0, %s103
      %s105 = sphi 0, %s103
      %s106 = sphi 0, %s105
      %s120 = sphi 0, %s106
      %s124 = sphi 0, %s124
      %s126 = sphi 0, %s124
      %s127 = sphi 0, %s126
      %s141 = sphi 0, %s127
      %s145 = sphi 0, %s145
      %s147 = sphi 0, %s145
      %s148 = sphi 0, %s147
      %s162 = sphi 0, %s148
      %s166 = sphi 0, %s166
      %s168 = sphi 0, %s166
      %s169 = sphi 0, %s168
      %s183 = sphi 0, %s169
      %s187 = sphi 0, %s187
      %s189 = sphi 0, %s187
      %s190 = sphi 0, %s189
      %s204 = sphi 0, %s190
      %s208 = sphi 0, %s208
      %s210 = sphi 0, %s208
      %s211 = sphi 0, %s210
      %s225 = sphi 0, %s211
      %s229 = sphi 0, %s229
      %s231 = sphi 0, %s229
      %s232 = sphi 0, %s231
      %s246 = sphi 0, %s232
      %s250 = sphi 0, %s250
      %s252 = sphi 0, %s250
      %s253 = sphi 0, %s252
      %s267 = sphi 0, %s253
      %s271 = sphi 0, %s271
      %s273 = sphi 0, %s271
      %s274 = sphi 0, %s273
      %s288 = sphi 0, %s274
      %s292 = sphi 0, %s292
      %s294 = sphi 0, %s292
      %s295 = sphi 0, %s294
      %s309 = sphi 0, %s295
      %s313 = sphi 0, %s313
      %s315 = sphi 0, %s313
      %s316 = sphi 0, %s315
      %s330 = sphi 0, %s316
      %s334 = sphi 0, %s334
      %s336 = sphi 0, %s334
      %s337 = sphi 0, %s336
      %s351 = sphi 0, %s337
      %s355 = sphi 0, %s355
      %s357 = sphi 0, %s355
      %s358 = sphi 0, %s357
      %s372 = sphi 0, %s358
      %s376 = sphi 0, %s376
      %s378 = sphi 0, %s376
      %s379 = sphi 0, %s378
      %s393 = sphi 0, %s379
      %s397 = sphi 0, %s397
      %s399 = sphi 0, %s397
      %s400 = sphi 0, %s399
      %s414 = sphi 0, %s400
      %s418 = sphi 0, %s418
      %s420 = sphi 0, %s418
      %s421 = sphi 0, %s420
      %s435 = sphi 0, %s421
      %s441 = sphi 0, %s443
      %s444 = sphi 0, %s441
      %s445 = sphi 0, %s444
      %s461 = sphi 0, %s445
    $region4: #{forward.2} parent=1 // loop_header_branch
      %30 = sbr.rel (%p28) target = $region8
    $region5: #{forward.2} parent=1 // loop_body
      %s32 = ssub.s32 %s27, 1
      %s33 = ssub.s32 %s27, 2
      %s34 = sadd.s32 %s27, 1
      %s35 = ssub.s32 %s27, %s34
      %p36 = scmp.eq.s32.totalorder %s35, 0
      %s38 = sadd.s32 %s37, 1
      %s39 = scalar_select %p36, %s37, %s38
      %p42 = pneg %p36
      %p43 = scmp.eq.s32.totalorder %s27, 1
      %p44 = por %p42, %p43
      %p45 = scmp.ne.s32.totalorder %s37, %s40
      %p46 = scmp.eq.s32.totalorder %s27, 0
      %p47 = por %p45, %p46
      %p48 = scmp.ne.s32.totalorder %s37, %s40
      %p49 = scmp.eq.s32.totalorder %s32, 1
      %p50 = por %p48, %p49
      %p51 = scmp.ne.s32.totalorder %s40, %s41
      %p52 = scmp.eq.s32.totalorder %s32, 0
      %p53 = por %p51, %p52
      %p54 = scmp.ne.s32.totalorder %s40, %s41
      %p55 = scmp.eq.s32.totalorder %s33, 1
      %p56 = por %p54, %p55
      %p58 = scmp.ne.s32.totalorder %s41, %s57
      %p59 = scmp.eq.s32.totalorder %s33, 0
      %p60 = por %p58, %p59
      %s62 = sadd.s32 %s61, 1
      %p65 = scmp.eq.s32.totalorder %s27, 1
      %p66 = scmp.ne.s32.totalorder %s61, %s63
      %p67 = scmp.eq.s32.totalorder %s27, 0
      %p68 = por %p66, %p67
      %p69 = scmp.ne.s32.totalorder %s61, %s63
      %p70 = scmp.eq.s32.totalorder %s32, 1
      %p71 = por %p69, %p70
      %p72 = scmp.ne.s32.totalorder %s63, %s64
      %p73 = scmp.eq.s32.totalorder %s32, 0
      %p74 = por %p72, %p73
      %p75 = scmp.ne.s32.totalorder %s63, %s64
      %p76 = scmp.eq.s32.totalorder %s33, 1
      %p77 = por %p75, %p76
      %p79 = scmp.ne.s32.totalorder %s64, %s78
      %p80 = scmp.eq.s32.totalorder %s33, 0
      %p81 = por %p79, %p80
      %s83 = sadd.s32 %s82, 1
      %p86 = scmp.eq.s32.totalorder %s27, 1
      %p87 = scmp.ne.s32.totalorder %s82, %s84
      %p88 = scmp.eq.s32.totalorder %s27, 0
      %p89 = por %p87, %p88
      %p90 = scmp.ne.s32.totalorder %s82, %s84
      %p91 = scmp.eq.s32.totalorder %s32, 1
      %p92 = por %p90, %p91
      %p93 = scmp.ne.s32.totalorder %s84, %s85
      %p94 = scmp.eq.s32.totalorder %s32, 0
      %p95 = por %p93, %p94
      %p96 = scmp.ne.s32.totalorder %s84, %s85
      %p97 = scmp.eq.s32.totalorder %s33, 1
      %p98 = por %p96, %p97
      %p100 = scmp.ne.s32.totalorder %s85, %s99
      %p101 = scmp.eq.s32.totalorder %s33, 0
      %p102 = por %p100, %p101
      %s104 = sadd.s32 %s103, 1
      %p107 = scmp.eq.s32.totalorder %s27, 1
      %p108 = scmp.ne.s32.totalorder %s103, %s105
      %p109 = scmp.eq.s32.totalorder %s27, 0
      %p110 = por %p108, %p109
      %p111 = scmp.ne.s32.totalorder %s103, %s105
      %p112 = scmp.eq.s32.totalorder %s32, 1
      %p113 = por %p111, %p112
      %p114 = scmp.ne.s32.totalorder %s105, %s106
      %p115 = scmp.eq.s32.totalorder %s32, 0
      %p116 = por %p114, %p115
      %p117 = scmp.ne.s32.totalorder %s105, %s106
      %p118 = scmp.eq.s32.totalorder %s33, 1
      %p119 = por %p117, %p118
      %p121 = scmp.ne.s32.totalorder %s106, %s120
      %p122 = scmp.eq.s32.totalorder %s33, 0
      %p123 = por %p121, %p122
      %s125 = sadd.s32 %s124, 1
      %p128 = scmp.eq.s32.totalorder %s27, 1
      %p129 = scmp.ne.s32.totalorder %s124, %s126
      %p130 = scmp.eq.s32.totalorder %s27, 0
      %p131 = por %p129, %p130
      %p132 = scmp.ne.s32.totalorder %s124, %s126
      %p133 = scmp.eq.s32.totalorder %s32, 1
      %p134 = por %p132, %p133
      %p135 = scmp.ne.s32.totalorder %s126, %s127
      %p136 = scmp.eq.s32.totalorder %s32, 0
      %p137 = por %p135, %p136
      %p138 = scmp.ne.s32.totalorder %s126, %s127
      %p139 = scmp.eq.s32.totalorder %s33, 1
      %p140 = por %p138, %p139
      %p142 = scmp.ne.s32.totalorder %s127, %s141
      %p143 = scmp.eq.s32.totalorder %s33, 0
      %p144 = por %p142, %p143
      %s146 = sadd.s32 %s145, 1
      %p149 = scmp.eq.s32.totalorder %s27, 1
      %p150 = scmp.ne.s32.totalorder %s145, %s147
      %p151 = scmp.eq.s32.totalorder %s27, 0
      %p152 = por %p150, %p151
      %p153 = scmp.ne.s32.totalorder %s145, %s147
      %p154 = scmp.eq.s32.totalorder %s32, 1
      %p155 = por %p153, %p154
      %p156 = scmp.ne.s32.totalorder %s147, %s148
      %p157 = scmp.eq.s32.totalorder %s32, 0
      %p158 = por %p156, %p157
      %p159 = scmp.ne.s32.totalorder %s147, %s148
      %p160 = scmp.eq.s32.totalorder %s33, 1
      %p161 = por %p159, %p160
      %p163 = scmp.ne.s32.totalorder %s148, %s162
      %p164 = scmp.eq.s32.totalorder %s33, 0
      %p165 = por %p163, %p164
      %s167 = sadd.s32 %s166, 1
      %p170 = scmp.eq.s32.totalorder %s27, 1
      %p171 = scmp.ne.s32.totalorder %s166, %s168
      %p172 = scmp.eq.s32.totalorder %s27, 0
      %p173 = por %p171, %p172
      %p174 = scmp.ne.s32.totalorder %s166, %s168
      %p175 = scmp.eq.s32.totalorder %s32, 1
      %p176 = por %p174, %p175
      %p177 = scmp.ne.s32.totalorder %s168, %s169
      %p178 = scmp.eq.s32.totalorder %s32, 0
      %p179 = por %p177, %p178
      %p180 = scmp.ne.s32.totalorder %s168, %s169
      %p181 = scmp.eq.s32.totalorder %s33, 1
      %p182 = por %p180, %p181
      %p184 = scmp.ne.s32.totalorder %s169, %s183
      %p185 = scmp.eq.s32.totalorder %s33, 0
      %p186 = por %p184, %p185
      %s188 = sadd.s32 %s187, 1
      %p191 = scmp.eq.s32.totalorder %s27, 1
      %p192 = scmp.ne.s32.totalorder %s187, %s189
      %p193 = scmp.eq.s32.totalorder %s27, 0
      %p194 = por %p192, %p193
      %p195 = scmp.ne.s32.totalorder %s187, %s189
      %p196 = scmp.eq.s32.totalorder %s32, 1
      %p197 = por %p195, %p196
      %p198 = scmp.ne.s32.totalorder %s189, %s190
      %p199 = scmp.eq.s32.totalorder %s32, 0
      %p200 = por %p198, %p199
      %p201 = scmp.ne.s32.totalorder %s189, %s190
      %p202 = scmp.eq.s32.totalorder %s33, 1
      %p203 = por %p201, %p202
      %p205 = scmp.ne.s32.totalorder %s190, %s204
      %p206 = scmp.eq.s32.totalorder %s33, 0
      %p207 = por %p205, %p206
      %s209 = sadd.s32 %s208, 1
      %p212 = scmp.eq.s32.totalorder %s27, 1
      %p213 = scmp.ne.s32.totalorder %s208, %s210
      %p214 = scmp.eq.s32.totalorder %s27, 0
      %p215 = por %p213, %p214
      %p216 = scmp.ne.s32.totalorder %s208, %s210
      %p217 = scmp.eq.s32.totalorder %s32, 1
      %p218 = por %p216, %p217
      %p219 = scmp.ne.s32.totalorder %s210, %s211
      %p220 = scmp.eq.s32.totalorder %s32, 0
      %p221 = por %p219, %p220
      %p222 = scmp.ne.s32.totalorder %s210, %s211
      %p223 = scmp.eq.s32.totalorder %s33, 1
      %p224 = por %p222, %p223
      %p226 = scmp.ne.s32.totalorder %s211, %s225
      %p227 = scmp.eq.s32.totalorder %s33, 0
      %p228 = por %p226, %p227
      %s230 = sadd.s32 %s229, 1
      %p233 = scmp.eq.s32.totalorder %s27, 1
      %p234 = scmp.ne.s32.totalorder %s229, %s231
      %p235 = scmp.eq.s32.totalorder %s27, 0
      %p236 = por %p234, %p235
      %p237 = scmp.ne.s32.totalorder %s229, %s231
      %p238 = scmp.eq.s32.totalorder %s32, 1
      %p239 = por %p237, %p238
      %p240 = scmp.ne.s32.totalorder %s231, %s232
      %p241 = scmp.eq.s32.totalorder %s32, 0
      %p242 = por %p240, %p241
      %p243 = scmp.ne.s32.totalorder %s231, %s232
      %p244 = scmp.eq.s32.totalorder %s33, 1
      %p245 = por %p243, %p244
      %p247 = scmp.ne.s32.totalorder %s232, %s246
      %p248 = scmp.eq.s32.totalorder %s33, 0
      %p249 = por %p247, %p248
      %s251 = sadd.s32 %s250, 1
      %p254 = scmp.eq.s32.totalorder %s27, 1
      %p255 = scmp.ne.s32.totalorder %s250, %s252
      %p256 = scmp.eq.s32.totalorder %s27, 0
      %p257 = por %p255, %p256
      %p258 = scmp.ne.s32.totalorder %s250, %s252
      %p259 = scmp.eq.s32.totalorder %s32, 1
      %p260 = por %p258, %p259
      %p261 = scmp.ne.s32.totalorder %s252, %s253
      %p262 = scmp.eq.s32.totalorder %s32, 0
      %p263 = por %p261, %p262
      %p264 = scmp.ne.s32.totalorder %s252, %s253
      %p265 = scmp.eq.s32.totalorder %s33, 1
      %p266 = por %p264, %p265
      %p268 = scmp.ne.s32.totalorder %s253, %s267
      %p269 = scmp.eq.s32.totalorder %s33, 0
      %p270 = por %p268, %p269
      %s272 = sadd.s32 %s271, 1
      %p275 = scmp.eq.s32.totalorder %s27, 1
      %p276 = scmp.ne.s32.totalorder %s271, %s273
      %p277 = scmp.eq.s32.totalorder %s27, 0
      %p278 = por %p276, %p277
      %p279 = scmp.ne.s32.totalorder %s271, %s273
      %p280 = scmp.eq.s32.totalorder %s32, 1
      %p281 = por %p279, %p280
      %p282 = scmp.ne.s32.totalorder %s273, %s274
      %p283 = scmp.eq.s32.totalorder %s32, 0
      %p284 = por %p282, %p283
      %p285 = scmp.ne.s32.totalorder %s273, %s274
      %p286 = scmp.eq.s32.totalorder %s33, 1
      %p287 = por %p285, %p286
      %p289 = scmp.ne.s32.totalorder %s274, %s288
      %p290 = scmp.eq.s32.totalorder %s33, 0
      %p291 = por %p289, %p290
      %s293 = sadd.s32 %s292, 1
      %p296 = scmp.eq.s32.totalorder %s27, 1
      %p297 = scmp.ne.s32.totalorder %s292, %s294
      %p298 = scmp.eq.s32.totalorder %s27, 0
      %p299 = por %p297, %p298
      %p300 = scmp.ne.s32.totalorder %s292, %s294
      %p301 = scmp.eq.s32.totalorder %s32, 1
      %p302 = por %p300, %p301
      %p303 = scmp.ne.s32.totalorder %s294, %s295
      %p304 = scmp.eq.s32.totalorder %s32, 0
      %p305 = por %p303, %p304
      %p306 = scmp.ne.s32.totalorder %s294, %s295
      %p307 = scmp.eq.s32.totalorder %s33, 1
      %p308 = por %p306, %p307
      %p310 = scmp.ne.s32.totalorder %s295, %s309
      %p311 = scmp.eq.s32.totalorder %s33, 0
      %p312 = por %p310, %p311
      %s314 = sadd.s32 %s313, 1
      %p317 = scmp.eq.s32.totalorder %s27, 1
      %p318 = scmp.ne.s32.totalorder %s313, %s315
      %p319 = scmp.eq.s32.totalorder %s27, 0
      %p320 = por %p318, %p319
      %p321 = scmp.ne.s32.totalorder %s313, %s315
      %p322 = scmp.eq.s32.totalorder %s32, 1
      %p323 = por %p321, %p322
      %p324 = scmp.ne.s32.totalorder %s315, %s316
      %p325 = scmp.eq.s32.totalorder %s32, 0
      %p326 = por %p324, %p325
      %p327 = scmp.ne.s32.totalorder %s315, %s316
      %p328 = scmp.eq.s32.totalorder %s33, 1
      %p329 = por %p327, %p328
      %p331 = scmp.ne.s32.totalorder %s316, %s330
      %p332 = scmp.eq.s32.totalorder %s33, 0
      %p333 = por %p331, %p332
      %s335 = sadd.s32 %s334, 1
      %p338 = scmp.eq.s32.totalorder %s27, 1
      %p339 = scmp.ne.s32.totalorder %s334, %s336
      %p340 = scmp.eq.s32.totalorder %s27, 0
      %p341 = por %p339, %p340
      %p342 = scmp.ne.s32.totalorder %s334, %s336
      %p343 = scmp.eq.s32.totalorder %s32, 1
      %p344 = por %p342, %p343
      %p345 = scmp.ne.s32.totalorder %s336, %s337
      %p346 = scmp.eq.s32.totalorder %s32, 0
      %p347 = por %p345, %p346
      %p348 = scmp.ne.s32.totalorder %s336, %s337
      %p349 = scmp.eq.s32.totalorder %s33, 1
      %p350 = por %p348, %p349
      %p352 = scmp.ne.s32.totalorder %s337, %s351
      %p353 = scmp.eq.s32.totalorder %s33, 0
      %p354 = por %p352, %p353
      %s356 = sadd.s32 %s355, 1
      %p359 = scmp.eq.s32.totalorder %s27, 1
      %p360 = scmp.ne.s32.totalorder %s355, %s357
      %p361 = scmp.eq.s32.totalorder %s27, 0
      %p362 = por %p360, %p361
      %p363 = scmp.ne.s32.totalorder %s355, %s357
      %p364 = scmp.eq.s32.totalorder %s32, 1
      %p365 = por %p363, %p364
      %p366 = scmp.ne.s32.totalorder %s357, %s358
      %p367 = scmp.eq.s32.totalorder %s32, 0
      %p368 = por %p366, %p367
      %p369 = scmp.ne.s32.totalorder %s357, %s358
      %p370 = scmp.eq.s32.totalorder %s33, 1
      %p371 = por %p369, %p370
      %p373 = scmp.ne.s32.totalorder %s358, %s372
      %p374 = scmp.eq.s32.totalorder %s33, 0
      %p375 = por %p373, %p374
      %s377 = sadd.s32 %s376, 1
      %p380 = scmp.eq.s32.totalorder %s27, 1
      %p381 = scmp.ne.s32.totalorder %s376, %s378
      %p382 = scmp.eq.s32.totalorder %s27, 0
      %p383 = por %p381, %p382
      %p384 = scmp.ne.s32.totalorder %s376, %s378
      %p385 = scmp.eq.s32.totalorder %s32, 1
      %p386 = por %p384, %p385
      %p387 = scmp.ne.s32.totalorder %s378, %s379
      %p388 = scmp.eq.s32.totalorder %s32, 0
      %p389 = por %p387, %p388
      %p390 = scmp.ne.s32.totalorder %s378, %s379
      %p391 = scmp.eq.s32.totalorder %s33, 1
      %p392 = por %p390, %p391
      %p394 = scmp.ne.s32.totalorder %s379, %s393
      %p395 = scmp.eq.s32.totalorder %s33, 0
      %p396 = por %p394, %p395
      %s398 = sadd.s32 %s397, 1
      %p401 = scmp.eq.s32.totalorder %s27, 1
      %p402 = scmp.ne.s32.totalorder %s397, %s399
      %p403 = scmp.eq.s32.totalorder %s27, 0
      %p404 = por %p402, %p403
      %p405 = scmp.ne.s32.totalorder %s397, %s399
      %p406 = scmp.eq.s32.totalorder %s32, 1
      %p407 = por %p405, %p406
      %p408 = scmp.ne.s32.totalorder %s399, %s400
      %p409 = scmp.eq.s32.totalorder %s32, 0
      %p410 = por %p408, %p409
      %p411 = scmp.ne.s32.totalorder %s399, %s400
      %p412 = scmp.eq.s32.totalorder %s33, 1
      %p413 = por %p411, %p412
      %p415 = scmp.ne.s32.totalorder %s400, %s414
      %p416 = scmp.eq.s32.totalorder %s33, 0
      %p417 = por %p415, %p416
      %s419 = sadd.s32 %s418, 1
      %p422 = scmp.eq.s32.totalorder %s27, 1
      %p423 = scmp.ne.s32.totalorder %s418, %s420
      %p424 = scmp.eq.s32.totalorder %s27, 0
      %p425 = por %p423, %p424
      %p426 = scmp.ne.s32.totalorder %s418, %s420
      %p427 = scmp.eq.s32.totalorder %s32, 1
      %p428 = por %p426, %p427
      %p429 = scmp.ne.s32.totalorder %s420, %s421
      %p430 = scmp.eq.s32.totalorder %s32, 0
      %p431 = por %p429, %p430
      %p432 = scmp.ne.s32.totalorder %s420, %s421
      %p433 = scmp.eq.s32.totalorder %s33, 1
      %p434 = por %p432, %p433
      %p436 = scmp.ne.s32.totalorder %s421, %s435
      %p437 = scmp.eq.s32.totalorder %s33, 0
      %p438 = por %p436, %p437
      %s439 = ssub.s32 %s27, %s34
      %p440 = scmp.eq.s32.totalorder %s439, 0
      %s442 = sadd.s32 %s441, 1
      %s443 = scalar_select %p440, %s441, %s442
      %p446 = pneg %p440
      %p447 = scmp.eq.s32.totalorder %s27, 1
      %p448 = por %p446, %p447
      %p449 = scmp.ne.s32.totalorder %s441, %s444
      %p450 = scmp.eq.s32.totalorder %s27, 0
      %p451 = por %p449, %p450
      %p452 = scmp.ne.s32.totalorder %s441, %s444
      %p453 = scmp.eq.s32.totalorder %s32, 1
      %p454 = por %p452, %p453
      %p455 = scmp.ne.s32.totalorder %s444, %s445
      %p456 = scmp.eq.s32.totalorder %s32, 0
      %p457 = por %p455, %p456
      %p458 = scmp.ne.s32.totalorder %s444, %s445
      %p459 = scmp.eq.s32.totalorder %s33, 1
      %p460 = por %p458, %p459
      %p462 = scmp.ne.s32.totalorder %s445, %s461
      %p463 = scmp.eq.s32.totalorder %s33, 0
      %p464 = por %p462, %p463
      %p465 = scmp.le.s32.totalorder 1, %s27
      %p466 = scmp.lt.s32.totalorder %s27, 3
      %p467 = pnand %p465, %p466
      %p468 = pneg %p467
      // Predicated region
      $region9: #{forward.2} parent=5 // pred_check
        _
      $region10: #{forward.2} parent=5 // pred_check_branch
        %470 = sbr.rel (%p467) target = $region12
      $region11: #{forward.2} parent=5 // pred_region
        %s471 = ssub.s32 %s27, 1
        // Predicated region
        $region13: #{forward.2} parent=11 // pred_check
          %p472 = pneg %p74
        $region14: #{forward.2} parent=11 // pred_check_branch
          %474 = sbr.rel (%p472) target = $region16
        $region15: #{forward.2} parent=11 // pred_region
          _
        $region16: #{forward.2} parent=11 // pred_fallthru
          _
        // Predicated region
        $region17: #{forward.2} parent=11 // pred_check
          %p475 = pneg %p95
        $region18: #{forward.2} parent=11 // pred_check_branch
          %477 = sbr.rel (%p475) target = $region20
        $region19: #{forward.2} parent=11 // pred_region
          _
        $region20: #{forward.2} parent=11 // pred_fallthru
          _
        // Predicated region
        $region21: #{forward.2} parent=11 // pred_check
          %p478 = pneg %p116
        $region22: #{forward.2} parent=11 // pred_check_branch
          %480 = sbr.rel (%p478) target = $region24
        $region23: #{forward.2} parent=11 // pred_region
          _
        $region24: #{forward.2} parent=11 // pred_fallthru
          _
        // Predicated region
        $region25: #{forward.2} parent=11 // pred_check
          %p481 = pneg %p137
        $region26: #{forward.2} parent=11 // pred_check_branch
          %483 = sbr.rel (%p481) target = $region28
        $region27: #{forward.2} parent=11 // pred_region
          _
        $region28: #{forward.2} parent=11 // pred_fallthru
          _
        // Predicated region
        $region29: #{forward.2} parent=11 // pred_check
          %p484 = pneg %p158
        $region30: #{forward.2} parent=11 // pred_check_branch
          %486 = sbr.rel (%p484) target = $region32
        $region31: #{forward.2} parent=11 // pred_region
          _
        $region32: #{forward.2} parent=11 // pred_fallthru
          _
        // Predicated region
        $region33: #{forward.2} parent=11 // pred_check
          %p487 = pneg %p179
        $region34: #{forward.2} parent=11 // pred_check_branch
          %489 = sbr.rel (%p487) target = $region36
        $region35: #{forward.2} parent=11 // pred_region
          _
        $region36: #{forward.2} parent=11 // pred_fallthru
          _
        // Predicated region
        $region37: #{forward.2} parent=11 // pred_check
          %p490 = pneg %p200
        $region38: #{forward.2} parent=11 // pred_check_branch
          %492 = sbr.rel (%p490) target = $region40
        $region39: #{forward.2} parent=11 // pred_region
          _
        $region40: #{forward.2} parent=11 // pred_fallthru
          _
        // Predicated region
        $region41: #{forward.2} parent=11 // pred_check
          %p493 = pneg %p221
        $region42: #{forward.2} parent=11 // pred_check_branch
          %495 = sbr.rel (%p493) target = $region44
        $region43: #{forward.2} parent=11 // pred_region
          _
        $region44: #{forward.2} parent=11 // pred_fallthru
          _
        // Predicated region
        $region45: #{forward.2} parent=11 // pred_check
          %p496 = pneg %p242
        $region46: #{forward.2} parent=11 // pred_check_branch
          %498 = sbr.rel (%p496) target = $region48
        $region47: #{forward.2} parent=11 // pred_region
          _
        $region48: #{forward.2} parent=11 // pred_fallthru
          _
        // Predicated region
        $region49: #{forward.2} parent=11 // pred_check
          %p499 = pneg %p263
        $region50: #{forward.2} parent=11 // pred_check_branch
          %501 = sbr.rel (%p499) target = $region52
        $region51: #{forward.2} parent=11 // pred_region
          _
        $region52: #{forward.2} parent=11 // pred_fallthru
          _
        // Predicated region
        $region53: #{forward.2} parent=11 // pred_check
          %p502 = pneg %p284
        $region54: #{forward.2} parent=11 // pred_check_branch
          %504 = sbr.rel (%p502) target = $region56
        $region55: #{forward.2} parent=11 // pred_region
          _
        $region56: #{forward.2} parent=11 // pred_fallthru
          _
        // Predicated region
        $region57: #{forward.2} parent=11 // pred_check
          %p505 = pneg %p305
        $region58: #{forward.2} parent=11 // pred_check_branch
          %507 = sbr.rel (%p505) target = $region60
        $region59: #{forward.2} parent=11 // pred_region
          _
        $region60: #{forward.2} parent=11 // pred_fallthru
          _
        // Predicated region
        $region61: #{forward.2} parent=11 // pred_check
          %p508 = pneg %p326
        $region62: #{forward.2} parent=11 // pred_check_branch
          %510 = sbr.rel (%p508) target = $region64
        $region63: #{forward.2} parent=11 // pred_region
          _
        $region64: #{forward.2} parent=11 // pred_fallthru
          _
        // Predicated region
        $region65: #{forward.2} parent=11 // pred_check
          %p511 = pneg %p347
        $region66: #{forward.2} parent=11 // pred_check_branch
          %513 = sbr.rel (%p511) target = $region68
        $region67: #{forward.2} parent=11 // pred_region
          _
        $region68: #{forward.2} parent=11 // pred_fallthru
          _
        // Predicated region
        $region69: #{forward.2} parent=11 // pred_check
          %p514 = pneg %p368
        $region70: #{forward.2} parent=11 // pred_check_branch
          %516 = sbr.rel (%p514) target = $region72
        $region71: #{forward.2} parent=11 // pred_region
          _
        $region72: #{forward.2} parent=11 // pred_fallthru
          _
        // Predicated region
        $region73: #{forward.2} parent=11 // pred_check
          %p517 = pneg %p389
        $region74: #{forward.2} parent=11 // pred_check_branch
          %519 = sbr.rel (%p517) target = $region76
        $region75: #{forward.2} parent=11 // pred_region
          _
        $region76: #{forward.2} parent=11 // pred_fallthru
          _
        // Predicated region
        $region77: #{forward.2} parent=11 // pred_check
          %p520 = pneg %p410
        $region78: #{forward.2} parent=11 // pred_check_branch
          %522 = sbr.rel (%p520) target = $region80
        $region79: #{forward.2} parent=11 // pred_region
          %s524 = ssub.s32 16, 16
          %525 = vsyncadd [#allocation3], %s524
          %s527 = sshll.u32 %s17, 4
          %s528 = int_to_ptr.vmem [resolvable:$true] %s527
          %530 = dma.vmem_to_smem %s528, 16, [#allocation2], [#allocation3]
        $region80: #{forward.2} parent=11 // pred_fallthru
          _
        // Predicated region
        $region81: #{forward.2} parent=11 // pred_check
          %p531 = pneg %p431
        $region82: #{forward.2} parent=11 // pred_check_branch
          %533 = sbr.rel (%p531) target = $region84
        $region83: #{forward.2} parent=11 // pred_region
          %s535 = ssub.s32 16, 16
          %536 = vsyncadd [#allocation5], %s535
          %s538 = sshll.u32 %s18, 4
          %s539 = int_to_ptr.vmem [resolvable:$true] %s538
          %541 = dma.vmem_to_smem %s539, 16, [#allocation4], [#allocation5]
        $region84: #{forward.2} parent=11 // pred_fallthru
          _
      $region12: #{forward.2} parent=5 // pred_fallthru
        _
      %p542 = scmp.lt.s32.totalorder %s27, 2
      // Predicated region
      $region85: #{forward.2} parent=5 // pred_check
        %p543 = pneg %p542
      $region86: #{forward.2} parent=5 // pred_check_branch
        %545 = sbr.rel (%p543) target = $region88
      $region87: #{forward.2} parent=5 // pred_region
        // Predicated region
        $region89: #{forward.2} parent=87 // pred_check
          %p546 = pneg %p47
        $region90: #{forward.2} parent=87 // pred_check_branch
          %548 = sbr.rel (%p546) target = $region92
        $region91: #{forward.2} parent=87 // pred_region
          %p549 = scmp.lt.s32.totalorder %s27, 1
          %s550 = scalar_select %p549, %s27, 1
          %s551 = smul.addr %s550, 3
          %s552 = smul.addr %s551, 8
          %s553 = scalar_lea.vmem %s0, %s552
        $region92: #{forward.2} parent=87 // pred_fallthru
          _
      $region88: #{forward.2} parent=5 // pred_fallthru
        _
      %p554 = scmp.le.s32.totalorder 1, %s27
      %p555 = scmp.lt.s32.totalorder %s27, 3
      %p556 = pnand %p554, %p555
      %p557 = pneg %p556
      // Predicated region
      $region93: #{forward.2} parent=5 // pred_check
        _
      $region94: #{forward.2} parent=5 // pred_check_branch
        %559 = sbr.rel (%p556) target = $region96
      $region95: #{forward.2} parent=5 // pred_region
        %s560 = ssub.s32 %s27, 1
        // Predicated region
        $region97: #{forward.2} parent=95 // pred_check
          %p561 = pneg %p410
        $region98: #{forward.2} parent=95 // pred_check_branch
          %563 = sbr.rel (%p561) target = $region100
        $region99: #{forward.2} parent=95 // pred_region
          %564 = dma.done [#allocation3], 16
        $region100: #{forward.2} parent=95 // pred_fallthru
          _
        // Predicated region
        $region101: #{forward.2} parent=95 // pred_check
          %p565 = pneg %p431
        $region102: #{forward.2} parent=95 // pred_check_branch
          %567 = sbr.rel (%p565) target = $region104
        $region103: #{forward.2} parent=95 // pred_region
          %568 = dma.done [#allocation5], 16
        $region104: #{forward.2} parent=95 // pred_fallthru
          _
        %569 = sfence
        %p570 = scmp.lt.s32.totalorder %s32, 1
        %s571 = scalar_select %p570, %s32, 1
        %s572 = smul.addr %s571, 3
        %s573 = smul.addr %s572, 8
        %s574 = scalar_lea.vmem %s0, %s573
        %p575 = pneg %p53
        %p576 = pneg %p50
        %p577 = pneg %p74
        %p578 = pneg %p71
        %p579 = pneg %p95
        %p580 = pneg %p92
        %p581 = pneg %p116
        %p582 = pneg %p113
        %p583 = pneg %p137
        %p584 = pneg %p134
        %p585 = pneg %p158
        %p586 = pneg %p155
        %p587 = pneg %p179
        %p588 = pneg %p176
        %p589 = pneg %p200
        %p590 = pneg %p197
        %p591 = pneg %p221
        %p592 = pneg %p218
        %p593 = pneg %p242
        %p594 = pneg %p239
        %p595 = pneg %p263
        %p596 = pneg %p260
        %p597 = pneg %p284
        %p598 = pneg %p281
        %p599 = pneg %p305
        %p600 = pneg %p302
        %p601 = pneg %p326
        %p602 = pneg %p323
        %p603 = pneg %p347
        %p604 = pneg %p344
        %p605 = pneg %p368
        %p606 = pneg %p365
        %p607 = pneg %p389
        %p608 = pneg %p386
        %p609 = pneg %p410
        %p610 = pneg %p407
        %p611 = pneg %p431
        %p612 = pneg %p428
        %p613 = pneg %p457
        %p614 = pneg %p454
        %p615 = scmp.lt.s32.totalorder %s32, 1
        %s616 = scalar_select %p615, %s32, 1
        %s617 = smul.addr %s616, 3
        %s618 = smul.addr %s617, 8
        %s619 = scalar_lea.vmem %s19, %s618
        %p620 = scmp.lt.s32.totalorder %s32, 1
        %s621 = scalar_select %p620, %s32, 1
        %s622 = smul.addr %s621, 3
        %s623 = smul.addr %s622, 8
        %s624 = scalar_lea.vmem %s0, %s623
        %p625 = scmp.lt.s32.totalorder %s32, 1
        %s626 = scalar_select %p625, %s32, 1
        %s627 = smul.addr %s626, 3
        %s628 = smul.addr %s627, 8
        %s629 = scalar_lea.vmem %s19, %s628
        %v630 = vld [vmem:[%s624] sm:$0xff]
        %v631 = vld [vmem:[%s624 + $0x8] sm:$0xff]
        %v632 = vld [vmem:[%s624 + $0x10] sm:$0x1]
        %v633 = vld [vmem:[%s1] sm:$0xff]
        %v634 = vld [vmem:[%s1 + $0x8] sm:$0xff]
        %v635 = vld [vmem:[%s1 + $0x10] sm:$0xff]
        %v636 = vld [vmem:[%s1 + $0x18] sm:$0xff]
        %v637 = vld [vmem:[%s1 + $0x20] sm:$0xff]
        %v638 = vld [vmem:[%s1 + $0x28] sm:$0xff]
        %v639 = vld [vmem:[%s2] sm:$0xff]
        %v640 = vld [vmem:[%s2 + $0x8] sm:$0xff]
        %v641 = vld [vmem:[%s2 + $0x10] sm:$0x1]
        %vm642 = vcmask 392192
        %v644 = vsel %vm642, %v630, 0
        %v647 = vsel %vm642, %v631, 0
        %v650 = vsel %vm642, %v632, 0
        %652 = vmatprep.subr.mxu0 0.0
        %653 = vmatpush1.msra.mxu0 %v633
        %654 = vmatprep.subr.mxu0 0.0
        %655 = vmatpush1.msra.mxu0 %v634
        %656 = vmatprep.subr.mxu0 0.0
        %657 = vmatpush1.msra.mxu0 %v635
        %658 = vmatprep.subr.mxu0 0.0
        %659 = vmatpush1.msra.mxu0 %v636
        %660 = vmatprep.subr.mxu0 0.0
        %661 = vmatpush1.msra.mxu0 %v637
        %662 = vmatprep.subr.mxu0 0.0
        %663 = vmatpush1.msra.mxu0 %v638
        %664 = vmatprep.subr.mxu0 0.0
        %665 = vmatpush1.msra.mxu0 0.0
        %666 = vmatprep.subr.mxu0 0.0
        %667 = vmatpush1.msra.mxu0 0.0
        %668 = vmatprep.subr.mxu0 0.0
        %669 = vmatpush1.msra.mxu0 0.0
        %670 = vmatprep.subr.mxu0 0.0
        %671 = vmatpush1.msra.mxu0 0.0
        %672 = vmatprep.subr.mxu0 0.0
        %673 = vmatpush1.msra.mxu0 0.0
        %674 = vmatprep.subr.mxu0 0.0
        %675 = vmatpush1.msra.mxu0 0.0
        %676 = vmatprep.subr.mxu0 0.0
        %677 = vmatpush1.msra.mxu0 0.0
        %678 = vmatprep.subr.mxu0 0.0
        %679 = vmatpush1.msra.mxu0 0.0
        %680 = vmatprep.subr.mxu0 0.0
        %681 = vmatpush1.msra.mxu0 0.0
        %682 = vmatprep.subr.mxu0 0.0
        %683 = vmatpush1.msra.mxu0 0.0
        %684 = vmatprep.subr.mxu0 0.0
        %685 = vmatpush1.msra.mxu0 0.0
        %686 = vmatprep.subr.mxu0 0.0
        %687 = vmatpush1.msra.mxu0 0.0
        %688 = vmatprep.subr.mxu0 0.0
        %689 = vmatpush1.msra.mxu0 0.0
        %690 = vmatprep.subr.mxu0 0.0
        %691 = vmatpush1.msra.mxu0 0.0
        %692 = vmatprep.subr.mxu0 0.0
        %693 = vmatpush1.msra.mxu0 0.0
        %694 = vmatprep.subr.mxu0 0.0
        %695 = vmatpush1.msra.mxu0 0.0
        %696 = vmatprep.subr.mxu0 0.0
        %697 = vmatpush1.msra.mxu0 0.0
        %698 = vmatprep.subr.mxu0 0.0
        %699 = vmatpush1.msra.mxu0 0.0
        %700 = vmatprep.subr.mxu0 0.0
        %701 = vmatpush1.msra.mxu0 0.0
        %702 = vmatprep.subr.mxu0 0.0
        %703 = vmatpush1.msra.mxu0 0.0
        %704 = vmatprep.subr.mxu0 0.0
        %705 = vmatpush1.msra.mxu0 0.0
        %706 = vmatprep.subr.mxu0 0.0
        %707 = vmatpush1.msra.mxu0 0.0
        %708 = vmatprep.subr.mxu0 0.0
        %709 = vmatpush1.msra.mxu0 0.0
        %710 = vmatprep.subr.mxu0 0.0
        %711 = vmatpush1.msra.mxu0 0.0
        %712 = vmatprep.subr.mxu0 0.0
        %713 = vmatpush1.msra.mxu0 0.0
        %714 = vmatprep.subr.mxu0 0.0
        %715 = vmatpush1.msra.mxu0 0.0
        %716 = vmatprep.mubr.f32.mxu0 0.0
        %717 = vmatmul.mubr.f32.gmra.mrb[0].mxu0 %v644
        %v718 = vpop.f32.mrb[0].mxu0
        %v719 = vadd.f32 %v639, %v718
        %v720 = vpop.f32.mrb[0].mxu0
        %721 = vmatprep.mubr.f32.mxu0 0.0
        %722 = vmatmul.mubr.f32.gmra.mrb[0].mxu0 %v647
        %v723 = vpop.f32.mrb[0].mxu0
        %v724 = vadd.f32 %v640, %v723
        %v725 = vpop.f32.mrb[0].mxu0
        %726 = vmatprep.mubr.f32.mxu0 0.0
        %727 = vmatmul.mubr.f32.gmra.mrb[0].mxu0 %v650
        %v728 = vpop.f32.mrb[0].mxu0
        %v729 = vadd.f32 %v641, %v728
        %v730 = vpop.f32.mrb[0].mxu0
        %731 = vdwg.mxu0
        %v732 = vld [vmem:[%s3] sm:$0xff]
        %v733 = vld [vmem:[%s5] sm:$0x1]
        %v734 = vld [vmem:[%s6] sm:$0x1]
        %vm735 = vcmask 64512
        %v736 = vsel %vm735, %v719, 0.0
        %737 = vadd.xlane.f32.xlu0 %v736
        %v738 = vpop.xlane.xlu0 %737
        %v739 = vsel %vm735, %v724, 0.0
        %740 = vadd.xlane.f32.xlu0 %v739
        %v741 = vpop.xlane.xlu0 %740
        %vm742 = vcmask 57344
        %v743 = vsel %vm742, %v729, 0.0
        %744 = vadd.xlane.f32.xlu0 %v743
        %v745 = vpop.xlane.xlu0 %744
        %v746 = vrcp.pop 8.0
        %v747 = vmul.f32 %v738, %v746
        %v748 = vmul.f32 %v741, %v746
        %v749 = vmul.f32 %v745, %v746
        %v750 = vsub.f32 %v719, %v747
        %v751 = vsub.f32 %v724, %v748
        %v752 = vsub.f32 %v729, %v749
        %v753 = vmul.f32 %v750, %v750
        %v754 = vmul.f32 %v751, %v751
        %v755 = vmul.f32 %v752, %v752
        %v756 = vsel %vm735, %v753, 0.0
        %757 = vadd.xlane.f32.xlu0 %v756
        %v758 = vpop.xlane.xlu0 %757
        %v759 = vsel %vm735, %v754, 0.0
        %760 = vadd.xlane.f32.xlu0 %v759
        %v761 = vpop.xlane.xlu0 %760
        %v762 = vsel %vm742, %v755, 0.0
        %763 = vadd.xlane.f32.xlu0 %v762
        %v764 = vpop.xlane.xlu0 %763
        %v765 = vmul.f32 %v758, %v746
        %v766 = vmul.f32 %v761, %v746
        %v767 = vmul.f32 %v764, %v746
        %v768 = vadd.f32 %v765, 1e-06
        %v769 = vadd.f32 %v766, 1e-06
        %v770 = vadd.f32 %v767, 1e-06
        %v771 = vrsqrt.pop %v768
        %v772 = vrsqrt.pop %v769
        %v773 = vrsqrt.pop %v770
        %v774 = vmul.f32 %v750, %v771
        %v775 = vmul.f32 %v751, %v772
        %v776 = vmul.f32 %v752, %v773
        %v778 = vlaneseq
        %v779 = vshrl.u32 %v778, 7
        %v780 = vsub.s32 0, %v779
        %v781 = vrot.slane %v733, %v780
        %v783 = vmul.f32 %v774, %v781
        %v784 = vmul.f32 %v775, %v781
        %v785 = vmul.f32 %v776, %v781
        %v787 = vlaneseq
        %v788 = vshrl.u32 %v787, 7
        %v789 = vsub.s32 0, %v788
        %v790 = vrot.slane %v734, %v789
        %v792 = vadd.f32 %v783, %v790
        %v793 = vadd.f32 %v784, %v790
        %v794 = vadd.f32 %v785, %v790
        %v795 = vld [vmem:[%s7] sm:$0xff]
        %v796 = vld [vmem:[%s8] sm:$0x1]
        %v798 = vlaneseq
        %v799 = vshrl.u32 %v798, 7
        %v800 = vsub.s32 0, %v799
        %v801 = vrot.slane %v796, %v800
        %v804 = vsel %vm735, %v792, 0
        %v807 = vsel %vm735, %v793, 0
        %v810 = vsel %vm735, %v794, 0
        %812 = vmatprep.subr.mxu0 0.0
        %813 = vmatpush1.msra.mxu0 %v795
        %814 = vmatprep.subr.mxu0 0.0
        %815 = vmatpush1.msra.mxu0 0.0
        %816 = vmatprep.subr.mxu0 0.0
        %817 = vmatpush1.msra.mxu0 0.0
        %818 = vmatprep.subr.mxu0 0.0
        %819 = vmatpush1.msra.mxu0 0.0
        %820 = vmatprep.subr.mxu0 0.0
        %821 = vmatpush1.msra.mxu0 0.0
        %822 = vmatprep.subr.mxu0 0.0
        %823 = vmatpush1.msra.mxu0 0.0
        %824 = vmatprep.subr.mxu0 0.0
        %825 = vmatpush1.msra.mxu0 0.0
        %826 = vmatprep.subr.mxu0 0.0
        %827 = vmatpush1.msra.mxu0 0.0
        %828 = vmatprep.subr.mxu0 0.0
        %829 = vmatpush1.msra.mxu0 0.0
        %830 = vmatprep.subr.mxu0 0.0
        %831 = vmatpush1.msra.mxu0 0.0
        %832 = vmatprep.subr.mxu0 0.0
        %833 = vmatpush1.msra.mxu0 0.0
        %834 = vmatprep.subr.mxu0 0.0
        %835 = vmatpush1.msra.mxu0 0.0
        %836 = vmatprep.subr.mxu0 0.0
        %837 = vmatpush1.msra.mxu0 0.0
        %838 = vmatprep.subr.mxu0 0.0
        %839 = vmatpush1.msra.mxu0 0.0
        %840 = vmatprep.subr.mxu0 0.0
        %841 = vmatpush1.msra.mxu0 0.0
        %842 = vmatprep.subr.mxu0 0.0
        %843 = vmatpush1.msra.mxu0 0.0
        %844 = vmatprep.subr.mxu0 0.0
        %845 = vmatpush1.msra.mxu0 0.0
        %846 = vmatprep.subr.mxu0 0.0
        %847 = vmatpush1.msra.mxu0 0.0
        %848 = vmatprep.subr.mxu0 0.0
        %849 = vmatpush1.msra.mxu0 0.0
        %850 = vmatprep.subr.mxu0 0.0
        %851 = vmatpush1.msra.mxu0 0.0
        %852 = vmatprep.subr.mxu0 0.0
        %853 = vmatpush1.msra.mxu0 0.0
        %854 = vmatprep.subr.mxu0 0.0
        %855 = vmatpush1.msra.mxu0 0.0
        %856 = vmatprep.subr.mxu0 0.0
        %857 = vmatpush1.msra.mxu0 0.0
        %858 = vmatprep.subr.mxu0 0.0
        %859 = vmatpush1.msra.mxu0 0.0
        %860 = vmatprep.subr.mxu0 0.0
        %861 = vmatpush1.msra.mxu0 0.0
        %862 = vmatprep.subr.mxu0 0.0
        %863 = vmatpush1.msra.mxu0 0.0
        %864 = vmatprep.subr.mxu0 0.0
        %865 = vmatpush1.msra.mxu0 0.0
        %866 = vmatprep.subr.mxu0 0.0
        %867 = vmatpush1.msra.mxu0 0.0
        %868 = vmatprep.subr.mxu0 0.0
        %869 = vmatpush1.msra.mxu0 0.0
        %870 = vmatprep.subr.mxu0 0.0
        %871 = vmatpush1.msra.mxu0 0.0
        %872 = vmatprep.subr.mxu0 0.0
        %873 = vmatpush1.msra.mxu0 0.0
        %874 = vmatprep.subr.mxu0 0.0
        %875 = vmatpush1.msra.mxu0 0.0
        %876 = vmatprep.mubr.f32.mxu0 0.0
        %877 = vmatmul.mubr.f32.gmra.mrb[0].mxu0 %v804
        %v878 = vpop.f32.mrb[0].mxu0
        %v879 = vadd.f32 %v801, %v878
        %v880 = vpop.f32.mrb[0].mxu0
        %881 = vmatprep.mubr.f32.mxu0 0.0
        %882 = vmatmul.mubr.f32.gmra.mrb[0].mxu0 %v807
        %v883 = vpop.f32.mrb[0].mxu0
        %v884 = vadd.f32 %v801, %v883
        %v885 = vpop.f32.mrb[0].mxu0
        %886 = vmatprep.mubr.f32.mxu0 0.0
        %887 = vmatmul.mubr.f32.gmra.mrb[0].mxu0 %v810
        %v888 = vpop.f32.mrb[0].mxu0
        %v889 = vadd.f32 %v801, %v888
        %v890 = vpop.f32.mrb[0].mxu0
        %891 = vdwg.mxu0
        %v892 = vmul.f32 %v879, %v879
        %v893 = vmul.f32 %v884, %v884
        %v894 = vmul.f32 %v889, %v889
        %v895 = vld [vmem:[%s4] sm:$0x3]
        %v897 = vsel %vm735, %v892, 0
        %v900 = vsel %vm735, %v893, 0
        %v903 = vsel %vm735, %v894, 0
        %905 = vmatprep.subr.mxu0 0.0
        %906 = vmatpush1.msra.mxu0 %v732
        %907 = vmatprep.subr.mxu0 0.0
        %908 = vmatpush1.msra.mxu0 0.0
        %909 = vmatprep.subr.mxu0 0.0
        %910 = vmatpush1.msra.mxu0 0.0
        %911 = vmatprep.subr.mxu0 0.0
        %912 = vmatpush1.msra.mxu0 0.0
        %913 = vmatprep.subr.mxu0 0.0
        %914 = vmatpush1.msra.mxu0 0.0
        %915 = vmatprep.subr.mxu0 0.0
        %916 = vmatpush1.msra.mxu0 0.0
        %917 = vmatprep.subr.mxu0 0.0
        %918 = vmatpush1.msra.mxu0 0.0
        %919 = vmatprep.subr.mxu0 0.0
        %920 = vmatpush1.msra.mxu0 0.0
        %921 = vmatprep.subr.mxu0 0.0
        %922 = vmatpush1.msra.mxu0 0.0
        %923 = vmatprep.subr.mxu0 0.0
        %924 = vmatpush1.msra.mxu0 0.0
        %925 = vmatprep.subr.mxu0 0.0
        %926 = vmatpush1.msra.mxu0 0.0
        %927 = vmatprep.subr.mxu0 0.0
        %928 = vmatpush1.msra.mxu0 0.0
        %929 = vmatprep.subr.mxu0 0.0
        %930 = vmatpush1.msra.mxu0 0.0
        %931 = vmatprep.subr.mxu0 0.0
        %932 = vmatpush1.msra.mxu0 0.0
        %933 = vmatprep.subr.mxu0 0.0
        %934 = vmatpush1.msra.mxu0 0.0
        %935 = vmatprep.subr.mxu0 0.0
        %936 = vmatpush1.msra.mxu0 0.0
        %937 = vmatprep.subr.mxu0 0.0
        %938 = vmatpush1.msra.mxu0 0.0
        %939 = vmatprep.subr.mxu0 0.0
        %940 = vmatpush1.msra.mxu0 0.0
        %941 = vmatprep.subr.mxu0 0.0
        %942 = vmatpush1.msra.mxu0 0.0
        %943 = vmatprep.subr.mxu0 0.0
        %944 = vmatpush1.msra.mxu0 0.0
        %945 = vmatprep.subr.mxu0 0.0
        %946 = vmatpush1.msra.mxu0 0.0
        %947 = vmatprep.subr.mxu0 0.0
        %948 = vmatpush1.msra.mxu0 0.0
        %949 = vmatprep.subr.mxu0 0.0
        %950 = vmatpush1.msra.mxu0 0.0
        %951 = vmatprep.subr.mxu0 0.0
        %952 = vmatpush1.msra.mxu0 0.0
        %953 = vmatprep.subr.mxu0 0.0
        %954 = vmatpush1.msra.mxu0 0.0
        %955 = vmatprep.subr.mxu0 0.0
        %956 = vmatpush1.msra.mxu0 0.0
        %957 = vmatprep.subr.mxu0 0.0
        %958 = vmatpush1.msra.mxu0 0.0
        %959 = vmatprep.subr.mxu0 0.0
        %960 = vmatpush1.msra.mxu0 0.0
        %961 = vmatprep.subr.mxu0 0.0
        %962 = vmatpush1.msra.mxu0 0.0
        %963 = vmatprep.subr.mxu0 0.0
        %964 = vmatpush1.msra.mxu0 0.0
        %965 = vmatprep.subr.mxu0 0.0
        %966 = vmatpush1.msra.mxu0 0.0
        %967 = vmatprep.subr.mxu0 0.0
        %968 = vmatpush1.msra.mxu0 0.0
        %969 = vmatprep.mubr.f32.mxu0 0.0
        %970 = vmatmul.mubr.f32.gmra.mrb[0].mxu0 %v897
        %v971 = vpop.f32.mrb[0].mxu0
        %v972 = vadd.f32 1e-12, %v971
        %v973 = vpop.f32.mrb[0].mxu0
        %974 = vmatprep.mubr.f32.mxu0 0.0
        %975 = vmatmul.mubr.f32.gmra.mrb[0].mxu0 %v900
        %v976 = vpop.f32.mrb[0].mxu0
        %v977 = vadd.f32 1e-12, %v976
        %v978 = vpop.f32.mrb[0].mxu0
        %979 = vmatprep.mubr.f32.mxu0 0.0
        %980 = vmatmul.mubr.f32.gmra.mrb[0].mxu0 %v903
        %v981 = vpop.f32.mrb[0].mxu0
        %v982 = vadd.f32 1e-12, %v981
        %v983 = vpop.f32.mrb[0].mxu0
        %984 = vdwg.mxu0
        %v985 = vrcp.pop %v972
        %v986 = vmul.f32 1.0, %v985
        %v987 = vrcp.pop %v977
        %v988 = vmul.f32 1.0, %v987
        %v989 = vrcp.pop %v982
        %v990 = vmul.f32 1.0, %v989
        %991 = vrot.lane.b32.xlu0 %v892, 120
        %v992 = vpop.permute.xlu0 %991
        %993 = vrot.lane.b32.xlu0 %v893, 120
        %v994 = vpop.permute.xlu0 %993
        %995 = vrot.lane.b32.xlu0 %v894, 120
        %v996 = vpop.permute.xlu0 %995
        %v998 = vsel %vm735, %v895, 0
        %v1000 = vsel %vm735, %v992, 0
        %v1002 = vsel %vm735, %v994, 0
        %v1004 = vsel %vm735, %v996, 0
        %1006 = vmatprep.subr.mxu0 0.0
        %1007 = vmatpush1.xpose.msra.mxu0 %v1000
        %1008 = vmatprep.subr.mxu0 0.0
        %1009 = vmatpush1.xpose.msra.mxu0 %v1002
        %1010 = vmatprep.subr.mxu0 0.0
        %1011 = vmatpush1.xpose.msra.mxu0 %v1004
        %1012 = vmatprep.subr.mxu0 0.0
        %1013 = vmatpush1.xpose.msra.mxu0 0.0
        %1014 = vmatprep.subr.mxu0 0.0
        %1015 = vmatpush1.xpose.msra.mxu0 0.0
        %1016 = vmatprep.subr.mxu0 0.0
        %1017 = vmatpush1.xpose.msra.mxu0 0.0
        %1018 = vmatprep.subr.mxu0 0.0
        %1019 = vmatpush1.xpose.msra.mxu0 0.0
        %1020 = vmatprep.subr.mxu0 0.0
        %1021 = vmatpush1.xpose.msra.mxu0 0.0
        %1022 = vmatprep.subr.mxu0 0.0
        %1023 = vmatpush1.xpose.msra.mxu0 0.0
        %1024 = vmatprep.subr.mxu0 0.0
        %1025 = vmatpush1.xpose.msra.mxu0 0.0
        %1026 = vmatprep.subr.mxu0 0.0
        %1027 = vmatpush1.xpose.msra.mxu0 0.0
        %1028 = vmatprep.subr.mxu0 0.0
        %1029 = vmatpush1.xpose.msra.mxu0 0.0
        %1030 = vmatprep.subr.mxu0 0.0
        %1031 = vmatpush1.xpose.msra.mxu0 0.0
        %1032 = vmatprep.subr.mxu0 0.0
        %1033 = vmatpush1.xpose.msra.mxu0 0.0
        %1034 = vmatprep.subr.mxu0 0.0
        %1035 = vmatpush1.xpose.msra.mxu0 0.0
        %1036 = vmatprep.subr.mxu0 0.0
        %1037 = vmatpush1.xpose.msra.mxu0 0.0
        %1038 = vmatprep.subr.mxu0 0.0
        %1039 = vmatpush1.xpose.msra.mxu0 0.0
        %1040 = vmatprep.subr.mxu0 0.0
        %1041 = vmatpush1.xpose.msra.mxu0 0.0
        %1042 = vmatprep.subr.mxu0 0.0
        %1043 = vmatpush1.xpose.msra.mxu0 0.0
        %1044 = vmatprep.subr.mxu0 0.0
        %1045 = vmatpush1.xpose.msra.mxu0 0.0
        %1046 = vmatprep.subr.mxu0 0.0
        %1047 = vmatpush1.xpose.msra.mxu0 0.0
        %1048 = vmatprep.subr.mxu0 0.0
        %1049 = vmatpush1.xpose.msra.mxu0 0.0
        %1050 = vmatprep.subr.mxu0 0.0
        %1051 = vmatpush1.xpose.msra.mxu0 0.0
        %1052 = vmatprep.subr.mxu0 0.0
        %1053 = vmatpush1.xpose.msra.mxu0 0.0
        %1054 = vmatprep.subr.mxu0 0.0
        %1055 = vmatpush1.xpose.msra.mxu0 0.0
        %1056 = vmatprep.subr.mxu0 0.0
        %1057 = vmatpush1.xpose.msra.mxu0 0.0
        %1058 = vmatprep.subr.mxu0 0.0
        %1059 = vmatpush1.xpose.msra.mxu0 0.0
        %1060 = vmatprep.subr.mxu0 0.0
        %1061 = vmatpush1.xpose.msra.mxu0 0.0
        %1062 = vmatprep.subr.mxu0 0.0
        %1063 = vmatpush1.xpose.msra.mxu0 0.0
        %1064 = vmatprep.subr.mxu0 0.0
        %1065 = vmatpush1.xpose.msra.mxu0 0.0
        %1066 = vmatprep.subr.mxu0 0.0
        %1067 = vmatpush1.xpose.msra.mxu0 0.0
        %1068 = vmatprep.subr.mxu0 0.0
        %1069 = vmatpush1.xpose.msra.mxu0 0.0
        %1070 = vmatprep.mubr.f32.mxu0 0.0
        %1071 = vmatmul.mubr.f32.gmra.mrb[0].mxu0 %v998
        %v1072 = vpop.f32.mrb[0].mxu0
        %v1073 = vadd.f32 1e-12, %v1072
        %v1074 = vpop.f32.mrb[0].mxu0
        %1075 = vdwg.mxu0
        %v1076 = vrcp.pop %v1073
        %v1077 = vmul.f32 1.0, %v1076
        %v1078 = vld [vmem:[%s4] sm:$0x1]
        %v1079 = vlaneseq
        %v1080 = vshrl.u32 %v1079, 7
        %v1081 = vsub.s32 0, %v1080
        %v1082 = vrot.slane %v1078, %v1081
        %v1083 = vmul.f32 %v879, %v1082
        %v1084 = vmul.f32 %v884, %v1082
        %v1085 = vmul.f32 %v889, %v1082
        %1089 = vrot.lane.b32.xlu0 %v879, 120
        %v1090 = vpop.permute.xlu0 %1089
        %1091 = vrot.lane.b32.xlu0 %v884, 120
        %v1092 = vpop.permute.xlu0 %1091
        %1093 = vrot.lane.b32.xlu0 %v889, 120
        %v1094 = vpop.permute.xlu0 %1093
        %v1096 = vsel %vm735, %v1083, 0
        %v1099 = vsel %vm735, %v1084, 0
        %v1102 = vsel %vm735, %v1085, 0
        %v1104 = vsel %vm735, %v1090, 0
        %v1106 = vsel %vm735, %v1092, 0
        %v1108 = vsel %vm735, %v1094, 0
        %1110 = vmatprep.subr.mxu0 0.0
        %1111 = vmatpush1.xpose.msra.mxu0 %v1104
        %1112 = vmatprep.subr.mxu0 0.0
        %1113 = vmatpush1.xpose.msra.mxu0 %v1106
        %1114 = vmatprep.subr.mxu0 0.0
        %1115 = vmatpush1.xpose.msra.mxu0 %v1108
        %1116 = vmatprep.subr.mxu0 0.0
        %1117 = vmatpush1.xpose.msra.mxu0 0.0
        %1118 = vmatprep.subr.mxu0 0.0
        %1119 = vmatpush1.xpose.msra.mxu0 0.0
        %1120 = vmatprep.subr.mxu0 0.0
        %1121 = vmatpush1.xpose.msra.mxu0 0.0
        %1122 = vmatprep.subr.mxu0 0.0
        %1123 = vmatpush1.xpose.msra.mxu0 0.0
        %1124 = vmatprep.subr.mxu0 0.0
        %1125 = vmatpush1.xpose.msra.mxu0 0.0
        %1126 = vmatprep.subr.mxu0 0.0
        %1127 = vmatpush1.xpose.msra.mxu0 0.0
        %1128 = vmatprep.subr.mxu0 0.0
        %1129 = vmatpush1.xpose.msra.mxu0 0.0
        %1130 = vmatprep.subr.mxu0 0.0
        %1131 = vmatpush1.xpose.msra.mxu0 0.0
        %1132 = vmatprep.subr.mxu0 0.0
        %1133 = vmatpush1.xpose.msra.mxu0 0.0
        %1134 = vmatprep.subr.mxu0 0.0
        %1135 = vmatpush1.xpose.msra.mxu0 0.0
        %1136 = vmatprep.subr.mxu0 0.0
        %1137 = vmatpush1.xpose.msra.mxu0 0.0
        %1138 = vmatprep.subr.mxu0 0.0
        %1139 = vmatpush1.xpose.msra.mxu0 0.0
        %1140 = vmatprep.subr.mxu0 0.0
        %1141 = vmatpush1.xpose.msra.mxu0 0.0
        %1142 = vmatprep.subr.mxu0 0.0
        %1143 = vmatpush1.xpose.msra.mxu0 0.0
        %1144 = vmatprep.subr.mxu0 0.0
        %1145 = vmatpush1.xpose.msra.mxu0 0.0
        %1146 = vmatprep.subr.mxu0 0.0
        %1147 = vmatpush1.xpose.msra.mxu0 0.0
        %1148 = vmatprep.subr.mxu0 0.0
        %1149 = vmatpush1.xpose.msra.mxu0 0.0
        %1150 = vmatprep.subr.mxu0 0.0
        %1151 = vmatpush1.xpose.msra.mxu0 0.0
        %1152 = vmatprep.subr.mxu0 0.0
        %1153 = vmatpush1.xpose.msra.mxu0 0.0
        %1154 = vmatprep.subr.mxu0 0.0
        %1155 = vmatpush1.xpose.msra.mxu0 0.0
        %1156 = vmatprep.subr.mxu0 0.0
        %1157 = vmatpush1.xpose.msra.mxu0 0.0
        %1158 = vmatprep.subr.mxu0 0.0
        %1159 = vmatpush1.xpose.msra.mxu0 0.0
        %1160 = vmatprep.subr.mxu0 0.0
        %1161 = vmatpush1.xpose.msra.mxu0 0.0
        %1162 = vmatprep.subr.mxu0 0.0
        %1163 = vmatpush1.xpose.msra.mxu0 0.0
        %1164 = vmatprep.subr.mxu0 0.0
        %1165 = vmatpush1.xpose.msra.mxu0 0.0
        %1166 = vmatprep.subr.mxu0 0.0
        %1167 = vmatpush1.xpose.msra.mxu0 0.0
        %1168 = vmatprep.subr.mxu0 0.0
        %1169 = vmatpush1.xpose.msra.mxu0 0.0
        %1170 = vmatprep.subr.mxu0 0.0
        %1171 = vmatpush1.xpose.msra.mxu0 0.0
        %1172 = vmatprep.subr.mxu0 0.0
        %1173 = vmatpush1.xpose.msra.mxu0 0.0
        %1174 = vmatprep.mubr.f32.mxu0 0.0
        %1175 = vmatmul.mubr.f32.gmra.mrb[0].mxu0 %v1096
        %v1176 = vpop.f32.mrb[0].mxu0
        %v1177 = vadd.f32 0.0, %v1176
        %v1178 = vpop.f32.mrb[0].mxu0
        %1179 = vmatprep.mubr.f32.mxu0 0.0
        %1180 = vmatmul.mubr.f32.gmra.mrb[0].mxu0 %v1099
        %v1181 = vpop.f32.mrb[0].mxu0
        %v1182 = vadd.f32 0.0, %v1181
        %v1183 = vpop.f32.mrb[0].mxu0
        %1184 = vmatprep.mubr.f32.mxu0 0.0
        %1185 = vmatmul.mubr.f32.gmra.mrb[0].mxu0 %v1102
        %v1186 = vpop.f32.mrb[0].mxu0
        %v1187 = vadd.f32 0.0, %v1186
        %v1188 = vpop.f32.mrb[0].mxu0
        %1189 = vdwg.mxu0
        %v1190 = vmul.f32 %v1177, %v1177
        %v1191 = vmul.f32 %v1182, %v1182
        %v1192 = vmul.f32 %v1187, %v1187
        %1194 = vset.pattern.permute.xlu0 0
        %1195 = vperm.xlu0 %1194, %v986
        %v1196 = vpop.permute.xlu0 %1195
        %1199 = vset.pattern.permute.xlu0 0
        %1200 = vperm.xlu0 %1199, %v988
        %v1201 = vpop.permute.xlu0 %1200
        %1204 = vset.pattern.permute.xlu0 0
        %1205 = vperm.xlu0 %1204, %v990
        %v1206 = vpop.permute.xlu0 %1205
        %v1208 = vmul.f32 %v1190, %v1196
        %v1209 = vmul.f32 %v1191, %v1201
        %v1210 = vmul.f32 %v1192, %v1206
        %v1211 = vlaneseq
        %v1212 = vshrl.u32 %v1211, 7
        %v1213 = vsub.s32 0, %v1212
        %v1214 = vrot.slane %v1077, %v1213
        %v1215 = vmul.f32 %v1208, %v1214
        %v1216 = vmul.f32 %v1209, %v1214
        %v1217 = vmul.f32 %v1210, %v1214
        %v1218 = vld [vmem:[%s4 + $0x1] sm:$0x1]
        %v1219 = vlaneseq
        %v1220 = vshrl.u32 %v1219, 7
        %v1221 = vsub.s32 0, %v1220
        %v1222 = vrot.slane %v1218, %v1221
        %v1223 = vmul.f32 %v879, %v1222
        %v1224 = vmul.f32 %v884, %v1222
        %v1225 = vmul.f32 %v889, %v1222
        %v1227 = vsel %vm735, %v1223, 0
        %v1230 = vsel %vm735, %v1224, 0
        %v1233 = vsel %vm735, %v1225, 0
        %1235 = vmatprep.subr.mxu0 0.0
        %1236 = vmatpush1.xpose.msra.mxu0 %v1104
        %1237 = vmatprep.subr.mxu0 0.0
        %1238 = vmatpush1.xpose.msra.mxu0 %v1106
        %1239 = vmatprep.subr.mxu0 0.0
        %1240 = vmatpush1.xpose.msra.mxu0 %v1108
        %1241 = vmatprep.subr.mxu0 0.0
        %1242 = vmatpush1.xpose.msra.mxu0 0.0
        %1243 = vmatprep.subr.mxu0 0.0
        %1244 = vmatpush1.xpose.msra.mxu0 0.0
        %1245 = vmatprep.subr.mxu0 0.0
        %1246 = vmatpush1.xpose.msra.mxu0 0.0
        %1247 = vmatprep.subr.mxu0 0.0
        %1248 = vmatpush1.xpose.msra.mxu0 0.0
        %1249 = vmatprep.subr.mxu0 0.0
        %1250 = vmatpush1.xpose.msra.mxu0 0.0
        %1251 = vmatprep.subr.mxu0 0.0
        %1252 = vmatpush1.xpose.msra.mxu0 0.0
        %1253 = vmatprep.subr.mxu0 0.0
        %1254 = vmatpush1.xpose.msra.mxu0 0.0
        %1255 = vmatprep.subr.mxu0 0.0
        %1256 = vmatpush1.xpose.msra.mxu0 0.0
        %1257 = vmatprep.subr.mxu0 0.0
        %1258 = vmatpush1.xpose.msra.mxu0 0.0
        %1259 = vmatprep.subr.mxu0 0.0
        %1260 = vmatpush1.xpose.msra.mxu0 0.0
        %1261 = vmatprep.subr.mxu0 0.0
        %1262 = vmatpush1.xpose.msra.mxu0 0.0
        %1263 = vmatprep.subr.mxu0 0.0
        %1264 = vmatpush1.xpose.msra.mxu0 0.0
        %1265 = vmatprep.subr.mxu0 0.0
        %1266 = vmatpush1.xpose.msra.mxu0 0.0
        %1267 = vmatprep.subr.mxu0 0.0
        %1268 = vmatpush1.xpose.msra.mxu0 0.0
        %1269 = vmatprep.subr.mxu0 0.0
        %1270 = vmatpush1.xpose.msra.mxu0 0.0
        %1271 = vmatprep.subr.mxu0 0.0
        %1272 = vmatpush1.xpose.msra.mxu0 0.0
        %1273 = vmatprep.subr.mxu0 0.0
        %1274 = vmatpush1.xpose.msra.mxu0 0.0
        %1275 = vmatprep.subr.mxu0 0.0
        %1276 = vmatpush1.xpose.msra.mxu0 0.0
        %1277 = vmatprep.subr.mxu0 0.0
        %1278 = vmatpush1.xpose.msra.mxu0 0.0
        %1279 = vmatprep.subr.mxu0 0.0
        %1280 = vmatpush1.xpose.msra.mxu0 0.0
        %1281 = vmatprep.subr.mxu0 0.0
        %1282 = vmatpush1.xpose.msra.mxu0 0.0
        %1283 = vmatprep.subr.mxu0 0.0
        %1284 = vmatpush1.xpose.msra.mxu0 0.0
        %1285 = vmatprep.subr.mxu0 0.0
        %1286 = vmatpush1.xpose.msra.mxu0 0.0
        %1287 = vmatprep.subr.mxu0 0.0
        %1288 = vmatpush1.xpose.msra.mxu0 0.0
        %1289 = vmatprep.subr.mxu0 0.0
        %1290 = vmatpush1.xpose.msra.mxu0 0.0
        %1291 = vmatprep.subr.mxu0 0.0
        %1292 = vmatpush1.xpose.msra.mxu0 0.0
        %1293 = vmatprep.subr.mxu0 0.0
        %1294 = vmatpush1.xpose.msra.mxu0 0.0
        %1295 = vmatprep.subr.mxu0 0.0
        %1296 = vmatpush1.xpose.msra.mxu0 0.0
        %1297 = vmatprep.subr.mxu0 0.0
        %1298 = vmatpush1.xpose.msra.mxu0 0.0
        %1299 = vmatprep.mubr.f32.mxu0 0.0
        %1300 = vmatmul.mubr.f32.gmra.mrb[0].mxu0 %v1227
        %v1301 = vpop.f32.mrb[0].mxu0
        %v1302 = vadd.f32 0.0, %v1301
        %v1303 = vpop.f32.mrb[0].mxu0
        %1304 = vmatprep.mubr.f32.mxu0 0.0
        %1305 = vmatmul.mubr.f32.gmra.mrb[0].mxu0 %v1230
        %v1306 = vpop.f32.mrb[0].mxu0
        %v1307 = vadd.f32 0.0, %v1306
        %v1308 = vpop.f32.mrb[0].mxu0
        %1309 = vmatprep.mubr.f32.mxu0 0.0
        %1310 = vmatmul.mubr.f32.gmra.mrb[0].mxu0 %v1233
        %v1311 = vpop.f32.mrb[0].mxu0
        %v1312 = vadd.f32 0.0, %v1311
        %v1313 = vpop.f32.mrb[0].mxu0
        %1314 = vdwg.mxu0
        %v1315 = vmul.f32 %v1302, %v1302
        %v1316 = vmul.f32 %v1307, %v1307
        %v1317 = vmul.f32 %v1312, %v1312
        %1318 = vset.pattern.permute.xlu0 1
        %1319 = vperm.xlu0 %1318, %v986
        %v1320 = vpop.permute.xlu0 %1319
        %1322 = vset.pattern.permute.xlu0 1
        %1323 = vperm.xlu0 %1322, %v988
        %v1324 = vpop.permute.xlu0 %1323
        %1326 = vset.pattern.permute.xlu0 1
        %1327 = vperm.xlu0 %1326, %v990
        %v1328 = vpop.permute.xlu0 %1327
        %v1330 = vmul.f32 %v1315, %v1320
        %v1331 = vmul.f32 %v1316, %v1324
        %v1332 = vmul.f32 %v1317, %v1328
        %v1333 = vlaneseq
        %v1334 = vshrl.u32 %v1333, 7
        %v1335 = vsub.s32 1, %v1334
        %v1336 = vrot.slane %v1077, %v1335
        %v1337 = vmul.f32 %v1330, %v1336
        %v1338 = vmul.f32 %v1331, %v1336
        %v1339 = vmul.f32 %v1332, %v1336
        %s1340 = sld [smem:[#allocation2]]
        %v1341 = vstv %s1340
        %v1342 = vmul.f32 %v1177, %v1341
        %v1343 = vmul.f32 %v1182, %v1341
        %v1344 = vmul.f32 %v1187, %v1341
        %s1345 = sld [smem:[#allocation2 + $0x1]]
        %v1346 = vstv %s1345
        %v1347 = vmul.f32 %v1302, %v1346
        %v1348 = vmul.f32 %v1307, %v1346
        %v1349 = vmul.f32 %v1312, %v1346
        %v1350 = vadd.f32 %v1342, %v1347
        %v1351 = vadd.f32 %v1343, %v1348
        %v1352 = vadd.f32 %v1344, %v1349
        %s1353 = sld [smem:[#allocation2 + $0x2]]
        %v1354 = vstv %s1353
        %v1355 = vmul.f32 %v1190, %v1354
        %v1356 = vmul.f32 %v1191, %v1354
        %v1357 = vmul.f32 %v1192, %v1354
        %v1358 = vadd.f32 %v1350, %v1355
        %v1359 = vadd.f32 %v1351, %v1356
        %v1360 = vadd.f32 %v1352, %v1357
        %s1361 = sld [smem:[#allocation2 + $0x3]]
        %v1362 = vstv %s1361
        %v1363 = vmul.f32 %v1315, %v1362
        %v1364 = vmul.f32 %v1316, %v1362
        %v1365 = vmul.f32 %v1317, %v1362
        %v1366 = vadd.f32 %v1358, %v1363
        %v1367 = vadd.f32 %v1359, %v1364
        %v1368 = vadd.f32 %v1360, %v1365
        %s1369 = sld [smem:[#allocation2 + $0x4]]
        %v1370 = vstv %s1369
        %v1371 = vmul.f32 %v1215, %v1370
        %v1372 = vmul.f32 %v1216, %v1370
        %v1373 = vmul.f32 %v1217, %v1370
        %v1374 = vadd.f32 %v1366, %v1371
        %v1375 = vadd.f32 %v1367, %v1372
        %v1376 = vadd.f32 %v1368, %v1373
        %s1377 = sld [smem:[#allocation2 + $0x5]]
        %v1378 = vstv %s1377
        %v1379 = vmul.f32 %v1337, %v1378
        %v1380 = vmul.f32 %v1338, %v1378
        %v1381 = vmul.f32 %v1339, %v1378
        %v1382 = vadd.f32 %v1374, %v1379
        %v1383 = vadd.f32 %v1375, %v1380
        %v1384 = vadd.f32 %v1376, %v1381
        %s1385 = sld [smem:[#allocation4]]
        %v1386 = vstv %s1385
        %v1387 = vadd.f32 %v1382, %v1386
        %v1388 = vadd.f32 %v1383, %v1386
        %v1389 = vadd.f32 %v1384, %v1386
        %vm1390 = vcmask 138240
        %v1391 = vsel %vm1390, %v1387, -inf
        %1392 = vmax.xlane.f32.xlu0 %v1391
        %v1393 = vpop.xlane.xlu0 %1392
        %v1394 = vsel %vm1390, %v1388, -inf
        %1395 = vmax.xlane.f32.xlu0 %v1394
        %v1396 = vpop.xlane.xlu0 %1395
        %vm1397 = vcmask 131072
        %v1398 = vsel %vm1397, %v1389, -inf
        %1399 = vmax.xlane.f32.xlu0 %v1398
        %v1400 = vpop.xlane.xlu0 %1399
        %v1401 = vsub.f32 %v1387, %v1393
        %v1402 = vsub.f32 %v1388, %v1396
        %v1403 = vsub.f32 %v1389, %v1400
        %v1404 = vmul.f32 %v1401, 1.442695
        %v1405 = vpow.pop %v1404
        %v1406 = vmul.f32 %v1402, 1.442695
        %v1407 = vpow.pop %v1406
        %v1408 = vmul.f32 %v1403, 1.442695
        %v1409 = vpow.pop %v1408
        %v1410 = vsel %vm1390, %v1405, 0.0
        %1411 = vadd.xlane.f32.xlu0 %v1410
        %v1412 = vpop.xlane.xlu0 %1411
        %v1413 = vsel %vm1390, %v1407, 0.0
        %1414 = vadd.xlane.f32.xlu0 %v1413
        %v1415 = vpop.xlane.xlu0 %1414
        %v1416 = vsel %vm1397, %v1409, 0.0
        %1417 = vadd.xlane.f32.xlu0 %v1416
        %v1418 = vpop.xlane.xlu0 %1417
        %v1419 = vrcp.pop %v1412
        %v1420 = vrcp.pop %v1415
        %v1421 = vrcp.pop %v1418
        %v1422 = vmul.f32 %v1405, %v1419
        %v1423 = vmul.f32 %v1407, %v1420
        %v1424 = vmul.f32 %v1409, %v1421
        %v1425 = vld [vmem:[%s4] sm:$0x1]
        %v1426 = vlaneseq
        %v1427 = vshrl.u32 %v1426, 7
        %v1428 = vsub.s32 0, %v1427
        %v1429 = vrot.slane %v1425, %v1428
        %1431 = vrot.lane.b32.xlu0 %v1429, 16
        %v1432 = vpop.permute.xlu0 %1431
        %v1434 = vmul.f32 %v879, %v1432
        %v1435 = vmul.f32 %v884, %v1432
        %v1436 = vmul.f32 %v889, %v1432
        %s1437 = sld [smem:[#allocation2 + $0x6]]
        %v1438 = vstv %s1437
        %v1439 = vmul.f32 %v1177, %v1438
        %v1440 = vmul.f32 %v1182, %v1438
        %v1441 = vmul.f32 %v1187, %v1438
        %s1442 = sld [smem:[#allocation2 + $0x7]]
        %v1443 = vstv %s1442
        %v1444 = vmul.f32 %v1302, %v1443
        %v1445 = vmul.f32 %v1307, %v1443
        %v1446 = vmul.f32 %v1312, %v1443
        %v1447 = vadd.f32 %v1439, %v1444
        %v1448 = vadd.f32 %v1440, %v1445
        %v1449 = vadd.f32 %v1441, %v1446
        %s1450 = sld [smem:[#allocation2 + $0x8]]
        %v1451 = vstv %s1450
        %v1452 = vmul.f32 %v1190, %v1451
        %v1453 = vmul.f32 %v1191, %v1451
        %v1454 = vmul.f32 %v1192, %v1451
        %v1455 = vadd.f32 %v1447, %v1452
        %v1456 = vadd.f32 %v1448, %v1453
        %v1457 = vadd.f32 %v1449, %v1454
        %s1458 = sld [smem:[#allocation2 + $0x9]]
        %v1459 = vstv %s1458
        %v1460 = vmul.f32 %v1315, %v1459
        %v1461 = vmul.f32 %v1316, %v1459
        %v1462 = vmul.f32 %v1317, %v1459
        %v1463 = vadd.f32 %v1455, %v1460
        %v1464 = vadd.f32 %v1456, %v1461
        %v1465 = vadd.f32 %v1457, %v1462
        %s1466 = sld [smem:[#allocation2 + $0xa]]
        %v1467 = vstv %s1466
        %v1468 = vmul.f32 %v1215, %v1467
        %v1469 = vmul.f32 %v1216, %v1467
        %v1470 = vmul.f32 %v1217, %v1467
        %v1471 = vadd.f32 %v1463, %v1468
        %v1472 = vadd.f32 %v1464, %v1469
        %v1473 = vadd.f32 %v1465, %v1470
        %s1474 = sld [smem:[#allocation2 + $0xb]]
        %v1475 = vstv %s1474
        %v1476 = vmul.f32 %v1337, %v1475
        %v1477 = vmul.f32 %v1338, %v1475
        %v1478 = vmul.f32 %v1339, %v1475
        %v1479 = vadd.f32 %v1471, %v1476
        %v1480 = vadd.f32 %v1472, %v1477
        %v1481 = vadd.f32 %v1473, %v1478
        %s1482 = sld [smem:[#allocation4 + $0x1]]
        %v1483 = vstv %s1482
        %v1484 = vadd.f32 %v1479, %v1483
        %v1485 = vadd.f32 %v1480, %v1483
        %v1486 = vadd.f32 %v1481, %v1483
        %v1487 = vsel %vm1390, %v1484, -inf
        %1488 = vmax.xlane.f32.xlu0 %v1487
        %v1489 = vpop.xlane.xlu0 %1488
        %v1490 = vsel %vm1390, %v1485, -inf
        %1491 = vmax.xlane.f32.xlu0 %v1490
        %v1492 = vpop.xlane.xlu0 %1491
        %v1493 = vsel %vm1397, %v1486, -inf
        %1494 = vmax.xlane.f32.xlu0 %v1493
        %v1495 = vpop.xlane.xlu0 %1494
        %v1496 = vsub.f32 %v1484, %v1489
        %v1497 = vsub.f32 %v1485, %v1492
        %v1498 = vsub.f32 %v1486, %v1495
        %v1499 = vmul.f32 %v1496, 1.442695
        %v1500 = vpow.pop %v1499
        %v1501 = vmul.f32 %v1497, 1.442695
        %v1502 = vpow.pop %v1501
        %v1503 = vmul.f32 %v1498, 1.442695
        %v1504 = vpow.pop %v1503
        %v1505 = vsel %vm1390, %v1500, 0.0
        %1506 = vadd.xlane.f32.xlu0 %v1505
        %v1507 = vpop.xlane.xlu0 %1506
        %v1508 = vsel %vm1390, %v1502, 0.0
        %1509 = vadd.xlane.f32.xlu0 %v1508
        %v1510 = vpop.xlane.xlu0 %1509
        %v1511 = vsel %vm1397, %v1504, 0.0
        %1512 = vadd.xlane.f32.xlu0 %v1511
        %v1513 = vpop.xlane.xlu0 %1512
        %v1514 = vrcp.pop %v1507
        %v1515 = vrcp.pop %v1510
        %v1516 = vrcp.pop %v1513
        %v1517 = vmul.f32 %v1500, %v1514
        %v1518 = vmul.f32 %v1502, %v1515
        %v1519 = vmul.f32 %v1504, %v1516
        %v1520 = vld [vmem:[%s4 + $0x1] sm:$0x1]
        %v1521 = vlaneseq
        %v1522 = vshrl.u32 %v1521, 7
        %v1523 = vsub.s32 0, %v1522
        %v1524 = vrot.slane %v1520, %v1523
        %1526 = vrot.lane.b32.xlu0 %v1524, 16
        %v1527 = vpop.permute.xlu0 %1526
        %v1529 = vmul.f32 %v879, %v1527
        %v1530 = vmul.f32 %v884, %v1527
        %v1531 = vmul.f32 %v889, %v1527
        %1535 = vrot.lane.b32.xlu0 %v1529, 112
        %v1536 = vpop.permute.xlu0 %1535
        %1537 = vrot.lane.b32.xlu0 %v1530, 112
        %v1538 = vpop.permute.xlu0 %1537
        %1539 = vrot.lane.b32.xlu0 %v1531, 112
        %v1540 = vpop.permute.xlu0 %1539
        %v1544 = vsel %vm1390, %v1517, 0
        %v1547 = vsel %vm1390, %v1518, 0
        %v1550 = vsel %vm1390, %v1519, 0
        %vm1552 = vcmask 1040384
        %v1553 = vsel %vm1552, %v1540, 0
        %1555 = vmatprep.subr.mxu0 0.0
        %1556 = vmatpush1.msra.mxu0 %v1536
        %1557 = vmatprep.subr.mxu0 0.0
        %1558 = vmatpush1.msra.mxu0 %v1538
        %1559 = vmatprep.subr.mxu0 0.0
        %1560 = vmatpush1.msra.mxu0 %v1553
        %1561 = vmatprep.subr.mxu0 0.0
        %1562 = vmatpush1.msra.mxu0 0.0
        %1563 = vmatprep.subr.mxu0 0.0
        %1564 = vmatpush1.msra.mxu0 0.0
        %1565 = vmatprep.subr.mxu0 0.0
        %1566 = vmatpush1.msra.mxu0 0.0
        %1567 = vmatprep.subr.mxu0 0.0
        %1568 = vmatpush1.msra.mxu0 0.0
        %1569 = vmatprep.subr.mxu0 0.0
        %1570 = vmatpush1.msra.mxu0 0.0
        %1571 = vmatprep.subr.mxu0 0.0
        %1572 = vmatpush1.msra.mxu0 0.0
        %1573 = vmatprep.subr.mxu0 0.0
        %1574 = vmatpush1.msra.mxu0 0.0
        %1575 = vmatprep.subr.mxu0 0.0
        %1576 = vmatpush1.msra.mxu0 0.0
        %1577 = vmatprep.subr.mxu0 0.0
        %1578 = vmatpush1.msra.mxu0 0.0
        %1579 = vmatprep.subr.mxu0 0.0
        %1580 = vmatpush1.msra.mxu0 0.0
        %1581 = vmatprep.subr.mxu0 0.0
        %1582 = vmatpush1.msra.mxu0 0.0
        %1583 = vmatprep.subr.mxu0 0.0
        %1584 = vmatpush1.msra.mxu0 0.0
        %1585 = vmatprep.subr.mxu0 0.0
        %1586 = vmatpush1.msra.mxu0 0.0
        %1587 = vmatprep.subr.mxu0 0.0
        %1588 = vmatpush1.msra.mxu0 0.0
        %1589 = vmatprep.subr.mxu0 0.0
        %1590 = vmatpush1.msra.mxu0 0.0
        %1591 = vmatprep.subr.mxu0 0.0
        %1592 = vmatpush1.msra.mxu0 0.0
        %1593 = vmatprep.subr.mxu0 0.0
        %1594 = vmatpush1.msra.mxu0 0.0
        %1595 = vmatprep.subr.mxu0 0.0
        %1596 = vmatpush1.msra.mxu0 0.0
        %1597 = vmatprep.subr.mxu0 0.0
        %1598 = vmatpush1.msra.mxu0 0.0
        %1599 = vmatprep.subr.mxu0 0.0
        %1600 = vmatpush1.msra.mxu0 0.0
        %1601 = vmatprep.subr.mxu0 0.0
        %1602 = vmatpush1.msra.mxu0 0.0
        %1603 = vmatprep.subr.mxu0 0.0
        %1604 = vmatpush1.msra.mxu0 0.0
        %1605 = vmatprep.subr.mxu0 0.0
        %1606 = vmatpush1.msra.mxu0 0.0
        %1607 = vmatprep.subr.mxu0 0.0
        %1608 = vmatpush1.msra.mxu0 0.0
        %1609 = vmatprep.subr.mxu0 0.0
        %1610 = vmatpush1.msra.mxu0 0.0
        %1611 = vmatprep.subr.mxu0 0.0
        %1612 = vmatpush1.msra.mxu0 0.0
        %1613 = vmatprep.subr.mxu0 0.0
        %1614 = vmatpush1.msra.mxu0 0.0
        %1615 = vmatprep.subr.mxu0 0.0
        %1616 = vmatpush1.msra.mxu0 0.0
        %1617 = vmatprep.subr.mxu0 0.0
        %1618 = vmatpush1.msra.mxu0 0.0
        %1619 = vmatprep.mubr.f32.mxu0 0.0
        %1620 = vmatmul.mubr.f32.gmra.mrb[0].mxu0 %v1544
        %v1621 = vpop.f32.mrb[0].mxu0
        %v1622 = vadd.f32 0.0, %v1621
        %v1623 = vpop.f32.mrb[0].mxu0
        %1624 = vmatprep.mubr.f32.mxu0 0.0
        %1625 = vmatmul.mubr.f32.gmra.mrb[0].mxu0 %v1547
        %v1626 = vpop.f32.mrb[0].mxu0
        %v1627 = vadd.f32 0.0, %v1626
        %v1628 = vpop.f32.mrb[0].mxu0
        %1629 = vmatprep.mubr.f32.mxu0 0.0
        %1630 = vmatmul.mubr.f32.gmra.mrb[0].mxu0 %v1550
        %v1631 = vpop.f32.mrb[0].mxu0
        %v1632 = vadd.f32 0.0, %v1631
        %v1633 = vpop.f32.mrb[0].mxu0
        %1634 = vdwg.mxu0
        %1638 = vrot.lane.b32.xlu0 %v1434, 112
        %v1639 = vpop.permute.xlu0 %1638
        %1640 = vrot.lane.b32.xlu0 %v1435, 112
        %v1641 = vpop.permute.xlu0 %1640
        %1642 = vrot.lane.b32.xlu0 %v1436, 112
        %v1643 = vpop.permute.xlu0 %1642
        %v1647 = vsel %vm1390, %v1422, 0
        %v1650 = vsel %vm1390, %v1423, 0
        %v1653 = vsel %vm1390, %v1424, 0
        %v1655 = vsel %vm1552, %v1643, 0
        %1657 = vmatprep.subr.mxu0 0.0
        %1658 = vmatpush1.msra.mxu0 %v1639
        %1659 = vmatprep.subr.mxu0 0.0
        %1660 = vmatpush1.msra.mxu0 %v1641
        %1661 = vmatprep.subr.mxu0 0.0
        %1662 = vmatpush1.msra.mxu0 %v1655
        %1663 = vmatprep.subr.mxu0 0.0
        %1664 = vmatpush1.msra.mxu0 0.0
        %1665 = vmatprep.subr.mxu0 0.0
        %1666 = vmatpush1.msra.mxu0 0.0
        %1667 = vmatprep.subr.mxu0 0.0
        %1668 = vmatpush1.msra.mxu0 0.0
        %1669 = vmatprep.subr.mxu0 0.0
        %1670 = vmatpush1.msra.mxu0 0.0
        %1671 = vmatprep.subr.mxu0 0.0
        %1672 = vmatpush1.msra.mxu0 0.0
        %1673 = vmatprep.subr.mxu0 0.0
        %1674 = vmatpush1.msra.mxu0 0.0
        %1675 = vmatprep.subr.mxu0 0.0
        %1676 = vmatpush1.msra.mxu0 0.0
        %1677 = vmatprep.subr.mxu0 0.0
        %1678 = vmatpush1.msra.mxu0 0.0
        %1679 = vmatprep.subr.mxu0 0.0
        %1680 = vmatpush1.msra.mxu0 0.0
        %1681 = vmatprep.subr.mxu0 0.0
        %1682 = vmatpush1.msra.mxu0 0.0
        %1683 = vmatprep.subr.mxu0 0.0
        %1684 = vmatpush1.msra.mxu0 0.0
        %1685 = vmatprep.subr.mxu0 0.0
        %1686 = vmatpush1.msra.mxu0 0.0
        %1687 = vmatprep.subr.mxu0 0.0
        %1688 = vmatpush1.msra.mxu0 0.0
        %1689 = vmatprep.subr.mxu0 0.0
        %1690 = vmatpush1.msra.mxu0 0.0
        %1691 = vmatprep.subr.mxu0 0.0
        %1692 = vmatpush1.msra.mxu0 0.0
        %1693 = vmatprep.subr.mxu0 0.0
        %1694 = vmatpush1.msra.mxu0 0.0
        %1695 = vmatprep.subr.mxu0 0.0
        %1696 = vmatpush1.msra.mxu0 0.0
        %1697 = vmatprep.subr.mxu0 0.0
        %1698 = vmatpush1.msra.mxu0 0.0
        %1699 = vmatprep.subr.mxu0 0.0
        %1700 = vmatpush1.msra.mxu0 0.0
        %1701 = vmatprep.subr.mxu0 0.0
        %1702 = vmatpush1.msra.mxu0 0.0
        %1703 = vmatprep.subr.mxu0 0.0
        %1704 = vmatpush1.msra.mxu0 0.0
        %1705 = vmatprep.subr.mxu0 0.0
        %1706 = vmatpush1.msra.mxu0 0.0
        %1707 = vmatprep.subr.mxu0 0.0
        %1708 = vmatpush1.msra.mxu0 0.0
        %1709 = vmatprep.subr.mxu0 0.0
        %1710 = vmatpush1.msra.mxu0 0.0
        %1711 = vmatprep.subr.mxu0 0.0
        %1712 = vmatpush1.msra.mxu0 0.0
        %1713 = vmatprep.subr.mxu0 0.0
        %1714 = vmatpush1.msra.mxu0 0.0
        %1715 = vmatprep.subr.mxu0 0.0
        %1716 = vmatpush1.msra.mxu0 0.0
        %1717 = vmatprep.subr.mxu0 0.0
        %1718 = vmatpush1.msra.mxu0 0.0
        %1719 = vmatprep.subr.mxu0 0.0
        %1720 = vmatpush1.msra.mxu0 0.0
        %1721 = vmatprep.mubr.f32.mxu0 0.0
        %1722 = vmatmul.mubr.f32.gmra.mrb[0].mxu0 %v1647
        %v1723 = vpop.f32.mrb[0].mxu0
        %v1724 = vadd.f32 %v1622, %v1723
        %v1725 = vpop.f32.mrb[0].mxu0
        %1726 = vmatprep.mubr.f32.mxu0 0.0
        %1727 = vmatmul.mubr.f32.gmra.mrb[0].mxu0 %v1650
        %v1728 = vpop.f32.mrb[0].mxu0
        %v1729 = vadd.f32 %v1627, %v1728
        %v1730 = vpop.f32.mrb[0].mxu0
        %1731 = vmatprep.mubr.f32.mxu0 0.0
        %1732 = vmatmul.mubr.f32.gmra.mrb[0].mxu0 %v1653
        %v1733 = vpop.f32.mrb[0].mxu0
        %v1734 = vadd.f32 %v1632, %v1733
        %v1735 = vpop.f32.mrb[0].mxu0
        %1736 = vdwg.mxu0
        %v1737 = vld [vmem:[%s9] sm:$0xff]
        %v1739 = vsel %vm735, %v1724, 0
        %v1742 = vsel %vm735, %v1729, 0
        %v1745 = vsel %vm735, %v1734, 0
        %1747 = vmatprep.subr.mxu0 0.0
        %1748 = vmatpush1.msra.mxu0 %v1737
        %1749 = vmatprep.subr.mxu0 0.0
        %1750 = vmatpush1.msra.mxu0 0.0
        %1751 = vmatprep.subr.mxu0 0.0
        %1752 = vmatpush1.msra.mxu0 0.0
        %1753 = vmatprep.subr.mxu0 0.0
        %1754 = vmatpush1.msra.mxu0 0.0
        %1755 = vmatprep.subr.mxu0 0.0
        %1756 = vmatpush1.msra.mxu0 0.0
        %1757 = vmatprep.subr.mxu0 0.0
        %1758 = vmatpush1.msra.mxu0 0.0
        %1759 = vmatprep.subr.mxu0 0.0
        %1760 = vmatpush1.msra.mxu0 0.0
        %1761 = vmatprep.subr.mxu0 0.0
        %1762 = vmatpush1.msra.mxu0 0.0
        %1763 = vmatprep.subr.mxu0 0.0
        %1764 = vmatpush1.msra.mxu0 0.0
        %1765 = vmatprep.subr.mxu0 0.0
        %1766 = vmatpush1.msra.mxu0 0.0
        %1767 = vmatprep.subr.mxu0 0.0
        %1768 = vmatpush1.msra.mxu0 0.0
        %1769 = vmatprep.subr.mxu0 0.0
        %1770 = vmatpush1.msra.mxu0 0.0
        %1771 = vmatprep.subr.mxu0 0.0
        %1772 = vmatpush1.msra.mxu0 0.0
        %1773 = vmatprep.subr.mxu0 0.0
        %1774 = vmatpush1.msra.mxu0 0.0
        %1775 = vmatprep.subr.mxu0 0.0
        %1776 = vmatpush1.msra.mxu0 0.0
        %1777 = vmatprep.subr.mxu0 0.0
        %1778 = vmatpush1.msra.mxu0 0.0
        %1779 = vmatprep.subr.mxu0 0.0
        %1780 = vmatpush1.msra.mxu0 0.0
        %1781 = vmatprep.subr.mxu0 0.0
        %1782 = vmatpush1.msra.mxu0 0.0
        %1783 = vmatprep.subr.mxu0 0.0
        %1784 = vmatpush1.msra.mxu0 0.0
        %1785 = vmatprep.subr.mxu0 0.0
        %1786 = vmatpush1.msra.mxu0 0.0
        %1787 = vmatprep.subr.mxu0 0.0
        %1788 = vmatpush1.msra.mxu0 0.0
        %1789 = vmatprep.subr.mxu0 0.0
        %1790 = vmatpush1.msra.mxu0 0.0
        %1791 = vmatprep.subr.mxu0 0.0
        %1792 = vmatpush1.msra.mxu0 0.0
        %1793 = vmatprep.subr.mxu0 0.0
        %1794 = vmatpush1.msra.mxu0 0.0
        %1795 = vmatprep.subr.mxu0 0.0
        %1796 = vmatpush1.msra.mxu0 0.0
        %1797 = vmatprep.subr.mxu0 0.0
        %1798 = vmatpush1.msra.mxu0 0.0
        %1799 = vmatprep.subr.mxu0 0.0
        %1800 = vmatpush1.msra.mxu0 0.0
        %1801 = vmatprep.subr.mxu0 0.0
        %1802 = vmatpush1.msra.mxu0 0.0
        %1803 = vmatprep.subr.mxu0 0.0
        %1804 = vmatpush1.msra.mxu0 0.0
        %1805 = vmatprep.subr.mxu0 0.0
        %1806 = vmatpush1.msra.mxu0 0.0
        %1807 = vmatprep.subr.mxu0 0.0
        %1808 = vmatpush1.msra.mxu0 0.0
        %1809 = vmatprep.subr.mxu0 0.0
        %1810 = vmatpush1.msra.mxu0 0.0
        %1811 = vmatprep.mubr.f32.mxu0 0.0
        %1812 = vmatmul.mubr.f32.gmra.mrb[0].mxu0 %v1739
        %v1813 = vpop.f32.mrb[0].mxu0
        %v1814 = vadd.f32 0.0, %v1813
        %v1815 = vpop.f32.mrb[0].mxu0
        %1816 = vmatprep.mubr.f32.mxu0 0.0
        %1817 = vmatmul.mubr.f32.gmra.mrb[0].mxu0 %v1742
        %v1818 = vpop.f32.mrb[0].mxu0
        %v1819 = vadd.f32 0.0, %v1818
        %v1820 = vpop.f32.mrb[0].mxu0
        %1821 = vmatprep.mubr.f32.mxu0 0.0
        %1822 = vmatmul.mubr.f32.gmra.mrb[0].mxu0 %v1745
        %v1823 = vpop.f32.mrb[0].mxu0
        %v1824 = vadd.f32 0.0, %v1823
        %v1825 = vpop.f32.mrb[0].mxu0
        %1826 = vdwg.mxu0
        %v1827 = vadd.f32 %v719, %v1814
        %v1828 = vadd.f32 %v724, %v1819
        %v1829 = vadd.f32 %v729, %v1824
        %v1830 = vld [vmem:[%s10] sm:$0x1]
        %v1832 = vlaneseq
        %v1833 = vshrl.u32 %v1832, 7
        %v1834 = vsub.s32 0, %v1833
        %v1835 = vrot.slane %v1830, %v1834
        %v1837 = vadd.f32 %v1827, %v1835
        %v1838 = vadd.f32 %v1828, %v1835
        %v1839 = vadd.f32 %v1829, %v1835
        %v1840 = vld [vmem:[%s11] sm:$0x1]
        %v1841 = vld [vmem:[%s12] sm:$0x1]
        %v1842 = vsel %vm735, %v1837, 0.0
        %1843 = vadd.xlane.f32.xlu0 %v1842
        %v1844 = vpop.xlane.xlu0 %1843
        %v1845 = vsel %vm735, %v1838, 0.0
        %1846 = vadd.xlane.f32.xlu0 %v1845
        %v1847 = vpop.xlane.xlu0 %1846
        %v1848 = vsel %vm742, %v1839, 0.0
        %1849 = vadd.xlane.f32.xlu0 %v1848
        %v1850 = vpop.xlane.xlu0 %1849
        %v1851 = vmul.f32 %v1844, %v746
        %v1852 = vmul.f32 %v1847, %v746
        %v1853 = vmul.f32 %v1850, %v746
        %v1854 = vsub.f32 %v1837, %v1851
        %v1855 = vsub.f32 %v1838, %v1852
        %v1856 = vsub.f32 %v1839, %v1853
        %v1857 = vmul.f32 %v1854, %v1854
        %v1858 = vmul.f32 %v1855, %v1855
        %v1859 = vmul.f32 %v1856, %v1856
        %v1860 = vsel %vm735, %v1857, 0.0
        %1861 = vadd.xlane.f32.xlu0 %v1860
        %v1862 = vpop.xlane.xlu0 %1861
        %v1863 = vsel %vm735, %v1858, 0.0
        %1864 = vadd.xlane.f32.xlu0 %v1863
        %v1865 = vpop.xlane.xlu0 %1864
        %v1866 = vsel %vm742, %v1859, 0.0
        %1867 = vadd.xlane.f32.xlu0 %v1866
        %v1868 = vpop.xlane.xlu0 %1867
        %v1869 = vmul.f32 %v1862, %v746
        %v1870 = vmul.f32 %v1865, %v746
        %v1871 = vmul.f32 %v1868, %v746
        %v1872 = vadd.f32 %v1869, 1e-06
        %v1873 = vadd.f32 %v1870, 1e-06
        %v1874 = vadd.f32 %v1871, 1e-06
        %v1875 = vrsqrt.pop %v1872
        %v1876 = vrsqrt.pop %v1873
        %v1877 = vrsqrt.pop %v1874
        %v1878 = vmul.f32 %v1854, %v1875
        %v1879 = vmul.f32 %v1855, %v1876
        %v1880 = vmul.f32 %v1856, %v1877
        %v1882 = vlaneseq
        %v1883 = vshrl.u32 %v1882, 7
        %v1884 = vsub.s32 0, %v1883
        %v1885 = vrot.slane %v1840, %v1884
        %v1887 = vmul.f32 %v1878, %v1885
        %v1888 = vmul.f32 %v1879, %v1885
        %v1889 = vmul.f32 %v1880, %v1885
        %v1891 = vlaneseq
        %v1892 = vshrl.u32 %v1891, 7
        %v1893 = vsub.s32 0, %v1892
        %v1894 = vrot.slane %v1841, %v1893
        %v1896 = vadd.f32 %v1887, %v1894
        %v1897 = vadd.f32 %v1888, %v1894
        %v1898 = vadd.f32 %v1889, %v1894
        %v1899 = vld [vmem:[%s13] sm:$0xff]
        %v1900 = vld [vmem:[%s14] sm:$0x1]
        %v1902 = vlaneseq
        %v1903 = vshrl.u32 %v1902, 7
        %v1904 = vsub.s32 0, %v1903
        %v1905 = vrot.slane %v1900, %v1904
        %v1908 = vsel %vm735, %v1896, 0
        %v1911 = vsel %vm735, %v1897, 0
        %v1914 = vsel %vm735, %v1898, 0
        %1916 = vmatprep.subr.mxu0 0.0
        %1917 = vmatpush1.msra.mxu0 %v1899
        %1918 = vmatprep.subr.mxu0 0.0
        %1919 = vmatpush1.msra.mxu0 0.0
        %1920 = vmatprep.subr.mxu0 0.0
        %1921 = vmatpush1.msra.mxu0 0.0
        %1922 = vmatprep.subr.mxu0 0.0
        %1923 = vmatpush1.msra.mxu0 0.0
        %1924 = vmatprep.subr.mxu0 0.0
        %1925 = vmatpush1.msra.mxu0 0.0
        %1926 = vmatprep.subr.mxu0 0.0
        %1927 = vmatpush1.msra.mxu0 0.0
        %1928 = vmatprep.subr.mxu0 0.0
        %1929 = vmatpush1.msra.mxu0 0.0
        %1930 = vmatprep.subr.mxu0 0.0
        %1931 = vmatpush1.msra.mxu0 0.0
        %1932 = vmatprep.subr.mxu0 0.0
        %1933 = vmatpush1.msra.mxu0 0.0
        %1934 = vmatprep.subr.mxu0 0.0
        %1935 = vmatpush1.msra.mxu0 0.0
        %1936 = vmatprep.subr.mxu0 0.0
        %1937 = vmatpush1.msra.mxu0 0.0
        %1938 = vmatprep.subr.mxu0 0.0
        %1939 = vmatpush1.msra.mxu0 0.0
        %1940 = vmatprep.subr.mxu0 0.0
        %1941 = vmatpush1.msra.mxu0 0.0
        %1942 = vmatprep.subr.mxu0 0.0
        %1943 = vmatpush1.msra.mxu0 0.0
        %1944 = vmatprep.subr.mxu0 0.0
        %1945 = vmatpush1.msra.mxu0 0.0
        %1946 = vmatprep.subr.mxu0 0.0
        %1947 = vmatpush1.msra.mxu0 0.0
        %1948 = vmatprep.subr.mxu0 0.0
        %1949 = vmatpush1.msra.mxu0 0.0
        %1950 = vmatprep.subr.mxu0 0.0
        %1951 = vmatpush1.msra.mxu0 0.0
        %1952 = vmatprep.subr.mxu0 0.0
        %1953 = vmatpush1.msra.mxu0 0.0
        %1954 = vmatprep.subr.mxu0 0.0
        %1955 = vmatpush1.msra.mxu0 0.0
        %1956 = vmatprep.subr.mxu0 0.0
        %1957 = vmatpush1.msra.mxu0 0.0
        %1958 = vmatprep.subr.mxu0 0.0
        %1959 = vmatpush1.msra.mxu0 0.0
        %1960 = vmatprep.subr.mxu0 0.0
        %1961 = vmatpush1.msra.mxu0 0.0
        %1962 = vmatprep.subr.mxu0 0.0
        %1963 = vmatpush1.msra.mxu0 0.0
        %1964 = vmatprep.subr.mxu0 0.0
        %1965 = vmatpush1.msra.mxu0 0.0
        %1966 = vmatprep.subr.mxu0 0.0
        %1967 = vmatpush1.msra.mxu0 0.0
        %1968 = vmatprep.subr.mxu0 0.0
        %1969 = vmatpush1.msra.mxu0 0.0
        %1970 = vmatprep.subr.mxu0 0.0
        %1971 = vmatpush1.msra.mxu0 0.0
        %1972 = vmatprep.subr.mxu0 0.0
        %1973 = vmatpush1.msra.mxu0 0.0
        %1974 = vmatprep.subr.mxu0 0.0
        %1975 = vmatpush1.msra.mxu0 0.0
        %1976 = vmatprep.subr.mxu0 0.0
        %1977 = vmatpush1.msra.mxu0 0.0
        %1978 = vmatprep.subr.mxu0 0.0
        %1979 = vmatpush1.msra.mxu0 0.0
        %1980 = vmatprep.mubr.f32.mxu0 0.0
        %1981 = vmatmul.mubr.f32.gmra.mrb[0].mxu0 %v1908
        %v1982 = vpop.f32.mrb[0].mxu0
        %v1983 = vadd.f32 %v1905, %v1982
        %v1984 = vpop.f32.mrb[0].mxu0
        %1985 = vmatprep.mubr.f32.mxu0 0.0
        %1986 = vmatmul.mubr.f32.gmra.mrb[0].mxu0 %v1911
        %v1987 = vpop.f32.mrb[0].mxu0
        %v1988 = vadd.f32 %v1905, %v1987
        %v1989 = vpop.f32.mrb[0].mxu0
        %1990 = vmatprep.mubr.f32.mxu0 0.0
        %1991 = vmatmul.mubr.f32.gmra.mrb[0].mxu0 %v1914
        %v1992 = vpop.f32.mrb[0].mxu0
        %v1993 = vadd.f32 %v1905, %v1992
        %v1994 = vpop.f32.mrb[0].mxu0
        %1995 = vdwg.mxu0
        %v1996 = vmul.f32 %v1983, 0.5
        %v1997 = vmul.f32 %v1988, 0.5
        %v1998 = vmul.f32 %v1993, 0.5
        %v1999 = vmul.f32 %v1983, 0.044715
        %v2000 = vmul.f32 %v1988, 0.044715
        %v2001 = vmul.f32 %v1993, 0.044715
        %v2002 = vmul.f32 %v1999, %v1983
        %v2003 = vmul.f32 %v2000, %v1988
        %v2004 = vmul.f32 %v2001, %v1993
        %v2005 = vmul.f32 %v2002, %v1983
        %v2006 = vmul.f32 %v2003, %v1988
        %v2007 = vmul.f32 %v2004, %v1993
        %v2008 = vadd.f32 %v1983, %v2005
        %v2009 = vadd.f32 %v1988, %v2006
        %v2010 = vadd.f32 %v1993, %v2007
        %v2011 = vmul.f32 %v2008, 0.7978846
        %v2012 = vmul.f32 %v2009, 0.7978846
        %v2013 = vmul.f32 %v2010, 0.7978846
        %v2014 = vtanh.pop %v2011
        %v2015 = vtanh.pop %v2012
        %v2016 = vtanh.pop %v2013
        %v2017 = vadd.f32 %v2014, 1.0
        %v2018 = vadd.f32 %v2015, 1.0
        %v2019 = vadd.f32 %v2016, 1.0
        %v2020 = vmul.f32 %v1996, %v2017
        %v2021 = vmul.f32 %v1997, %v2018
        %v2022 = vmul.f32 %v1998, %v2019
        %v2023 = vld [vmem:[%s15] sm:$0xff]
        %v2024 = vld [vmem:[%s15 + $0x8] sm:$0xff]
        %vm2025 = vcmask 130048
        %v2027 = vsel %vm2025, %v2020, 0
        %v2030 = vsel %vm2025, %v2021, 0
        %v2033 = vsel %vm2025, %v2022, 0
        %2035 = vmatprep.subr.mxu0 0.0
        %2036 = vmatpush1.msra.mxu0 %v2023
        %2037 = vmatprep.subr.mxu0 0.0
        %2038 = vmatpush1.msra.mxu0 %v2024
        %2039 = vmatprep.subr.mxu0 0.0
        %2040 = vmatpush1.msra.mxu0 0.0
        %2041 = vmatprep.subr.mxu0 0.0
        %2042 = vmatpush1.msra.mxu0 0.0
        %2043 = vmatprep.subr.mxu0 0.0
        %2044 = vmatpush1.msra.mxu0 0.0
        %2045 = vmatprep.subr.mxu0 0.0
        %2046 = vmatpush1.msra.mxu0 0.0
        %2047 = vmatprep.subr.mxu0 0.0
        %2048 = vmatpush1.msra.mxu0 0.0
        %2049 = vmatprep.subr.mxu0 0.0
        %2050 = vmatpush1.msra.mxu0 0.0
        %2051 = vmatprep.subr.mxu0 0.0
        %2052 = vmatpush1.msra.mxu0 0.0
        %2053 = vmatprep.subr.mxu0 0.0
        %2054 = vmatpush1.msra.mxu0 0.0
        %2055 = vmatprep.subr.mxu0 0.0
        %2056 = vmatpush1.msra.mxu0 0.0
        %2057 = vmatprep.subr.mxu0 0.0
        %2058 = vmatpush1.msra.mxu0 0.0
        %2059 = vmatprep.subr.mxu0 0.0
        %2060 = vmatpush1.msra.mxu0 0.0
        %2061 = vmatprep.subr.mxu0 0.0
        %2062 = vmatpush1.msra.mxu0 0.0
        %2063 = vmatprep.subr.mxu0 0.0
        %2064 = vmatpush1.msra.mxu0 0.0
        %2065 = vmatprep.subr.mxu0 0.0
        %2066 = vmatpush1.msra.mxu0 0.0
        %2067 = vmatprep.subr.mxu0 0.0
        %2068 = vmatpush1.msra.mxu0 0.0
        %2069 = vmatprep.subr.mxu0 0.0
        %2070 = vmatpush1.msra.mxu0 0.0
        %2071 = vmatprep.subr.mxu0 0.0
        %2072 = vmatpush1.msra.mxu0 0.0
        %2073 = vmatprep.subr.mxu0 0.0
        %2074 = vmatpush1.msra.mxu0 0.0
        %2075 = vmatprep.subr.mxu0 0.0
        %2076 = vmatpush1.msra.mxu0 0.0
        %2077 = vmatprep.subr.mxu0 0.0
        %2078 = vmatpush1.msra.mxu0 0.0
        %2079 = vmatprep.subr.mxu0 0.0
        %2080 = vmatpush1.msra.mxu0 0.0
        %2081 = vmatprep.subr.mxu0 0.0
        %2082 = vmatpush1.msra.mxu0 0.0
        %2083 = vmatprep.subr.mxu0 0.0
        %2084 = vmatpush1.msra.mxu0 0.0
        %2085 = vmatprep.subr.mxu0 0.0
        %2086 = vmatpush1.msra.mxu0 0.0
        %2087 = vmatprep.subr.mxu0 0.0
        %2088 = vmatpush1.msra.mxu0 0.0
        %2089 = vmatprep.subr.mxu0 0.0
        %2090 = vmatpush1.msra.mxu0 0.0
        %2091 = vmatprep.subr.mxu0 0.0
        %2092 = vmatpush1.msra.mxu0 0.0
        %2093 = vmatprep.subr.mxu0 0.0
        %2094 = vmatpush1.msra.mxu0 0.0
        %2095 = vmatprep.subr.mxu0 0.0
        %2096 = vmatpush1.msra.mxu0 0.0
        %2097 = vmatprep.subr.mxu0 0.0
        %2098 = vmatpush1.msra.mxu0 0.0
        %2099 = vmatprep.mubr.f32.mxu0 0.0
        %2100 = vmatmul.mubr.f32.gmra.mrb[0].mxu0 %v2027
        %v2101 = vpop.f32.mrb[0].mxu0
        %v2102 = vadd.f32 0.0, %v2101
        %v2103 = vpop.f32.mrb[0].mxu0
        %2104 = vmatprep.mubr.f32.mxu0 0.0
        %2105 = vmatmul.mubr.f32.gmra.mrb[0].mxu0 %v2030
        %v2106 = vpop.f32.mrb[0].mxu0
        %v2107 = vadd.f32 0.0, %v2106
        %v2108 = vpop.f32.mrb[0].mxu0
        %2109 = vmatprep.mubr.f32.mxu0 0.0
        %2110 = vmatmul.mubr.f32.gmra.mrb[0].mxu0 %v2033
        %v2111 = vpop.f32.mrb[0].mxu0
        %v2112 = vadd.f32 0.0, %v2111
        %v2113 = vpop.f32.mrb[0].mxu0
        %2114 = vdwg.mxu0
        %v2115 = vadd.f32 %v1837, %v2102
        %v2116 = vadd.f32 %v1838, %v2107
        %v2117 = vadd.f32 %v1839, %v2112
        %v2118 = vld [vmem:[%s16] sm:$0x1]
        %v2120 = vlaneseq
        %v2121 = vshrl.u32 %v2120, 7
        %v2122 = vsub.s32 0, %v2121
        %v2123 = vrot.slane %v2118, %v2122
        %v2125 = vadd.f32 %v2115, %v2123
        %v2126 = vadd.f32 %v2116, %v2123
        %v2127 = vadd.f32 %v2117, %v2123
        %2128 = vst.msk [vmem:[%s629] sm:$0xff] %vm735, %v2125
        %2129 = vst.msk [vmem:[%s629 + $0x8] sm:$0xff] %vm735, %v2126
        %2130 = vst.msk [vmem:[%s629 + $0x10] sm:$0x1] %vm742, %v2127
        %p2131 = scmp.lt.s32.totalorder %s32, 1
        %s2132 = scalar_select %p2131, %s32, 1
        %s2133 = smul.addr %s2132, 3
        %s2134 = smul.addr %s2133, 8
        %s2135 = scalar_lea.vmem %s19, %s2134
        // Predicated region
        $region105: #{forward.2} parent=95 // pred_check
          %p2136 = pneg %p454
        $region106: #{forward.2} parent=95 // pred_check_branch
          %2138 = sbr.rel (%p2136) target = $region108
        $region107: #{forward.2} parent=95 // pred_region
          _
        $region108: #{forward.2} parent=95 // pred_fallthru
          _
      $region96: #{forward.2} parent=5 // pred_fallthru
        _
      %p2139 = scmp.le.s32.totalorder 2, %s27
      // Predicated region
      $region109: #{forward.2} parent=5 // pred_check
        %p2140 = pneg %p2139
      $region110: #{forward.2} parent=5 // pred_check_branch
        %2142 = sbr.rel (%p2140) target = $region112
      $region111: #{forward.2} parent=5 // pred_region
        %s2143 = ssub.s32 %s27, 2
        // Predicated region
        $region113: #{forward.2} parent=111 // pred_check
          %p2144 = pneg %p460
        $region114: #{forward.2} parent=111 // pred_check_branch
          %2146 = sbr.rel (%p2144) target = $region116
        $region115: #{forward.2} parent=111 // pred_region
          %p2147 = scmp.lt.s32.totalorder %s33, 1
          %s2148 = scalar_select %p2147, %s33, 1
          %s2149 = smul.addr %s2148, 3
          %s2150 = smul.addr %s2149, 8
          %s2151 = scalar_lea.vmem %s19, %s2150
        $region116: #{forward.2} parent=111 // pred_fallthru
          _
      $region112: #{forward.2} parent=5 // pred_fallthru
        _
    $region6: #{forward.2} parent=1 // loop_footer
      %s31 = sadd.s32 1, %s27
    $region7: #{forward.2} parent=1 // loop_footer_branch
      %26 = sbr.rel target = $region3
    $region8: #{forward.2} parent=1 // loop_exit
      _
    %2152 = vsyncpa [#allocation3], 1
    %s2153 = scalar_lea.sflag [#allocation3], 1
    %2154 = vsyncpa %s2153, 1
    %2155 = vsyncpa [#allocation5], 1

// kernel: forward.3
$region0: #{forward.3}
  #allocation0 [shape = 'u32[]', space=smem, size = 0x4, offset = 0x4, fixed_abs, tag = 'smem constant byte address 0x4 - core index']
  #allocation1 [shape = 'u32[144,128]{1,0:T(1,128)}', space=vmem, size = 0x12000, scoped, tag = 'internal scratch']
  %s0 = inlined_call_operand.vmem [shape: f32[2,5,16], index: 0, kind: input, shape index: {}]
  %s1 = inlined_call_operand.vmem [shape: f32[16,4], index: 1, kind: input, shape index: {}]
  %s2 = inlined_call_operand.vmem [shape: f32[4,16], index: 2, kind: input, shape index: {}]
  %s3 = inlined_call_operand.vmem [shape: f32[1,16], index: 3, kind: input, shape index: {}]
  %s4 = inlined_call_operand.vmem [shape: f32[1,16], index: 4, kind: input, shape index: {}]
  %s5 = inlined_call_operand.vmem [shape: f32[16,48], index: 5, kind: input, shape index: {}]
  %s6 = inlined_call_operand.vmem [shape: f32[1,48], index: 6, kind: input, shape index: {}]
  %s7 = inlined_call_operand.vmem [shape: f32[16,16], index: 7, kind: input, shape index: {}]
  %s8 = inlined_call_operand.vmem [shape: f32[1,16], index: 8, kind: input, shape index: {}]
  %s9 = inlined_call_operand.vmem [shape: f32[1,16], index: 9, kind: input, shape index: {}]
  %s10 = inlined_call_operand.vmem [shape: f32[1,16], index: 10, kind: input, shape index: {}]
  %s11 = inlined_call_operand.vmem [shape: f32[16,32], index: 11, kind: input, shape index: {}]
  %s12 = inlined_call_operand.vmem [shape: f32[1,32], index: 12, kind: input, shape index: {}]
  %s13 = inlined_call_operand.vmem [shape: f32[32,16], index: 13, kind: input, shape index: {}]
  %s14 = inlined_call_operand.vmem [shape: f32[1,16], index: 14, kind: input, shape index: {}]
  %s15 = inlined_call_operand.vmem [shape: f32[1,16], index: 15, kind: input, shape index: {}]
  %s16 = inlined_call_operand.vmem [shape: f32[1,16], index: 16, kind: input, shape index: {}]
  %s17 = inlined_call_operand.vmem [shape: f32[16,10], index: 17, kind: input, shape index: {}]
  %s18 = inlined_call_operand.vmem [shape: f32[1,10], index: 18, kind: input, shape index: {}]
  %s19 = inlined_call_operand.vmem [shape: f32[48], index: 19, kind: input, shape index: {}]
  %s20 = inlined_call_operand.vmem [shape: f32[4], index: 20, kind: input, shape index: {}]
  %s21 = inlined_call_operand.hbm [shape: f32[2,1,10], index: 21, kind: output, shape index: {}]
  %s22 = sld [smem:[#allocation0]]
  $region125: #{forward.3} parent=0
    _
  %s24 = ssub.s32 1, %s22
  %s25 = scalar_select 0, %s24, %s22
  $region1: #{forward.3} parent=0
    #allocation2 [shape = 'u8[512]{0}', space=smem, size = 0x200, scoped, tag = 'input window, operand 19, single buffered']
    #allocation3 [shape = 's32[2]{0}', space=sflag, size = 0x8, scoped, tag = 'scoped memory for forward.3']
    #allocation4 [shape = 's32[2]{0}', space=sflag, size = 0x8, scoped, tag = 'scoped memory for forward.3']
    #allocation5 [shape = 'u8[512]{0}', space=smem, size = 0x200, scoped, tag = 'input window, operand 20, single buffered']
    #allocation6 [shape = 's32[1]{0}', space=sflag, size = 0x4, scoped, tag = 'scoped memory for forward.3']
    #allocation7 [shape = 'u8[1024]{0}', space=vmem, size = 0x400, scoped, tag = 'output window, operand 0']
    %26 = vsyncpa [#allocation4], 0
    %27 = vsyncpa [#allocation6], 0
    %28 = vsyncpa [#allocation3], 0
    %s29 = scalar_lea.sflag [#allocation3], 1
    %30 = vsyncpa %s29, 0
    loop: start=0, step=1, limit=4
    $region2: #{forward.3} parent=1 // loop_pre_header
      _
    $region3: #{forward.3} parent=1 // loop_header
      %s32 = sphi 0, %s36
      %p33 = scmp.ge.s32.totalorder %s32, 4
      %s42 = sphi 0, %s44
      %s45 = sphi 0, %s42
      %s46 = sphi 0, %s45
      %s62 = sphi 0, %s46
      %s66 = sphi 0, %s66
      %s68 = sphi 0, %s66
      %s69 = sphi 0, %s68
      %s83 = sphi 0, %s69
      %s87 = sphi 0, %s87
      %s89 = sphi 0, %s87
      %s90 = sphi 0, %s89
      %s104 = sphi 0, %s90
      %s108 = sphi 0, %s108
      %s110 = sphi 0, %s108
      %s111 = sphi 0, %s110
      %s125 = sphi 0, %s111
      %s129 = sphi 0, %s129
      %s131 = sphi 0, %s129
      %s132 = sphi 0, %s131
      %s146 = sphi 0, %s132
      %s150 = sphi 0, %s150
      %s152 = sphi 0, %s150
      %s153 = sphi 0, %s152
      %s167 = sphi 0, %s153
      %s171 = sphi 0, %s171
      %s173 = sphi 0, %s171
      %s174 = sphi 0, %s173
      %s188 = sphi 0, %s174
      %s192 = sphi 0, %s192
      %s194 = sphi 0, %s192
      %s195 = sphi 0, %s194
      %s209 = sphi 0, %s195
      %s213 = sphi 0, %s213
      %s215 = sphi 0, %s213
      %s216 = sphi 0, %s215
      %s230 = sphi 0, %s216
      %s234 = sphi 0, %s234
      %s236 = sphi 0, %s234
      %s237 = sphi 0, %s236
      %s251 = sphi 0, %s237
      %s255 = sphi 0, %s255
      %s257 = sphi 0, %s255
      %s258 = sphi 0, %s257
      %s272 = sphi 0, %s258
      %s276 = sphi 0, %s276
      %s278 = sphi 0, %s276
      %s279 = sphi 0, %s278
      %s293 = sphi 0, %s279
      %s297 = sphi 0, %s297
      %s299 = sphi 0, %s297
      %s300 = sphi 0, %s299
      %s314 = sphi 0, %s300
      %s318 = sphi 0, %s318
      %s320 = sphi 0, %s318
      %s321 = sphi 0, %s320
      %s335 = sphi 0, %s321
      %s339 = sphi 0, %s339
      %s341 = sphi 0, %s339
      %s342 = sphi 0, %s341
      %s356 = sphi 0, %s342
      %s360 = sphi 0, %s360
      %s362 = sphi 0, %s360
      %s363 = sphi 0, %s362
      %s377 = sphi 0, %s363
      %s381 = sphi 0, %s381
      %s383 = sphi 0, %s381
      %s384 = sphi 0, %s383
      %s398 = sphi 0, %s384
      %s402 = sphi 0, %s402
      %s404 = sphi 0, %s402
      %s405 = sphi 0, %s404
      %s419 = sphi 0, %s405
      %s423 = sphi 0, %s423
      %s425 = sphi 0, %s423
      %s426 = sphi 0, %s425
      %s440 = sphi 0, %s426
      %s444 = sphi 0, %s444
      %s446 = sphi 0, %s444
      %s447 = sphi 0, %s446
      %s461 = sphi 0, %s447
      %s465 = sphi 0, %s465
      %s467 = sphi 0, %s465
      %s468 = sphi 0, %s467
      %s482 = sphi 0, %s468
      %s488 = sphi 0, %s490
      %s491 = sphi 0, %s488
      %s492 = sphi 0, %s491
      %s508 = sphi 0, %s492
    $region4: #{forward.3} parent=1 // loop_header_branch
      %35 = sbr.rel (%p33) target = $region8
    $region5: #{forward.3} parent=1 // loop_body
      %s37 = ssub.s32 %s32, 1
      %s38 = ssub.s32 %s32, 2
      %s39 = sadd.s32 %s32, 1
      %s40 = ssub.s32 %s32, %s39
      %p41 = scmp.eq.s32.totalorder %s40, 0
      %s43 = sadd.s32 %s42, 1
      %s44 = scalar_select %p41, %s42, %s43
      %p47 = pneg %p41
      %p48 = scmp.eq.s32.totalorder %s32, 1
      %p49 = por %p47, %p48
      %p50 = scmp.ne.s32.totalorder %s42, %s45
      %p51 = scmp.eq.s32.totalorder %s32, 0
      %p52 = por %p50, %p51
      %p53 = scmp.ne.s32.totalorder %s42, %s45
      %p54 = scmp.eq.s32.totalorder %s37, 1
      %p55 = por %p53, %p54
      %p56 = scmp.ne.s32.totalorder %s45, %s46
      %p57 = scmp.eq.s32.totalorder %s37, 0
      %p58 = por %p56, %p57
      %p59 = scmp.ne.s32.totalorder %s45, %s46
      %p60 = scmp.eq.s32.totalorder %s38, 1
      %p61 = por %p59, %p60
      %p63 = scmp.ne.s32.totalorder %s46, %s62
      %p64 = scmp.eq.s32.totalorder %s38, 0
      %p65 = por %p63, %p64
      %s67 = sadd.s32 %s66, 1
      %p70 = scmp.eq.s32.totalorder %s32, 1
      %p71 = scmp.ne.s32.totalorder %s66, %s68
      %p72 = scmp.eq.s32.totalorder %s32, 0
      %p73 = por %p71, %p72
      %p74 = scmp.ne.s32.totalorder %s66, %s68
      %p75 = scmp.eq.s32.totalorder %s37, 1
      %p76 = por %p74, %p75
      %p77 = scmp.ne.s32.totalorder %s68, %s69
      %p78 = scmp.eq.s32.totalorder %s37, 0
      %p79 = por %p77, %p78
      %p80 = scmp.ne.s32.totalorder %s68, %s69
      %p81 = scmp.eq.s32.totalorder %s38, 1
      %p82 = por %p80, %p81
      %p84 = scmp.ne.s32.totalorder %s69, %s83
      %p85 = scmp.eq.s32.totalorder %s38, 0
      %p86 = por %p84, %p85
      %s88 = sadd.s32 %s87, 1
      %p91 = scmp.eq.s32.totalorder %s32, 1
      %p92 = scmp.ne.s32.totalorder %s87, %s89
      %p93 = scmp.eq.s32.totalorder %s32, 0
      %p94 = por %p92, %p93
      %p95 = scmp.ne.s32.totalorder %s87, %s89
      %p96 = scmp.eq.s32.totalorder %s37, 1
      %p97 = por %p95, %p96
      %p98 = scmp.ne.s32.totalorder %s89, %s90
      %p99 = scmp.eq.s32.totalorder %s37, 0
      %p100 = por %p98, %p99
      %p101 = scmp.ne.s32.totalorder %s89, %s90
      %p102 = scmp.eq.s32.totalorder %s38, 1
      %p103 = por %p101, %p102
      %p105 = scmp.ne.s32.totalorder %s90, %s104
      %p106 = scmp.eq.s32.totalorder %s38, 0
      %p107 = por %p105, %p106
      %s109 = sadd.s32 %s108, 1
      %p112 = scmp.eq.s32.totalorder %s32, 1
      %p113 = scmp.ne.s32.totalorder %s108, %s110
      %p114 = scmp.eq.s32.totalorder %s32, 0
      %p115 = por %p113, %p114
      %p116 = scmp.ne.s32.totalorder %s108, %s110
      %p117 = scmp.eq.s32.totalorder %s37, 1
      %p118 = por %p116, %p117
      %p119 = scmp.ne.s32.totalorder %s110, %s111
      %p120 = scmp.eq.s32.totalorder %s37, 0
      %p121 = por %p119, %p120
      %p122 = scmp.ne.s32.totalorder %s110, %s111
      %p123 = scmp.eq.s32.totalorder %s38, 1
      %p124 = por %p122, %p123
      %p126 = scmp.ne.s32.totalorder %s111, %s125
      %p127 = scmp.eq.s32.totalorder %s38, 0
      %p128 = por %p126, %p127
      %s130 = sadd.s32 %s129, 1
      %p133 = scmp.eq.s32.totalorder %s32, 1
      %p134 = scmp.ne.s32.totalorder %s129, %s131
      %p135 = scmp.eq.s32.totalorder %s32, 0
      %p136 = por %p134, %p135
      %p137 = scmp.ne.s32.totalorder %s129, %s131
      %p138 = scmp.eq.s32.totalorder %s37, 1
      %p139 = por %p137, %p138
      %p140 = scmp.ne.s32.totalorder %s131, %s132
      %p141 = scmp.eq.s32.totalorder %s37, 0
      %p142 = por %p140, %p141
      %p143 = scmp.ne.s32.totalorder %s131, %s132
      %p144 = scmp.eq.s32.totalorder %s38, 1
      %p145 = por %p143, %p144
      %p147 = scmp.ne.s32.totalorder %s132, %s146
      %p148 = scmp.eq.s32.totalorder %s38, 0
      %p149 = por %p147, %p148
      %s151 = sadd.s32 %s150, 1
      %p154 = scmp.eq.s32.totalorder %s32, 1
      %p155 = scmp.ne.s32.totalorder %s150, %s152
      %p156 = scmp.eq.s32.totalorder %s32, 0
      %p157 = por %p155, %p156
      %p158 = scmp.ne.s32.totalorder %s150, %s152
      %p159 = scmp.eq.s32.totalorder %s37, 1
      %p160 = por %p158, %p159
      %p161 = scmp.ne.s32.totalorder %s152, %s153
      %p162 = scmp.eq.s32.totalorder %s37, 0
      %p163 = por %p161, %p162
      %p164 = scmp.ne.s32.totalorder %s152, %s153
      %p165 = scmp.eq.s32.totalorder %s38, 1
      %p166 = por %p164, %p165
      %p168 = scmp.ne.s32.totalorder %s153, %s167
      %p169 = scmp.eq.s32.totalorder %s38, 0
      %p170 = por %p168, %p169
      %s172 = sadd.s32 %s171, 1
      %p175 = scmp.eq.s32.totalorder %s32, 1
      %p176 = scmp.ne.s32.totalorder %s171, %s173
      %p177 = scmp.eq.s32.totalorder %s32, 0
      %p178 = por %p176, %p177
      %p179 = scmp.ne.s32.totalorder %s171, %s173
      %p180 = scmp.eq.s32.totalorder %s37, 1
      %p181 = por %p179, %p180
      %p182 = scmp.ne.s32.totalorder %s173, %s174
      %p183 = scmp.eq.s32.totalorder %s37, 0
      %p184 = por %p182, %p183
      %p185 = scmp.ne.s32.totalorder %s173, %s174
      %p186 = scmp.eq.s32.totalorder %s38, 1
      %p187 = por %p185, %p186
      %p189 = scmp.ne.s32.totalorder %s174, %s188
      %p190 = scmp.eq.s32.totalorder %s38, 0
      %p191 = por %p189, %p190
      %s193 = sadd.s32 %s192, 1
      %p196 = scmp.eq.s32.totalorder %s32, 1
      %p197 = scmp.ne.s32.totalorder %s192, %s194
      %p198 = scmp.eq.s32.totalorder %s32, 0
      %p199 = por %p197, %p198
      %p200 = scmp.ne.s32.totalorder %s192, %s194
      %p201 = scmp.eq.s32.totalorder %s37, 1
      %p202 = por %p200, %p201
      %p203 = scmp.ne.s32.totalorder %s194, %s195
      %p204 = scmp.eq.s32.totalorder %s37, 0
      %p205 = por %p203, %p204
      %p206 = scmp.ne.s32.totalorder %s194, %s195
      %p207 = scmp.eq.s32.totalorder %s38, 1
      %p208 = por %p206, %p207
      %p210 = scmp.ne.s32.totalorder %s195, %s209
      %p211 = scmp.eq.s32.totalorder %s38, 0
      %p212 = por %p210, %p211
      %s214 = sadd.s32 %s213, 1
      %p217 = scmp.eq.s32.totalorder %s32, 1
      %p218 = scmp.ne.s32.totalorder %s213, %s215
      %p219 = scmp.eq.s32.totalorder %s32, 0
      %p220 = por %p218, %p219
      %p221 = scmp.ne.s32.totalorder %s213, %s215
      %p222 = scmp.eq.s32.totalorder %s37, 1
      %p223 = por %p221, %p222
      %p224 = scmp.ne.s32.totalorder %s215, %s216
      %p225 = scmp.eq.s32.totalorder %s37, 0
      %p226 = por %p224, %p225
      %p227 = scmp.ne.s32.totalorder %s215, %s216
      %p228 = scmp.eq.s32.totalorder %s38, 1
      %p229 = por %p227, %p228
      %p231 = scmp.ne.s32.totalorder %s216, %s230
      %p232 = scmp.eq.s32.totalorder %s38, 0
      %p233 = por %p231, %p232
      %s235 = sadd.s32 %s234, 1
      %p238 = scmp.eq.s32.totalorder %s32, 1
      %p239 = scmp.ne.s32.totalorder %s234, %s236
      %p240 = scmp.eq.s32.totalorder %s32, 0
      %p241 = por %p239, %p240
      %p242 = scmp.ne.s32.totalorder %s234, %s236
      %p243 = scmp.eq.s32.totalorder %s37, 1
      %p244 = por %p242, %p243
      %p245 = scmp.ne.s32.totalorder %s236, %s237
      %p246 = scmp.eq.s32.totalorder %s37, 0
      %p247 = por %p245, %p246
      %p248 = scmp.ne.s32.totalorder %s236, %s237
      %p249 = scmp.eq.s32.totalorder %s38, 1
      %p250 = por %p248, %p249
      %p252 = scmp.ne.s32.totalorder %s237, %s251
      %p253 = scmp.eq.s32.totalorder %s38, 0
      %p254 = por %p252, %p253
      %s256 = sadd.s32 %s255, 1
      %p259 = scmp.eq.s32.totalorder %s32, 1
      %p260 = scmp.ne.s32.totalorder %s255, %s257
      %p261 = scmp.eq.s32.totalorder %s32, 0
      %p262 = por %p260, %p261
      %p263 = scmp.ne.s32.totalorder %s255, %s257
      %p264 = scmp.eq.s32.totalorder %s37, 1
      %p265 = por %p263, %p264
      %p266 = scmp.ne.s32.totalorder %s257, %s258
      %p267 = scmp.eq.s32.totalorder %s37, 0
      %p268 = por %p266, %p267
      %p269 = scmp.ne.s32.totalorder %s257, %s258
      %p270 = scmp.eq.s32.totalorder %s38, 1
      %p271 = por %p269, %p270
      %p273 = scmp.ne.s32.totalorder %s258, %s272
      %p274 = scmp.eq.s32.totalorder %s38, 0
      %p275 = por %p273, %p274
      %s277 = sadd.s32 %s276, 1
      %p280 = scmp.eq.s32.totalorder %s32, 1
      %p281 = scmp.ne.s32.totalorder %s276, %s278
      %p282 = scmp.eq.s32.totalorder %s32, 0
      %p283 = por %p281, %p282
      %p284 = scmp.ne.s32.totalorder %s276, %s278
      %p285 = scmp.eq.s32.totalorder %s37, 1
      %p286 = por %p284, %p285
      %p287 = scmp.ne.s32.totalorder %s278, %s279
      %p288 = scmp.eq.s32.totalorder %s37, 0
      %p289 = por %p287, %p288
      %p290 = scmp.ne.s32.totalorder %s278, %s279
      %p291 = scmp.eq.s32.totalorder %s38, 1
      %p292 = por %p290, %p291
      %p294 = scmp.ne.s32.totalorder %s279, %s293
      %p295 = scmp.eq.s32.totalorder %s38, 0
      %p296 = por %p294, %p295
      %s298 = sadd.s32 %s297, 1
      %p301 = scmp.eq.s32.totalorder %s32, 1
      %p302 = scmp.ne.s32.totalorder %s297, %s299
      %p303 = scmp.eq.s32.totalorder %s32, 0
      %p304 = por %p302, %p303
      %p305 = scmp.ne.s32.totalorder %s297, %s299
      %p306 = scmp.eq.s32.totalorder %s37, 1
      %p307 = por %p305, %p306
      %p308 = scmp.ne.s32.totalorder %s299, %s300
      %p309 = scmp.eq.s32.totalorder %s37, 0
      %p310 = por %p308, %p309
      %p311 = scmp.ne.s32.totalorder %s299, %s300
      %p312 = scmp.eq.s32.totalorder %s38, 1
      %p313 = por %p311, %p312
      %p315 = scmp.ne.s32.totalorder %s300, %s314
      %p316 = scmp.eq.s32.totalorder %s38, 0
      %p317 = por %p315, %p316
      %s319 = sadd.s32 %s318, 1
      %p322 = scmp.eq.s32.totalorder %s32, 1
      %p323 = scmp.ne.s32.totalorder %s318, %s320
      %p324 = scmp.eq.s32.totalorder %s32, 0
      %p325 = por %p323, %p324
      %p326 = scmp.ne.s32.totalorder %s318, %s320
      %p327 = scmp.eq.s32.totalorder %s37, 1
      %p328 = por %p326, %p327
      %p329 = scmp.ne.s32.totalorder %s320, %s321
      %p330 = scmp.eq.s32.totalorder %s37, 0
      %p331 = por %p329, %p330
      %p332 = scmp.ne.s32.totalorder %s320, %s321
      %p333 = scmp.eq.s32.totalorder %s38, 1
      %p334 = por %p332, %p333
      %p336 = scmp.ne.s32.totalorder %s321, %s335
      %p337 = scmp.eq.s32.totalorder %s38, 0
      %p338 = por %p336, %p337
      %s340 = sadd.s32 %s339, 1
      %p343 = scmp.eq.s32.totalorder %s32, 1
      %p344 = scmp.ne.s32.totalorder %s339, %s341
      %p345 = scmp.eq.s32.totalorder %s32, 0
      %p346 = por %p344, %p345
      %p347 = scmp.ne.s32.totalorder %s339, %s341
      %p348 = scmp.eq.s32.totalorder %s37, 1
      %p349 = por %p347, %p348
      %p350 = scmp.ne.s32.totalorder %s341, %s342
      %p351 = scmp.eq.s32.totalorder %s37, 0
      %p352 = por %p350, %p351
      %p353 = scmp.ne.s32.totalorder %s341, %s342
      %p354 = scmp.eq.s32.totalorder %s38, 1
      %p355 = por %p353, %p354
      %p357 = scmp.ne.s32.totalorder %s342, %s356
      %p358 = scmp.eq.s32.totalorder %s38, 0
      %p359 = por %p357, %p358
      %s361 = sadd.s32 %s360, 1
      %p364 = scmp.eq.s32.totalorder %s32, 1
      %p365 = scmp.ne.s32.totalorder %s360, %s362
      %p366 = scmp.eq.s32.totalorder %s32, 0
      %p367 = por %p365, %p366
      %p368 = scmp.ne.s32.totalorder %s360, %s362
      %p369 = scmp.eq.s32.totalorder %s37, 1
      %p370 = por %p368, %p369
      %p371 = scmp.ne.s32.totalorder %s362, %s363
      %p372 = scmp.eq.s32.totalorder %s37, 0
      %p373 = por %p371, %p372
      %p374 = scmp.ne.s32.totalorder %s362, %s363
      %p375 = scmp.eq.s32.totalorder %s38, 1
      %p376 = por %p374, %p375
      %p378 = scmp.ne.s32.totalorder %s363, %s377
      %p379 = scmp.eq.s32.totalorder %s38, 0
      %p380 = por %p378, %p379
      %s382 = sadd.s32 %s381, 1
      %p385 = scmp.eq.s32.totalorder %s32, 1
      %p386 = scmp.ne.s32.totalorder %s381, %s383
      %p387 = scmp.eq.s32.totalorder %s32, 0
      %p388 = por %p386, %p387
      %p389 = scmp.ne.s32.totalorder %s381, %s383
      %p390 = scmp.eq.s32.totalorder %s37, 1
      %p391 = por %p389, %p390
      %p392 = scmp.ne.s32.totalorder %s383, %s384
      %p393 = scmp.eq.s32.totalorder %s37, 0
      %p394 = por %p392, %p393
      %p395 = scmp.ne.s32.totalorder %s383, %s384
      %p396 = scmp.eq.s32.totalorder %s38, 1
      %p397 = por %p395, %p396
      %p399 = scmp.ne.s32.totalorder %s384, %s398
      %p400 = scmp.eq.s32.totalorder %s38, 0
      %p401 = por %p399, %p400
      %s403 = sadd.s32 %s402, 1
      %p406 = scmp.eq.s32.totalorder %s32, 1
      %p407 = scmp.ne.s32.totalorder %s402, %s404
      %p408 = scmp.eq.s32.totalorder %s32, 0
      %p409 = por %p407, %p408
      %p410 = scmp.ne.s32.totalorder %s402, %s404
      %p411 = scmp.eq.s32.totalorder %s37, 1
      %p412 = por %p410, %p411
      %p413 = scmp.ne.s32.totalorder %s404, %s405
      %p414 = scmp.eq.s32.totalorder %s37, 0
      %p415 = por %p413, %p414
      %p416 = scmp.ne.s32.totalorder %s404, %s405
      %p417 = scmp.eq.s32.totalorder %s38, 1
      %p418 = por %p416, %p417
      %p420 = scmp.ne.s32.totalorder %s405, %s419
      %p421 = scmp.eq.s32.totalorder %s38, 0
      %p422 = por %p420, %p421
      %s424 = sadd.s32 %s423, 1
      %p427 = scmp.eq.s32.totalorder %s32, 1
      %p428 = scmp.ne.s32.totalorder %s423, %s425
      %p429 = scmp.eq.s32.totalorder %s32, 0
      %p430 = por %p428, %p429
      %p431 = scmp.ne.s32.totalorder %s423, %s425
      %p432 = scmp.eq.s32.totalorder %s37, 1
      %p433 = por %p431, %p432
      %p434 = scmp.ne.s32.totalorder %s425, %s426
      %p435 = scmp.eq.s32.totalorder %s37, 0
      %p436 = por %p434, %p435
      %p437 = scmp.ne.s32.totalorder %s425, %s426
      %p438 = scmp.eq.s32.totalorder %s38, 1
      %p439 = por %p437, %p438
      %p441 = scmp.ne.s32.totalorder %s426, %s440
      %p442 = scmp.eq.s32.totalorder %s38, 0
      %p443 = por %p441, %p442
      %s445 = sadd.s32 %s444, 1
      %p448 = scmp.eq.s32.totalorder %s32, 1
      %p449 = scmp.ne.s32.totalorder %s444, %s446
      %p450 = scmp.eq.s32.totalorder %s32, 0
      %p451 = por %p449, %p450
      %p452 = scmp.ne.s32.totalorder %s444, %s446
      %p453 = scmp.eq.s32.totalorder %s37, 1
      %p454 = por %p452, %p453
      %p455 = scmp.ne.s32.totalorder %s446, %s447
      %p456 = scmp.eq.s32.totalorder %s37, 0
      %p457 = por %p455, %p456
      %p458 = scmp.ne.s32.totalorder %s446, %s447
      %p459 = scmp.eq.s32.totalorder %s38, 1
      %p460 = por %p458, %p459
      %p462 = scmp.ne.s32.totalorder %s447, %s461
      %p463 = scmp.eq.s32.totalorder %s38, 0
      %p464 = por %p462, %p463
      %s466 = sadd.s32 %s465, 1
      %p469 = scmp.eq.s32.totalorder %s32, 1
      %p470 = scmp.ne.s32.totalorder %s465, %s467
      %p471 = scmp.eq.s32.totalorder %s32, 0
      %p472 = por %p470, %p471
      %p473 = scmp.ne.s32.totalorder %s465, %s467
      %p474 = scmp.eq.s32.totalorder %s37, 1
      %p475 = por %p473, %p474
      %p476 = scmp.ne.s32.totalorder %s467, %s468
      %p477 = scmp.eq.s32.totalorder %s37, 0
      %p478 = por %p476, %p477
      %p479 = scmp.ne.s32.totalorder %s467, %s468
      %p480 = scmp.eq.s32.totalorder %s38, 1
      %p481 = por %p479, %p480
      %p483 = scmp.ne.s32.totalorder %s468, %s482
      %p484 = scmp.eq.s32.totalorder %s38, 0
      %p485 = por %p483, %p484
      %s486 = ssub.s32 %s32, %s39
      %p487 = scmp.eq.s32.totalorder %s486, 0
      %s489 = sadd.s32 %s488, 1
      %s490 = scalar_select %p487, %s488, %s489
      %p493 = pneg %p487
      %p494 = scmp.eq.s32.totalorder %s32, 1
      %p495 = por %p493, %p494
      %p496 = scmp.ne.s32.totalorder %s488, %s491
      %p497 = scmp.eq.s32.totalorder %s32, 0
      %p498 = por %p496, %p497
      %p499 = scmp.ne.s32.totalorder %s488, %s491
      %p500 = scmp.eq.s32.totalorder %s37, 1
      %p501 = por %p499, %p500
      %p502 = scmp.ne.s32.totalorder %s491, %s492
      %p503 = scmp.eq.s32.totalorder %s37, 0
      %p504 = por %p502, %p503
      %p505 = scmp.ne.s32.totalorder %s491, %s492
      %p506 = scmp.eq.s32.totalorder %s38, 1
      %p507 = por %p505, %p506
      %p509 = scmp.ne.s32.totalorder %s492, %s508
      %p510 = scmp.eq.s32.totalorder %s38, 0
      %p511 = por %p509, %p510
      %p512 = scmp.le.s32.totalorder 1, %s32
      %p513 = scmp.lt.s32.totalorder %s32, 3
      %p514 = pnand %p512, %p513
      %p515 = pneg %p514
      // Predicated region
      $region9: #{forward.3} parent=5 // pred_check
        _
      $region10: #{forward.3} parent=5 // pred_check_branch
        %517 = sbr.rel (%p514) target = $region12
      $region11: #{forward.3} parent=5 // pred_region
        %s518 = ssub.s32 %s32, 1
        // Predicated region
        $region13: #{forward.3} parent=11 // pred_check
          %p519 = pneg %p79
        $region14: #{forward.3} parent=11 // pred_check_branch
          %521 = sbr.rel (%p519) target = $region16
        $region15: #{forward.3} parent=11 // pred_region
          _
        $region16: #{forward.3} parent=11 // pred_fallthru
          _
        // Predicated region
        $region17: #{forward.3} parent=11 // pred_check
          %p522 = pneg %p100
        $region18: #{forward.3} parent=11 // pred_check_branch
          %524 = sbr.rel (%p522) target = $region20
        $region19: #{forward.3} parent=11 // pred_region
          _
        $region20: #{forward.3} parent=11 // pred_fallthru
          _
        // Predicated region
        $region21: #{forward.3} parent=11 // pred_check
          %p525 = pneg %p121
        $region22: #{forward.3} parent=11 // pred_check_branch
          %527 = sbr.rel (%p525) target = $region24
        $region23: #{forward.3} parent=11 // pred_region
          _
        $region24: #{forward.3} parent=11 // pred_fallthru
          _
        // Predicated region
        $region25: #{forward.3} parent=11 // pred_check
          %p528 = pneg %p142
        $region26: #{forward.3} parent=11 // pred_check_branch
          %530 = sbr.rel (%p528) target = $region28
        $region27: #{forward.3} parent=11 // pred_region
          _
        $region28: #{forward.3} parent=11 // pred_fallthru
          _
        // Predicated region
        $region29: #{forward.3} parent=11 // pred_check
          %p531 = pneg %p163
        $region30: #{forward.3} parent=11 // pred_check_branch
          %533 = sbr.rel (%p531) target = $region32
        $region31: #{forward.3} parent=11 // pred_region
          _
        $region32: #{forward.3} parent=11 // pred_fallthru
          _
        // Predicated region
        $region33: #{forward.3} parent=11 // pred_check
          %p534 = pneg %p184
        $region34: #{forward.3} parent=11 // pred_check_branch
          %536 = sbr.rel (%p534) target = $region36
        $region35: #{forward.3} parent=11 // pred_region
          _
        $region36: #{forward.3} parent=11 // pred_fallthru
          _
        // Predicated region
        $region37: #{forward.3} parent=11 // pred_check
          %p537 = pneg %p205
        $region38: #{forward.3} parent=11 // pred_check_branch
          %539 = sbr.rel (%p537) target = $region40
        $region39: #{forward.3} parent=11 // pred_region
          _
        $region40: #{forward.3} parent=11 // pred_fallthru
          _
        // Predicated region
        $region41: #{forward.3} parent=11 // pred_check
          %p540 = pneg %p226
        $region42: #{forward.3} parent=11 // pred_check_branch
          %542 = sbr.rel (%p540) target = $region44
        $region43: #{forward.3} parent=11 // pred_region
          _
        $region44: #{forward.3} parent=11 // pred_fallthru
          _
        // Predicated region
        $region45: #{forward.3} parent=11 // pred_check
          %p543 = pneg %p247
        $region46: #{forward.3} parent=11 // pred_check_branch
          %545 = sbr.rel (%p543) target = $region48
        $region47: #{forward.3} parent=11 // pred_region
          _
        $region48: #{forward.3} parent=11 // pred_fallthru
          _
        // Predicated region
        $region49: #{forward.3} parent=11 // pred_check
          %p546 = pneg %p268
        $region50: #{forward.3} parent=11 // pred_check_branch
          %548 = sbr.rel (%p546) target = $region52
        $region51: #{forward.3} parent=11 // pred_region
          _
        $region52: #{forward.3} parent=11 // pred_fallthru
          _
        // Predicated region
        $region53: #{forward.3} parent=11 // pred_check
          %p549 = pneg %p289
        $region54: #{forward.3} parent=11 // pred_check_branch
          %551 = sbr.rel (%p549) target = $region56
        $region55: #{forward.3} parent=11 // pred_region
          _
        $region56: #{forward.3} parent=11 // pred_fallthru
          _
        // Predicated region
        $region57: #{forward.3} parent=11 // pred_check
          %p552 = pneg %p310
        $region58: #{forward.3} parent=11 // pred_check_branch
          %554 = sbr.rel (%p552) target = $region60
        $region59: #{forward.3} parent=11 // pred_region
          _
        $region60: #{forward.3} parent=11 // pred_fallthru
          _
        // Predicated region
        $region61: #{forward.3} parent=11 // pred_check
          %p555 = pneg %p331
        $region62: #{forward.3} parent=11 // pred_check_branch
          %557 = sbr.rel (%p555) target = $region64
        $region63: #{forward.3} parent=11 // pred_region
          _
        $region64: #{forward.3} parent=11 // pred_fallthru
          _
        // Predicated region
        $region65: #{forward.3} parent=11 // pred_check
          %p558 = pneg %p352
        $region66: #{forward.3} parent=11 // pred_check_branch
          %560 = sbr.rel (%p558) target = $region68
        $region67: #{forward.3} parent=11 // pred_region
          _
        $region68: #{forward.3} parent=11 // pred_fallthru
          _
        // Predicated region
        $region69: #{forward.3} parent=11 // pred_check
          %p561 = pneg %p373
        $region70: #{forward.3} parent=11 // pred_check_branch
          %563 = sbr.rel (%p561) target = $region72
        $region71: #{forward.3} parent=11 // pred_region
          _
        $region72: #{forward.3} parent=11 // pred_fallthru
          _
        // Predicated region
        $region73: #{forward.3} parent=11 // pred_check
          %p564 = pneg %p394
        $region74: #{forward.3} parent=11 // pred_check_branch
          %566 = sbr.rel (%p564) target = $region76
        $region75: #{forward.3} parent=11 // pred_region
          _
        $region76: #{forward.3} parent=11 // pred_fallthru
          _
        // Predicated region
        $region77: #{forward.3} parent=11 // pred_check
          %p567 = pneg %p415
        $region78: #{forward.3} parent=11 // pred_check_branch
          %569 = sbr.rel (%p567) target = $region80
        $region79: #{forward.3} parent=11 // pred_region
          _
        $region80: #{forward.3} parent=11 // pred_fallthru
          _
        // Predicated region
        $region81: #{forward.3} parent=11 // pred_check
          %p570 = pneg %p436
        $region82: #{forward.3} parent=11 // pred_check_branch
          %572 = sbr.rel (%p570) target = $region84
        $region83: #{forward.3} parent=11 // pred_region
          _
        $region84: #{forward.3} parent=11 // pred_fallthru
          _
        // Predicated region
        $region85: #{forward.3} parent=11 // pred_check
          %p573 = pneg %p457
        $region86: #{forward.3} parent=11 // pred_check_branch
          %575 = sbr.rel (%p573) target = $region88
        $region87: #{forward.3} parent=11 // pred_region
          %s577 = ssub.s32 16, 16
          %578 = vsyncadd [#allocation4], %s577
          %s580 = sshll.u32 %s19, 4
          %s581 = int_to_ptr.vmem [resolvable:$true] %s580
          %583 = dma.vmem_to_smem %s581, 16, [#allocation2], [#allocation4]
        $region88: #{forward.3} parent=11 // pred_fallthru
          _
        // Predicated region
        $region89: #{forward.3} parent=11 // pred_check
          %p584 = pneg %p478
        $region90: #{forward.3} parent=11 // pred_check_branch
          %586 = sbr.rel (%p584) target = $region92
        $region91: #{forward.3} parent=11 // pred_region
          %s588 = ssub.s32 16, 16
          %589 = vsyncadd [#allocation6], %s588
          %s591 = sshll.u32 %s20, 4
          %s592 = int_to_ptr.vmem [resolvable:$true] %s591
          %594 = dma.vmem_to_smem %s592, 16, [#allocation5], [#allocation6]
        $region92: #{forward.3} parent=11 // pred_fallthru
          _
      $region12: #{forward.3} parent=5 // pred_fallthru
        _
      %p595 = scmp.lt.s32.totalorder %s32, 2
      // Predicated region
      $region93: #{forward.3} parent=5 // pred_check
        %p596 = pneg %p595
      $region94: #{forward.3} parent=5 // pred_check_branch
        %598 = sbr.rel (%p596) target = $region96
      $region95: #{forward.3} parent=5 // pred_region
        // Predicated region
        $region97: #{forward.3} parent=95 // pred_check
          %p599 = pneg %p52
        $region98: #{forward.3} parent=95 // pred_check_branch
          %601 = sbr.rel (%p599) target = $region100
        $region99: #{forward.3} parent=95 // pred_region
          %p602 = scmp.lt.s32.totalorder %s32, 1
          %s603 = scalar_select %p602, %s32, 1
          %s604 = smul.addr %s603, 8
          %s605 = scalar_lea.vmem %s0, %s604
        $region100: #{forward.3} parent=95 // pred_fallthru
          _
      $region96: #{forward.3} parent=5 // pred_fallthru
        _
      %p606 = scmp.le.s32.totalorder 1, %s32
      %p607 = scmp.lt.s32.totalorder %s32, 3
      %p608 = pnand %p606, %p607
      %p609 = pneg %p608
      // Predicated region
      $region101: #{forward.3} parent=5 // pred_check
        _
      $region102: #{forward.3} parent=5 // pred_check_branch
        %611 = sbr.rel (%p608) target = $region104
      $region103: #{forward.3} parent=5 // pred_region
        %s612 = ssub.s32 %s32, 1
        // Predicated region
        $region105: #{forward.3} parent=103 // pred_check
          %p613 = pneg %p457
        $region106: #{forward.3} parent=103 // pred_check_branch
          %615 = sbr.rel (%p613) target = $region108
        $region107: #{forward.3} parent=103 // pred_region
          %616 = dma.done [#allocation4], 16
        $region108: #{forward.3} parent=103 // pred_fallthru
          _
        // Predicated region
        $region109: #{forward.3} parent=103 // pred_check
          %p617 = pneg %p478
        $region110: #{forward.3} parent=103 // pred_check_branch
          %619 = sbr.rel (%p617) target = $region112
        $region111: #{forward.3} parent=103 // pred_region
          %620 = dma.done [#allocation6], 16
        $region112: #{forward.3} parent=103 // pred_fallthru
          _
        %621 = sfence
        %p622 = scmp.lt.s32.totalorder %s37, 1
        %s623 = scalar_select %p622, %s37, 1
        %s624 = smul.addr %s623, 8
        %s625 = scalar_lea.vmem %s0, %s624
        %p626 = pneg %p58
        %p627 = pneg %p55
        %p628 = pneg %p79
        %p629 = pneg %p76
        %p630 = pneg %p100
        %p631 = pneg %p97
        %p632 = pneg %p121
        %p633 = pneg %p118
        %p634 = pneg %p142
        %p635 = pneg %p139
        %p636 = pneg %p163
        %p637 = pneg %p160
        %p638 = pneg %p184
        %p639 = pneg %p181
        %p640 = pneg %p205
        %p641 = pneg %p202
        %p642 = pneg %p226
        %p643 = pneg %p223
        %p644 = pneg %p247
        %p645 = pneg %p244
        %p646 = pneg %p268
        %p647 = pneg %p265
        %p648 = pneg %p289
        %p649 = pneg %p286
        %p650 = pneg %p310
        %p651 = pneg %p307
        %p652 = pneg %p331
        %p653 = pneg %p328
        %p654 = pneg %p352
        %p655 = pneg %p349
        %p656 = pneg %p373
        %p657 = pneg %p370
        %p658 = pneg %p394
        %p659 = pneg %p391
        %p660 = pneg %p415
        %p661 = pneg %p412
        %p662 = pneg %p436
        %p663 = pneg %p433
        %p664 = pneg %p457
        %p665 = pneg %p454
        %p666 = pneg %p478
        %p667 = pneg %p475
        %p668 = pneg %p504
        %p669 = pneg %p501
        %s670 = sand.u32 %s491, 1
        %s671 = scalar_lea.sflag [#allocation3], %s670
        %s672 = sand.u32 %s491, 1
        %s673 = scalar_lea.vmem [#allocation7], %s672
        %p674 = scmp.lt.s32.totalorder %s37, 1
        %s675 = scalar_select %p674, %s37, 1
        %s676 = smul.addr %s675, 8
        %s677 = scalar_lea.vmem %s0, %s676
        %v678 = vld [vmem:[%s677] sm:$0x1f]
        %v679 = vld [vmem:[%s1] sm:$0xff]
        %v680 = vld [vmem:[%s1 + $0x8] sm:$0xff]
        %v681 = vld [vmem:[%s3] sm:$0x1]
        %v682 = vld [vmem:[%s4] sm:$0x1]
        %vm683 = vcmask 126976
        %v684 = vsel %vm683, %v678, 0.0
        %685 = vadd.xlane.f32.xlu0 %v684
        %v686 = vpop.xlane.xlu0 %685
        %v687 = vrcp.pop 16.0
        %v688 = vmul.f32 %v686, %v687
        %v689 = vsub.f32 %v678, %v688
        %v690 = vmul.f32 %v689, %v689
        %v691 = vsel %vm683, %v690, 0.0
        %692 = vadd.xlane.f32.xlu0 %v691
        %v693 = vpop.xlane.xlu0 %692
        %v694 = vmul.f32 %v693, %v687
        %v695 = vadd.f32 %v694, 1e-06
        %v696 = vrsqrt.pop %v695
        %v697 = vmul.f32 %v689, %v696
        %v699 = vlaneseq
        %v700 = vshrl.u32 %v699, 7
        %v701 = vsub.s32 0, %v700
        %v702 = vrot.slane %v681, %v701
        %v704 = vmul.f32 %v697, %v702
        %v706 = vlaneseq
        %v707 = vshrl.u32 %v706, 7
        %v708 = vsub.s32 0, %v707
        %v709 = vrot.slane %v682, %v708
        %v711 = vadd.f32 %v704, %v709
        %v712 = vld [vmem:[%s5] sm:$0xff]
        %v713 = vld [vmem:[%s5 + $0x8] sm:$0xff]
        %v714 = vld [vmem:[%s6] sm:$0x1]
        %v716 = vlaneseq
        %v717 = vshrl.u32 %v716, 7
        %v718 = vsub.s32 0, %v717
        %v719 = vrot.slane %v714, %v718
        %vm721 = vcmask 130048
        %v723 = vsel %vm721, %v711, 0
        %725 = vmatprep.subr.mxu0 0.0
        %726 = vmatpush1.msra.mxu0 %v712
        %727 = vmatprep.subr.mxu0 0.0
        %728 = vmatpush1.msra.mxu0 %v713
        %729 = vmatprep.subr.mxu0 0.0
        %730 = vmatpush1.msra.mxu0 0.0
        %731 = vmatprep.subr.mxu0 0.0
        %732 = vmatpush1.msra.mxu0 0.0
        %733 = vmatprep.subr.mxu0 0.0
        %734 = vmatpush1.msra.mxu0 0.0
        %735 = vmatprep.subr.mxu0 0.0
        %736 = vmatpush1.msra.mxu0 0.0
        %737 = vmatprep.subr.mxu0 0.0
        %738 = vmatpush1.msra.mxu0 0.0
        %739 = vmatprep.subr.mxu0 0.0
        %740 = vmatpush1.msra.mxu0 0.0
        %741 = vmatprep.subr.mxu0 0.0
        %742 = vmatpush1.msra.mxu0 0.0
        %743 = vmatprep.subr.mxu0 0.0
        %744 = vmatpush1.msra.mxu0 0.0
        %745 = vmatprep.subr.mxu0 0.0
        %746 = vmatpush1.msra.mxu0 0.0
        %747 = vmatprep.subr.mxu0 0.0
        %748 = vmatpush1.msra.mxu0 0.0
        %749 = vmatprep.subr.mxu0 0.0
        %750 = vmatpush1.msra.mxu0 0.0
        %751 = vmatprep.subr.mxu0 0.0
        %752 = vmatpush1.msra.mxu0 0.0
        %753 = vmatprep.subr.mxu0 0.0
        %754 = vmatpush1.msra.mxu0 0.0
        %755 = vmatprep.subr.mxu0 0.0
        %756 = vmatpush1.msra.mxu0 0.0
        %757 = vmatprep.subr.mxu0 0.0
        %758 = vmatpush1.msra.mxu0 0.0
        %759 = vmatprep.subr.mxu0 0.0
        %760 = vmatpush1.msra.mxu0 0.0
        %761 = vmatprep.subr.mxu0 0.0
        %762 = vmatpush1.msra.mxu0 0.0
        %763 = vmatprep.subr.mxu0 0.0
        %764 = vmatpush1.msra.mxu0 0.0
        %765 = vmatprep.subr.mxu0 0.0
        %766 = vmatpush1.msra.mxu0 0.0
        %767 = vmatprep.subr.mxu0 0.0
        %768 = vmatpush1.msra.mxu0 0.0
        %769 = vmatprep.subr.mxu0 0.0
        %770 = vmatpush1.msra.mxu0 0.0
        %771 = vmatprep.subr.mxu0 0.0
        %772 = vmatpush1.msra.mxu0 0.0
        %773 = vmatprep.subr.mxu0 0.0
        %774 = vmatpush1.msra.mxu0 0.0
        %775 = vmatprep.subr.mxu0 0.0
        %776 = vmatpush1.msra.mxu0 0.0
        %777 = vmatprep.subr.mxu0 0.0
        %778 = vmatpush1.msra.mxu0 0.0
        %779 = vmatprep.subr.mxu0 0.0
        %780 = vmatpush1.msra.mxu0 0.0
        %781 = vmatprep.subr.mxu0 0.0
        %782 = vmatpush1.msra.mxu0 0.0
        %783 = vmatprep.subr.mxu0 0.0
        %784 = vmatpush1.msra.mxu0 0.0
        %785 = vmatprep.subr.mxu0 0.0
        %786 = vmatpush1.msra.mxu0 0.0
        %787 = vmatprep.subr.mxu0 0.0
        %788 = vmatpush1.msra.mxu0 0.0
        %789 = vmatprep.mubr.f32.mxu0 0.0
        %790 = vmatmul.mubr.f32.gmra.mrb[0].mxu0 %v723
        %v791 = vpop.f32.mrb[0].mxu0
        %v792 = vadd.f32 %v719, %v791
        %v793 = vpop.f32.mrb[0].mxu0
        %794 = vdwg.mxu0
        %v795 = vmul.f32 %v792, %v792
        %v796 = vld [vmem:[%s2] sm:$0xf]
        %v798 = vsel %vm721, %v795, 0
        %800 = vmatprep.subr.mxu0 0.0
        %801 = vmatpush1.msra.mxu0 %v679
        %802 = vmatprep.subr.mxu0 0.0
        %803 = vmatpush1.msra.mxu0 %v680
        %804 = vmatprep.subr.mxu0 0.0
        %805 = vmatpush1.msra.mxu0 0.0
        %806 = vmatprep.subr.mxu0 0.0
        %807 = vmatpush1.msra.mxu0 0.0
        %808 = vmatprep.subr.mxu0 0.0
        %809 = vmatpush1.msra.mxu0 0.0
        %810 = vmatprep.subr.mxu0 0.0
        %811 = vmatpush1.msra.mxu0 0.0
        %812 = vmatprep.subr.mxu0 0.0
        %813 = vmatpush1.msra.mxu0 0.0
        %814 = vmatprep.subr.mxu0 0.0
        %815 = vmatpush1.msra.mxu0 0.0
        %816 = vmatprep.subr.mxu0 0.0
        %817 = vmatpush1.msra.mxu0 0.0
        %818 = vmatprep.subr.mxu0 0.0
        %819 = vmatpush1.msra.mxu0 0.0
        %820 = vmatprep.subr.mxu0 0.0
        %821 = vmatpush1.msra.mxu0 0.0
        %822 = vmatprep.subr.mxu0 0.0
        %823 = vmatpush1.msra.mxu0 0.0
        %824 = vmatprep.subr.mxu0 0.0
        %825 = vmatpush1.msra.mxu0 0.0
        %826 = vmatprep.subr.mxu0 0.0
        %827 = vmatpush1.msra.mxu0 0.0
        %828 = vmatprep.subr.mxu0 0.0
        %829 = vmatpush1.msra.mxu0 0.0
        %830 = vmatprep.subr.mxu0 0.0
        %831 = vmatpush1.msra.mxu0 0.0
        %832 = vmatprep.subr.mxu0 0.0
        %833 = vmatpush1.msra.mxu0 0.0
        %834 = vmatprep.subr.mxu0 0.0
        %835 = vmatpush1.msra.mxu0 0.0
        %836 = vmatprep.subr.mxu0 0.0
        %837 = vmatpush1.msra.mxu0 0.0
        %838 = vmatprep.subr.mxu0 0.0
        %839 = vmatpush1.msra.mxu0 0.0
        %840 = vmatprep.subr.mxu0 0.0
        %841 = vmatpush1.msra.mxu0 0.0
        %842 = vmatprep.subr.mxu0 0.0
        %843 = vmatpush1.msra.mxu0 0.0
        %844 = vmatprep.subr.mxu0 0.0
        %845 = vmatpush1.msra.mxu0 0.0
        %846 = vmatprep.subr.mxu0 0.0
        %847 = vmatpush1.msra.mxu0 0.0
        %848 = vmatprep.subr.mxu0 0.0
        %849 = vmatpush1.msra.mxu0 0.0
        %850 = vmatprep.subr.mxu0 0.0
        %851 = vmatpush1.msra.mxu0 0.0
        %852 = vmatprep.subr.mxu0 0.0
        %853 = vmatpush1.msra.mxu0 0.0
        %854 = vmatprep.subr.mxu0 0.0
        %855 = vmatpush1.msra.mxu0 0.0
        %856 = vmatprep.subr.mxu0 0.0
        %857 = vmatpush1.msra.mxu0 0.0
        %858 = vmatprep.subr.mxu0 0.0
        %859 = vmatpush1.msra.mxu0 0.0
        %860 = vmatprep.subr.mxu0 0.0
        %861 = vmatpush1.msra.mxu0 0.0
        %862 = vmatprep.subr.mxu0 0.0
        %863 = vmatpush1.msra.mxu0 0.0
        %864 = vmatprep.mubr.f32.mxu0 0.0
        %865 = vmatmul.mubr.f32.gmra.mrb[0].mxu0 %v798
        %v866 = vpop.f32.mrb[0].mxu0
        %v867 = vadd.f32 1e-12, %v866
        %v868 = vpop.f32.mrb[0].mxu0
        %869 = vdwg.mxu0
        %v870 = vrcp.pop %v867
        %v871 = vmul.f32 1.0, %v870
        %872 = vrot.lane.b32.xlu0 %v795, 112
        %v873 = vpop.permute.xlu0 %872
        %v875 = vsel %vm721, %v796, 0
        %v877 = vsel %vm721, %v873, 0
        %879 = vmatprep.subr.mxu0 0.0
        %880 = vmatpush1.xpose.msra.mxu0 %v877
        %881 = vmatprep.subr.mxu0 0.0
        %882 = vmatpush1.xpose.msra.mxu0 0.0
        %883 = vmatprep.subr.mxu0 0.0
        %884 = vmatpush1.xpose.msra.mxu0 0.0
        %885 = vmatprep.subr.mxu0 0.0
        %886 = vmatpush1.xpose.msra.mxu0 0.0
        %887 = vmatprep.subr.mxu0 0.0
        %888 = vmatpush1.xpose.msra.mxu0 0.0
        %889 = vmatprep.subr.mxu0 0.0
        %890 = vmatpush1.xpose.msra.mxu0 0.0
        %891 = vmatprep.subr.mxu0 0.0
        %892 = vmatpush1.xpose.msra.mxu0 0.0
        %893 = vmatprep.subr.mxu0 0.0
        %894 = vmatpush1.xpose.msra.mxu0 0.0
        %895 = vmatprep.subr.mxu0 0.0
        %896 = vmatpush1.xpose.msra.mxu0 0.0
        %897 = vmatprep.subr.mxu0 0.0
        %898 = vmatpush1.xpose.msra.mxu0 0.0
        %899 = vmatprep.subr.mxu0 0.0
        %900 = vmatpush1.xpose.msra.mxu0 0.0
        %901 = vmatprep.subr.mxu0 0.0
        %902 = vmatpush1.xpose.msra.mxu0 0.0
        %903 = vmatprep.subr.mxu0 0.0
        %904 = vmatpush1.xpose.msra.mxu0 0.0
        %905 = vmatprep.subr.mxu0 0.0
        %906 = vmatpush1.xpose.msra.mxu0 0.0
        %907 = vmatprep.subr.mxu0 0.0
        %908 = vmatpush1.xpose.msra.mxu0 0.0
        %909 = vmatprep.subr.mxu0 0.0
        %910 = vmatpush1.xpose.msra.mxu0 0.0
        %911 = vmatprep.subr.mxu0 0.0
        %912 = vmatpush1.xpose.msra.mxu0 0.0
        %913 = vmatprep.subr.mxu0 0.0
        %914 = vmatpush1.xpose.msra.mxu0 0.0
        %915 = vmatprep.subr.mxu0 0.0
        %916 = vmatpush1.xpose.msra.mxu0 0.0
        %917 = vmatprep.subr.mxu0 0.0
        %918 = vmatpush1.xpose.msra.mxu0 0.0
        %919 = vmatprep.subr.mxu0 0.0
        %920 = vmatpush1.xpose.msra.mxu0 0.0
        %921 = vmatprep.subr.mxu0 0.0
        %922 = vmatpush1.xpose.msra.mxu0 0.0
        %923 = vmatprep.subr.mxu0 0.0
        %924 = vmatpush1.xpose.msra.mxu0 0.0
        %925 = vmatprep.subr.mxu0 0.0
        %926 = vmatpush1.xpose.msra.mxu0 0.0
        %927 = vmatprep.subr.mxu0 0.0
        %928 = vmatpush1.xpose.msra.mxu0 0.0
        %929 = vmatprep.subr.mxu0 0.0
        %930 = vmatpush1.xpose.msra.mxu0 0.0
        %931 = vmatprep.subr.mxu0 0.0
        %932 = vmatpush1.xpose.msra.mxu0 0.0
        %933 = vmatprep.subr.mxu0 0.0
        %934 = vmatpush1.xpose.msra.mxu0 0.0
        %935 = vmatprep.subr.mxu0 0.0
        %936 = vmatpush1.xpose.msra.mxu0 0.0
        %937 = vmatprep.subr.mxu0 0.0
        %938 = vmatpush1.xpose.msra.mxu0 0.0
        %939 = vmatprep.subr.mxu0 0.0
        %940 = vmatpush1.xpose.msra.mxu0 0.0
        %941 = vmatprep.subr.mxu0 0.0
        %942 = vmatpush1.xpose.msra.mxu0 0.0
        %943 = vmatprep.mubr.f32.mxu0 0.0
        %944 = vmatmul.mubr.f32.gmra.mrb[0].mxu0 %v875
        %v945 = vpop.f32.mrb[0].mxu0
        %v946 = vadd.f32 1e-12, %v945
        %v947 = vpop.f32.mrb[0].mxu0
        %948 = vdwg.mxu0
        %v949 = vrcp.pop %v946
        %v950 = vmul.f32 1.0, %v949
        %v951 = vld [vmem:[%s2] sm:$0x1]
        %v952 = vlaneseq
        %v953 = vshrl.u32 %v952, 7
        %v954 = vsub.s32 0, %v953
        %v955 = vrot.slane %v951, %v954
        %v956 = vmul.f32 %v792, %v955
        %958 = vrot.lane.b32.xlu0 %v792, 112
        %v959 = vpop.permute.xlu0 %958
        %v961 = vsel %vm721, %v956, 0
        %v963 = vsel %vm721, %v959, 0
        %965 = vmatprep.subr.mxu0 0.0
        %966 = vmatpush1.xpose.msra.mxu0 %v963
        %967 = vmatprep.subr.mxu0 0.0
        %968 = vmatpush1.xpose.msra.mxu0 0.0
        %969 = vmatprep.subr.mxu0 0.0
        %970 = vmatpush1.xpose.msra.mxu0 0.0
        %971 = vmatprep.subr.mxu0 0.0
        %972 = vmatpush1.xpose.msra.mxu0 0.0
        %973 = vmatprep.subr.mxu0 0.0
        %974 = vmatpush1.xpose.msra.mxu0 0.0
        %975 = vmatprep.subr.mxu0 0.0
        %976 = vmatpush1.xpose.msra.mxu0 0.0
        %977 = vmatprep.subr.mxu0 0.0
        %978 = vmatpush1.xpose.msra.mxu0 0.0
        %979 = vmatprep.subr.mxu0 0.0
        %980 = vmatpush1.xpose.msra.mxu0 0.0
        %981 = vmatprep.subr.mxu0 0.0
        %982 = vmatpush1.xpose.msra.mxu0 0.0
        %983 = vmatprep.subr.mxu0 0.0
        %984 = vmatpush1.xpose.msra.mxu0 0.0
        %985 = vmatprep.subr.mxu0 0.0
        %986 = vmatpush1.xpose.msra.mxu0 0.0
        %987 = vmatprep.subr.mxu0 0.0
        %988 = vmatpush1.xpose.msra.mxu0 0.0
        %989 = vmatprep.subr.mxu0 0.0
        %990 = vmatpush1.xpose.msra.mxu0 0.0
        %991 = vmatprep.subr.mxu0 0.0
        %992 = vmatpush1.xpose.msra.mxu0 0.0
        %993 = vmatprep.subr.mxu0 0.0
        %994 = vmatpush1.xpose.msra.mxu0 0.0
        %995 = vmatprep.subr.mxu0 0.0
        %996 = vmatpush1.xpose.msra.mxu0 0.0
        %997 = vmatprep.subr.mxu0 0.0
        %998 = vmatpush1.xpose.msra.mxu0 0.0
        %999 = vmatprep.subr.mxu0 0.0
        %1000 = vmatpush1.xpose.msra.mxu0 0.0
        %1001 = vmatprep.subr.mxu0 0.0
        %1002 = vmatpush1.xpose.msra.mxu0 0.0
        %1003 = vmatprep.subr.mxu0 0.0
        %1004 = vmatpush1.xpose.msra.mxu0 0.0
        %1005 = vmatprep.subr.mxu0 0.0
        %1006 = vmatpush1.xpose.msra.mxu0 0.0
        %1007 = vmatprep.subr.mxu0 0.0
        %1008 = vmatpush1.xpose.msra.mxu0 0.0
        %1009 = vmatprep.subr.mxu0 0.0
        %1010 = vmatpush1.xpose.msra.mxu0 0.0
        %1011 = vmatprep.subr.mxu0 0.0
        %1012 = vmatpush1.xpose.msra.mxu0 0.0
        %1013 = vmatprep.subr.mxu0 0.0
        %1014 = vmatpush1.xpose.msra.mxu0 0.0
        %1015 = vmatprep.subr.mxu0 0.0
        %1016 = vmatpush1.xpose.msra.mxu0 0.0
        %1017 = vmatprep.subr.mxu0 0.0
        %1018 = vmatpush1.xpose.msra.mxu0 0.0
        %1019 = vmatprep.subr.mxu0 0.0
        %1020 = vmatpush1.xpose.msra.mxu0 0.0
        %1021 = vmatprep.subr.mxu0 0.0
        %1022 = vmatpush1.xpose.msra.mxu0 0.0
        %1023 = vmatprep.subr.mxu0 0.0
        %1024 = vmatpush1.xpose.msra.mxu0 0.0
        %1025 = vmatprep.subr.mxu0 0.0
        %1026 = vmatpush1.xpose.msra.mxu0 0.0
        %1027 = vmatprep.subr.mxu0 0.0
        %1028 = vmatpush1.xpose.msra.mxu0 0.0
        %1029 = vmatprep.mubr.f32.mxu0 0.0
        %1030 = vmatmul.mubr.f32.gmra.mrb[0].mxu0 %v961
        %v1031 = vpop.f32.mrb[0].mxu0
        %v1032 = vadd.f32 0.0, %v1031
        %v1033 = vpop.f32.mrb[0].mxu0
        %1034 = vdwg.mxu0
        %v1035 = vmul.f32 %v1032, %v1032
        %1037 = vset.pattern.permute.xlu0 0
        %1038 = vperm.xlu0 %1037, %v871
        %v1039 = vpop.permute.xlu0 %1038
        %v1041 = vmul.f32 %v1035, %v1039
        %v1042 = vlaneseq
        %v1043 = vshrl.u32 %v1042, 7
        %v1044 = vsub.s32 0, %v1043
        %v1045 = vrot.slane %v950, %v1044
        %v1046 = vmul.f32 %v1041, %v1045
        %v1047 = vld [vmem:[%s2 + $0x1] sm:$0x1]
        %v1048 = vlaneseq
        %v1049 = vshrl.u32 %v1048, 7
        %v1050 = vsub.s32 0, %v1049
        %v1051 = vrot.slane %v1047, %v1050
        %v1052 = vmul.f32 %v792, %v1051
        %v1054 = vsel %vm721, %v1052, 0
        %1056 = vmatprep.subr.mxu0 0.0
        %1057 = vmatpush1.xpose.msra.mxu0 %v963
        %1058 = vmatprep.subr.mxu0 0.0
        %1059 = vmatpush1.xpose.msra.mxu0 0.0
        %1060 = vmatprep.subr.mxu0 0.0
        %1061 = vmatpush1.xpose.msra.mxu0 0.0
        %1062 = vmatprep.subr.mxu0 0.0
        %1063 = vmatpush1.xpose.msra.mxu0 0.0
        %1064 = vmatprep.subr.mxu0 0.0
        %1065 = vmatpush1.xpose.msra.mxu0 0.0
        %1066 = vmatprep.subr.mxu0 0.0
        %1067 = vmatpush1.xpose.msra.mxu0 0.0
        %1068 = vmatprep.subr.mxu0 0.0
        %1069 = vmatpush1.xpose.msra.mxu0 0.0
        %1070 = vmatprep.subr.mxu0 0.0
        %1071 = vmatpush1.xpose.msra.mxu0 0.0
        %1072 = vmatprep.subr.mxu0 0.0
        %1073 = vmatpush1.xpose.msra.mxu0 0.0
        %1074 = vmatprep.subr.mxu0 0.0
        %1075 = vmatpush1.xpose.msra.mxu0 0.0
        %1076 = vmatprep.subr.mxu0 0.0
        %1077 = vmatpush1.xpose.msra.mxu0 0.0
        %1078 = vmatprep.subr.mxu0 0.0
        %1079 = vmatpush1.xpose.msra.mxu0 0.0
        %1080 = vmatprep.subr.mxu0 0.0
        %1081 = vmatpush1.xpose.msra.mxu0 0.0
        %1082 = vmatprep.subr.mxu0 0.0
        %1083 = vmatpush1.xpose.msra.mxu0 0.0
        %1084 = vmatprep.subr.mxu0 0.0
        %1085 = vmatpush1.xpose.msra.mxu0 0.0
        %1086 = vmatprep.subr.mxu0 0.0
        %1087 = vmatpush1.xpose.msra.mxu0 0.0
        %1088 = vmatprep.subr.mxu0 0.0
        %1089 = vmatpush1.xpose.msra.mxu0 0.0
        %1090 = vmatprep.subr.mxu0 0.0
        %1091 = vmatpush1.xpose.msra.mxu0 0.0
        %1092 = vmatprep.subr.mxu0 0.0
        %1093 = vmatpush1.xpose.msra.mxu0 0.0
        %1094 = vmatprep.subr.mxu0 0.0
        %1095 = vmatpush1.xpose.msra.mxu0 0.0
        %1096 = vmatprep.subr.mxu0 0.0
        %1097 = vmatpush1.xpose.msra.mxu0 0.0
        %1098 = vmatprep.subr.mxu0 0.0
        %1099 = vmatpush1.xpose.msra.mxu0 0.0
        %1100 = vmatprep.subr.mxu0 0.0
        %1101 = vmatpush1.xpose.msra.mxu0 0.0
        %1102 = vmatprep.subr.mxu0 0.0
        %1103 = vmatpush1.xpose.msra.mxu0 0.0
        %1104 = vmatprep.subr.mxu0 0.0
        %1105 = vmatpush1.xpose.msra.mxu0 0.0
        %1106 = vmatprep.subr.mxu0 0.0
        %1107 = vmatpush1.xpose.msra.mxu0 0.0
        %1108 = vmatprep.subr.mxu0 0.0
        %1109 = vmatpush1.xpose.msra.mxu0 0.0
        %1110 = vmatprep.subr.mxu0 0.0
        %1111 = vmatpush1.xpose.msra.mxu0 0.0
        %1112 = vmatprep.subr.mxu0 0.0
        %1113 = vmatpush1.xpose.msra.mxu0 0.0
        %1114 = vmatprep.subr.mxu0 0.0
        %1115 = vmatpush1.xpose.msra.mxu0 0.0
        %1116 = vmatprep.subr.mxu0 0.0
        %1117 = vmatpush1.xpose.msra.mxu0 0.0
        %1118 = vmatprep.subr.mxu0 0.0
        %1119 = vmatpush1.xpose.msra.mxu0 0.0
        %1120 = vmatprep.mubr.f32.mxu0 0.0
        %1121 = vmatmul.mubr.f32.gmra.mrb[0].mxu0 %v1054
        %v1122 = vpop.f32.mrb[0].mxu0
        %v1123 = vadd.f32 0.0, %v1122
        %v1124 = vpop.f32.mrb[0].mxu0
        %1125 = vdwg.mxu0
        %v1126 = vmul.f32 %v1123, %v1123
        %1127 = vset.pattern.permute.xlu0 1
        %1128 = vperm.xlu0 %1127, %v871
        %v1129 = vpop.permute.xlu0 %1128
        %v1131 = vmul.f32 %v1126, %v1129
        %v1132 = vlaneseq
        %v1133 = vshrl.u32 %v1132, 7
        %v1134 = vsub.s32 1, %v1133
        %v1135 = vrot.slane %v950, %v1134
        %v1136 = vmul.f32 %v1131, %v1135
        %v1137 = vld [vmem:[%s2 + $0x2] sm:$0x1]
        %v1138 = vlaneseq
        %v1139 = vshrl.u32 %v1138, 7
        %v1140 = vsub.s32 0, %v1139
        %v1141 = vrot.slane %v1137, %v1140
        %v1142 = vmul.f32 %v792, %v1141
        %v1144 = vsel %vm721, %v1142, 0
        %1146 = vmatprep.subr.mxu0 0.0
        %1147 = vmatpush1.xpose.msra.mxu0 %v963
        %1148 = vmatprep.subr.mxu0 0.0
        %1149 = vmatpush1.xpose.msra.mxu0 0.0
        %1150 = vmatprep.subr.mxu0 0.0
        %1151 = vmatpush1.xpose.msra.mxu0 0.0
        %1152 = vmatprep.subr.mxu0 0.0
        %1153 = vmatpush1.xpose.msra.mxu0 0.0
        %1154 = vmatprep.subr.mxu0 0.0
        %1155 = vmatpush1.xpose.msra.mxu0 0.0
        %1156 = vmatprep.subr.mxu0 0.0
        %1157 = vmatpush1.xpose.msra.mxu0 0.0
        %1158 = vmatprep.subr.mxu0 0.0
        %1159 = vmatpush1.xpose.msra.mxu0 0.0
        %1160 = vmatprep.subr.mxu0 0.0
        %1161 = vmatpush1.xpose.msra.mxu0 0.0
        %1162 = vmatprep.subr.mxu0 0.0
        %1163 = vmatpush1.xpose.msra.mxu0 0.0
        %1164 = vmatprep.subr.mxu0 0.0
        %1165 = vmatpush1.xpose.msra.mxu0 0.0
        %1166 = vmatprep.subr.mxu0 0.0
        %1167 = vmatpush1.xpose.msra.mxu0 0.0
        %1168 = vmatprep.subr.mxu0 0.0
        %1169 = vmatpush1.xpose.msra.mxu0 0.0
        %1170 = vmatprep.subr.mxu0 0.0
        %1171 = vmatpush1.xpose.msra.mxu0 0.0
        %1172 = vmatprep.subr.mxu0 0.0
        %1173 = vmatpush1.xpose.msra.mxu0 0.0
        %1174 = vmatprep.subr.mxu0 0.0
        %1175 = vmatpush1.xpose.msra.mxu0 0.0
        %1176 = vmatprep.subr.mxu0 0.0
        %1177 = vmatpush1.xpose.msra.mxu0 0.0
        %1178 = vmatprep.subr.mxu0 0.0
        %1179 = vmatpush1.xpose.msra.mxu0 0.0
        %1180 = vmatprep.subr.mxu0 0.0
        %1181 = vmatpush1.xpose.msra.mxu0 0.0
        %1182 = vmatprep.subr.mxu0 0.0
        %1183 = vmatpush1.xpose.msra.mxu0 0.0
        %1184 = vmatprep.subr.mxu0 0.0
        %1185 = vmatpush1.xpose.msra.mxu0 0.0
        %1186 = vmatprep.subr.mxu0 0.0
        %1187 = vmatpush1.xpose.msra.mxu0 0.0
        %1188 = vmatprep.subr.mxu0 0.0
        %1189 = vmatpush1.xpose.msra.mxu0 0.0
        %1190 = vmatprep.subr.mxu0 0.0
        %1191 = vmatpush1.xpose.msra.mxu0 0.0
        %1192 = vmatprep.subr.mxu0 0.0
        %1193 = vmatpush1.xpose.msra.mxu0 0.0
        %1194 = vmatprep.subr.mxu0 0.0
        %1195 = vmatpush1.xpose.msra.mxu0 0.0
        %1196 = vmatprep.subr.mxu0 0.0
        %1197 = vmatpush1.xpose.msra.mxu0 0.0
        %1198 = vmatprep.subr.mxu0 0.0
        %1199 = vmatpush1.xpose.msra.mxu0 0.0
        %1200 = vmatprep.subr.mxu0 0.0
        %1201 = vmatpush1.xpose.msra.mxu0 0.0
        %1202 = vmatprep.subr.mxu0 0.0
        %1203 = vmatpush1.xpose.msra.mxu0 0.0
        %1204 = vmatprep.subr.mxu0 0.0
        %1205 = vmatpush1.xpose.msra.mxu0 0.0
        %1206 = vmatprep.subr.mxu0 0.0
        %1207 = vmatpush1.xpose.msra.mxu0 0.0
        %1208 = vmatprep.subr.mxu0 0.0
        %1209 = vmatpush1.xpose.msra.mxu0 0.0
        %1210 = vmatprep.mubr.f32.mxu0 0.0
        %1211 = vmatmul.mubr.f32.gmra.mrb[0].mxu0 %v1144
        %v1212 = vpop.f32.mrb[0].mxu0
        %v1213 = vadd.f32 0.0, %v1212
        %v1214 = vpop.f32.mrb[0].mxu0
        %1215 = vdwg.mxu0
        %v1216 = vmul.f32 %v1213, %v1213
        %1217 = vset.pattern.permute.xlu0 2
        %1218 = vperm.xlu0 %1217, %v871
        %v1219 = vpop.permute.xlu0 %1218
        %v1221 = vmul.f32 %v1216, %v1219
        %v1222 = vlaneseq
        %v1223 = vshrl.u32 %v1222, 7
        %v1224 = vsub.s32 2, %v1223
        %v1225 = vrot.slane %v950, %v1224
        %v1226 = vmul.f32 %v1221, %v1225
        %v1227 = vld [vmem:[%s2 + $0x3] sm:$0x1]
        %v1228 = vlaneseq
        %v1229 = vshrl.u32 %v1228, 7
        %v1230 = vsub.s32 0, %v1229
        %v1231 = vrot.slane %v1227, %v1230
        %v1232 = vmul.f32 %v792, %v1231
        %v1234 = vsel %vm721, %v1232, 0
        %1236 = vmatprep.subr.mxu0 0.0
        %1237 = vmatpush1.xpose.msra.mxu0 %v963
        %1238 = vmatprep.subr.mxu0 0.0
        %1239 = vmatpush1.xpose.msra.mxu0 0.0
        %1240 = vmatprep.subr.mxu0 0.0
        %1241 = vmatpush1.xpose.msra.mxu0 0.0
        %1242 = vmatprep.subr.mxu0 0.0
        %1243 = vmatpush1.xpose.msra.mxu0 0.0
        %1244 = vmatprep.subr.mxu0 0.0
        %1245 = vmatpush1.xpose.msra.mxu0 0.0
        %1246 = vmatprep.subr.mxu0 0.0
        %1247 = vmatpush1.xpose.msra.mxu0 0.0
        %1248 = vmatprep.subr.mxu0 0.0
        %1249 = vmatpush1.xpose.msra.mxu0 0.0
        %1250 = vmatprep.subr.mxu0 0.0
        %1251 = vmatpush1.xpose.msra.mxu0 0.0
        %1252 = vmatprep.subr.mxu0 0.0
        %1253 = vmatpush1.xpose.msra.mxu0 0.0
        %1254 = vmatprep.subr.mxu0 0.0
        %1255 = vmatpush1.xpose.msra.mxu0 0.0
        %1256 = vmatprep.subr.mxu0 0.0
        %1257 = vmatpush1.xpose.msra.mxu0 0.0
        %1258 = vmatprep.subr.mxu0 0.0
        %1259 = vmatpush1.xpose.msra.mxu0 0.0
        %1260 = vmatprep.subr.mxu0 0.0
        %1261 = vmatpush1.xpose.msra.mxu0 0.0
        %1262 = vmatprep.subr.mxu0 0.0
        %1263 = vmatpush1.xpose.msra.mxu0 0.0
        %1264 = vmatprep.subr.mxu0 0.0
        %1265 = vmatpush1.xpose.msra.mxu0 0.0
        %1266 = vmatprep.subr.mxu0 0.0
        %1267 = vmatpush1.xpose.msra.mxu0 0.0
        %1268 = vmatprep.subr.mxu0 0.0
        %1269 = vmatpush1.xpose.msra.mxu0 0.0
        %1270 = vmatprep.subr.mxu0 0.0
        %1271 = vmatpush1.xpose.msra.mxu0 0.0
        %1272 = vmatprep.subr.mxu0 0.0
        %1273 = vmatpush1.xpose.msra.mxu0 0.0
        %1274 = vmatprep.subr.mxu0 0.0
        %1275 = vmatpush1.xpose.msra.mxu0 0.0
        %1276 = vmatprep.subr.mxu0 0.0
        %1277 = vmatpush1.xpose.msra.mxu0 0.0
        %1278 = vmatprep.subr.mxu0 0.0
        %1279 = vmatpush1.xpose.msra.mxu0 0.0
        %1280 = vmatprep.subr.mxu0 0.0
        %1281 = vmatpush1.xpose.msra.mxu0 0.0
        %1282 = vmatprep.subr.mxu0 0.0
        %1283 = vmatpush1.xpose.msra.mxu0 0.0
        %1284 = vmatprep.subr.mxu0 0.0
        %1285 = vmatpush1.xpose.msra.mxu0 0.0
        %1286 = vmatprep.subr.mxu0 0.0
        %1287 = vmatpush1.xpose.msra.mxu0 0.0
        %1288 = vmatprep.subr.mxu0 0.0
        %1289 = vmatpush1.xpose.msra.mxu0 0.0
        %1290 = vmatprep.subr.mxu0 0.0
        %1291 = vmatpush1.xpose.msra.mxu0 0.0
        %1292 = vmatprep.subr.mxu0 0.0
        %1293 = vmatpush1.xpose.msra.mxu0 0.0
        %1294 = vmatprep.subr.mxu0 0.0
        %1295 = vmatpush1.xpose.msra.mxu0 0.0
        %1296 = vmatprep.subr.mxu0 0.0
        %1297 = vmatpush1.xpose.msra.mxu0 0.0
        %1298 = vmatprep.subr.mxu0 0.0
        %1299 = vmatpush1.xpose.msra.mxu0 0.0
        %1300 = vmatprep.mubr.f32.mxu0 0.0
        %1301 = vmatmul.mubr.f32.gmra.mrb[0].mxu0 %v1234
        %v1302 = vpop.f32.mrb[0].mxu0
        %v1303 = vadd.f32 0.0, %v1302
        %v1304 = vpop.f32.mrb[0].mxu0
        %1305 = vdwg.mxu0
        %v1306 = vmul.f32 %v1303, %v1303
        %1307 = vset.pattern.permute.xlu0 3
        %1308 = vperm.xlu0 %1307, %v871
        %v1309 = vpop.permute.xlu0 %1308
        %v1311 = vmul.f32 %v1306, %v1309
        %v1312 = vlaneseq
        %v1313 = vshrl.u32 %v1312, 7
        %v1314 = vsub.s32 3, %v1313
        %v1315 = vrot.slane %v950, %v1314
        %v1316 = vmul.f32 %v1311, %v1315
        %s1317 = sld [smem:[#allocation2]]
        %v1318 = vstv %s1317
        %v1319 = vmul.f32 %v1032, %v1318
        %s1320 = sld [smem:[#allocation2 + $0x1]]
        %v1321 = vstv %s1320
        %v1322 = vmul.f32 %v1123, %v1321
        %v1323 = vadd.f32 %v1319, %v1322
        %s1324 = sld [smem:[#allocation2 + $0x2]]
        %v1325 = vstv %s1324
        %v1326 = vmul.f32 %v1213, %v1325
        %v1327 = vadd.f32 %v1323, %v1326
        %s1328 = sld [smem:[#allocation2 + $0x3]]
        %v1329 = vstv %s1328
        %v1330 = vmul.f32 %v1303, %v1329
        %v1331 = vadd.f32 %v1327, %v1330
        %s1332 = sld [smem:[#allocation2 + $0x4]]
        %v1333 = vstv %s1332
        %v1334 = vmul.f32 %v1035, %v1333
        %v1335 = vadd.f32 %v1331, %v1334
        %s1336 = sld [smem:[#allocation2 + $0x5]]
        %v1337 = vstv %s1336
        %v1338 = vmul.f32 %v1126, %v1337
        %v1339 = vadd.f32 %v1335, %v1338
        %s1340 = sld [smem:[#allocation2 + $0x6]]
        %v1341 = vstv %s1340
        %v1342 = vmul.f32 %v1216, %v1341
        %v1343 = vadd.f32 %v1339, %v1342
        %s1344 = sld [smem:[#allocation2 + $0x7]]
        %v1345 = vstv %s1344
        %v1346 = vmul.f32 %v1306, %v1345
        %v1347 = vadd.f32 %v1343, %v1346
        %s1348 = sld [smem:[#allocation2 + $0x8]]
        %v1349 = vstv %s1348
        %v1350 = vmul.f32 %v1046, %v1349
        %v1351 = vadd.f32 %v1347, %v1350
        %s1352 = sld [smem:[#allocation2 + $0x9]]
        %v1353 = vstv %s1352
        %v1354 = vmul.f32 %v1136, %v1353
        %v1355 = vadd.f32 %v1351, %v1354
        %s1356 = sld [smem:[#allocation2 + $0xa]]
        %v1357 = vstv %s1356
        %v1358 = vmul.f32 %v1226, %v1357
        %v1359 = vadd.f32 %v1355, %v1358
        %s1360 = sld [smem:[#allocation2 + $0xb]]
        %v1361 = vstv %s1360
        %v1362 = vmul.f32 %v1316, %v1361
        %v1363 = vadd.f32 %v1359, %v1362
        %s1364 = sld [smem:[#allocation5]]
        %v1365 = vstv %s1364
        %v1366 = vadd.f32 %v1363, %v1365
        %vm1367 = vcmask 36864
        %v1368 = vsel %vm1367, %v1366, -inf
        %1369 = vmax.xlane.f32.xlu0 %v1368
        %v1370 = vpop.xlane.xlu0 %1369
        %v1371 = vsub.f32 %v1366, %v1370
        %v1372 = vmul.f32 %v1371, 1.442695
        %v1373 = vpow.pop %v1372
        %v1374 = vsel %vm1367, %v1373, 0.0
        %1375 = vadd.xlane.f32.xlu0 %v1374
        %v1376 = vpop.xlane.xlu0 %1375
        %v1377 = vrcp.pop %v1376
        %v1378 = vmul.f32 %v1373, %v1377
        %v1379 = vld [vmem:[%s2] sm:$0x1]
        %v1380 = vlaneseq
        %v1381 = vshrl.u32 %v1380, 7
        %v1382 = vsub.s32 0, %v1381
        %v1383 = vrot.slane %v1379, %v1382
        %1385 = vrot.lane.b32.xlu0 %v1383, 32
        %v1386 = vpop.permute.xlu0 %1385
        %v1388 = vmul.f32 %v792, %v1386
        %s1389 = sld [smem:[#allocation2 + $0xc]]
        %v1390 = vstv %s1389
        %v1391 = vmul.f32 %v1032, %v1390
        %s1392 = sld [smem:[#allocation2 + $0xd]]
        %v1393 = vstv %s1392
        %v1394 = vmul.f32 %v1123, %v1393
        %v1395 = vadd.f32 %v1391, %v1394
        %s1396 = sld [smem:[#allocation2 + $0xe]]
        %v1397 = vstv %s1396
        %v1398 = vmul.f32 %v1213, %v1397
        %v1399 = vadd.f32 %v1395, %v1398
        %s1400 = sld [smem:[#allocation2 + $0xf]]
        %v1401 = vstv %s1400
        %v1402 = vmul.f32 %v1303, %v1401
        %v1403 = vadd.f32 %v1399, %v1402
        %s1404 = sld [smem:[#allocation2 + $0x10]]
        %v1405 = vstv %s1404
        %v1406 = vmul.f32 %v1035, %v1405
        %v1407 = vadd.f32 %v1403, %v1406
        %s1408 = sld [smem:[#allocation2 + $0x11]]
        %v1409 = vstv %s1408
        %v1410 = vmul.f32 %v1126, %v1409
        %v1411 = vadd.f32 %v1407, %v1410
        %s1412 = sld [smem:[#allocation2 + $0x12]]
        %v1413 = vstv %s1412
        %v1414 = vmul.f32 %v1216, %v1413
        %v1415 = vadd.f32 %v1411, %v1414
        %s1416 = sld [smem:[#allocation2 + $0x13]]
        %v1417 = vstv %s1416
        %v1418 = vmul.f32 %v1306, %v1417
        %v1419 = vadd.f32 %v1415, %v1418
        %s1420 = sld [smem:[#allocation2 + $0x14]]
        %v1421 = vstv %s1420
        %v1422 = vmul.f32 %v1046, %v1421
        %v1423 = vadd.f32 %v1419, %v1422
        %s1424 = sld [smem:[#allocation2 + $0x15]]
        %v1425 = vstv %s1424
        %v1426 = vmul.f32 %v1136, %v1425
        %v1427 = vadd.f32 %v1423, %v1426
        %s1428 = sld [smem:[#allocation2 + $0x16]]
        %v1429 = vstv %s1428
        %v1430 = vmul.f32 %v1226, %v1429
        %v1431 = vadd.f32 %v1427, %v1430
        %s1432 = sld [smem:[#allocation2 + $0x17]]
        %v1433 = vstv %s1432
        %v1434 = vmul.f32 %v1316, %v1433
        %v1435 = vadd.f32 %v1431, %v1434
        %s1436 = sld [smem:[#allocation5 + $0x1]]
        %v1437 = vstv %s1436
        %v1438 = vadd.f32 %v1435, %v1437
        %v1439 = vsel %vm1367, %v1438, -inf
        %1440 = vmax.xlane.f32.xlu0 %v1439
        %v1441 = vpop.xlane.xlu0 %1440
        %v1442 = vsub.f32 %v1438, %v1441
        %v1443 = vmul.f32 %v1442, 1.442695
        %v1444 = vpow.pop %v1443
        %v1445 = vsel %vm1367, %v1444, 0.0
        %1446 = vadd.xlane.f32.xlu0 %v1445
        %v1447 = vpop.xlane.xlu0 %1446
        %v1448 = vrcp.pop %v1447
        %v1449 = vmul.f32 %v1444, %v1448
        %v1450 = vld [vmem:[%s2 + $0x1] sm:$0x1]
        %v1451 = vlaneseq
        %v1452 = vshrl.u32 %v1451, 7
        %v1453 = vsub.s32 0, %v1452
        %v1454 = vrot.slane %v1450, %v1453
        %1456 = vrot.lane.b32.xlu0 %v1454, 32
        %v1457 = vpop.permute.xlu0 %1456
        %v1459 = vmul.f32 %v792, %v1457
        %1461 = vrot.lane.b32.xlu0 %v1459, 96
        %v1462 = vpop.permute.xlu0 %1461
        %vm1463 = vcmask 39936
        %v1465 = vsel %vm1463, %v1449, 0
        %vm1467 = vcmask 1044480
        %v1468 = vsel %vm1467, %v1462, 0
        %1470 = vmatprep.subr.mxu0 0.0
        %1471 = vmatpush1.msra.mxu0 %v1468
        %1472 = vmatprep.subr.mxu0 0.0
        %1473 = vmatpush1.msra.mxu0 0.0
        %1474 = vmatprep.subr.mxu0 0.0
        %1475 = vmatpush1.msra.mxu0 0.0
        %1476 = vmatprep.subr.mxu0 0.0
        %1477 = vmatpush1.msra.mxu0 0.0
        %1478 = vmatprep.subr.mxu0 0.0
        %1479 = vmatpush1.msra.mxu0 0.0
        %1480 = vmatprep.subr.mxu0 0.0
        %1481 = vmatpush1.msra.mxu0 0.0
        %1482 = vmatprep.subr.mxu0 0.0
        %1483 = vmatpush1.msra.mxu0 0.0
        %1484 = vmatprep.subr.mxu0 0.0
        %1485 = vmatpush1.msra.mxu0 0.0
        %1486 = vmatprep.subr.mxu0 0.0
        %1487 = vmatpush1.msra.mxu0 0.0
        %1488 = vmatprep.subr.mxu0 0.0
        %1489 = vmatpush1.msra.mxu0 0.0
        %1490 = vmatprep.subr.mxu0 0.0
        %1491 = vmatpush1.msra.mxu0 0.0
        %1492 = vmatprep.subr.mxu0 0.0
        %1493 = vmatpush1.msra.mxu0 0.0
        %1494 = vmatprep.subr.mxu0 0.0
        %1495 = vmatpush1.msra.mxu0 0.0
        %1496 = vmatprep.subr.mxu0 0.0
        %1497 = vmatpush1.msra.mxu0 0.0
        %1498 = vmatprep.subr.mxu0 0.0
        %1499 = vmatpush1.msra.mxu0 0.0
        %1500 = vmatprep.subr.mxu0 0.0
        %1501 = vmatpush1.msra.mxu0 0.0
        %1502 = vmatprep.subr.mxu0 0.0
        %1503 = vmatpush1.msra.mxu0 0.0
        %1504 = vmatprep.subr.mxu0 0.0
        %1505 = vmatpush1.msra.mxu0 0.0
        %1506 = vmatprep.subr.mxu0 0.0
        %1507 = vmatpush1.msra.mxu0 0.0
        %1508 = vmatprep.subr.mxu0 0.0
        %1509 = vmatpush1.msra.mxu0 0.0
        %1510 = vmatprep.subr.mxu0 0.0
        %1511 = vmatpush1.msra.mxu0 0.0
        %1512 = vmatprep.subr.mxu0 0.0
        %1513 = vmatpush1.msra.mxu0 0.0
        %1514 = vmatprep.subr.mxu0 0.0
        %1515 = vmatpush1.msra.mxu0 0.0
        %1516 = vmatprep.subr.mxu0 0.0
        %1517 = vmatpush1.msra.mxu0 0.0
        %1518 = vmatprep.subr.mxu0 0.0
        %1519 = vmatpush1.msra.mxu0 0.0
        %1520 = vmatprep.subr.mxu0 0.0
        %1521 = vmatpush1.msra.mxu0 0.0
        %1522 = vmatprep.subr.mxu0 0.0
        %1523 = vmatpush1.msra.mxu0 0.0
        %1524 = vmatprep.subr.mxu0 0.0
        %1525 = vmatpush1.msra.mxu0 0.0
        %1526 = vmatprep.subr.mxu0 0.0
        %1527 = vmatpush1.msra.mxu0 0.0
        %1528 = vmatprep.subr.mxu0 0.0
        %1529 = vmatpush1.msra.mxu0 0.0
        %1530 = vmatprep.subr.mxu0 0.0
        %1531 = vmatpush1.msra.mxu0 0.0
        %1532 = vmatprep.subr.mxu0 0.0
        %1533 = vmatpush1.msra.mxu0 0.0
        %1534 = vmatprep.mubr.f32.mxu0 0.0
        %1535 = vmatmul.mubr.f32.gmra.mrb[0].mxu0 %v1465
        %v1536 = vpop.f32.mrb[0].mxu0
        %v1537 = vadd.f32 0.0, %v1536
        %v1538 = vpop.f32.mrb[0].mxu0
        %1539 = vdwg.mxu0
        %1541 = vrot.lane.b32.xlu0 %v1388, 96
        %v1542 = vpop.permute.xlu0 %1541
        %v1544 = vsel %vm1463, %v1378, 0
        %v1546 = vsel %vm1467, %v1542, 0
        %1548 = vmatprep.subr.mxu0 0.0
        %1549 = vmatpush1.msra.mxu0 %v1546
        %1550 = vmatprep.subr.mxu0 0.0
        %1551 = vmatpush1.msra.mxu0 0.0
        %1552 = vmatprep.subr.mxu0 0.0
        %1553 = vmatpush1.msra.mxu0 0.0
        %1554 = vmatprep.subr.mxu0 0.0
        %1555 = vmatpush1.msra.mxu0 0.0
        %1556 = vmatprep.subr.mxu0 0.0
        %1557 = vmatpush1.msra.mxu0 0.0
        %1558 = vmatprep.subr.mxu0 0.0
        %1559 = vmatpush1.msra.mxu0 0.0
        %1560 = vmatprep.subr.mxu0 0.0
        %1561 = vmatpush1.msra.mxu0 0.0
        %1562 = vmatprep.subr.mxu0 0.0
        %1563 = vmatpush1.msra.mxu0 0.0
        %1564 = vmatprep.subr.mxu0 0.0
        %1565 = vmatpush1.msra.mxu0 0.0
        %1566 = vmatprep.subr.mxu0 0.0
        %1567 = vmatpush1.msra.mxu0 0.0
        %1568 = vmatprep.subr.mxu0 0.0
        %1569 = vmatpush1.msra.mxu0 0.0
        %1570 = vmatprep.subr.mxu0 0.0
        %1571 = vmatpush1.msra.mxu0 0.0
        %1572 = vmatprep.subr.mxu0 0.0
        %1573 = vmatpush1.msra.mxu0 0.0
        %1574 = vmatprep.subr.mxu0 0.0
        %1575 = vmatpush1.msra.mxu0 0.0
        %1576 = vmatprep.subr.mxu0 0.0
        %1577 = vmatpush1.msra.mxu0 0.0
        %1578 = vmatprep.subr.mxu0 0.0
        %1579 = vmatpush1.msra.mxu0 0.0
        %1580 = vmatprep.subr.mxu0 0.0
        %1581 = vmatpush1.msra.mxu0 0.0
        %1582 = vmatprep.subr.mxu0 0.0
        %1583 = vmatpush1.msra.mxu0 0.0
        %1584 = vmatprep.subr.mxu0 0.0
        %1585 = vmatpush1.msra.mxu0 0.0
        %1586 = vmatprep.subr.mxu0 0.0
        %1587 = vmatpush1.msra.mxu0 0.0
        %1588 = vmatprep.subr.mxu0 0.0
        %1589 = vmatpush1.msra.mxu0 0.0
        %1590 = vmatprep.subr.mxu0 0.0
        %1591 = vmatpush1.msra.mxu0 0.0
        %1592 = vmatprep.subr.mxu0 0.0
        %1593 = vmatpush1.msra.mxu0 0.0
        %1594 = vmatprep.subr.mxu0 0.0
        %1595 = vmatpush1.msra.mxu0 0.0
        %1596 = vmatprep.subr.mxu0 0.0
        %1597 = vmatpush1.msra.mxu0 0.0
        %1598 = vmatprep.subr.mxu0 0.0
        %1599 = vmatpush1.msra.mxu0 0.0
        %1600 = vmatprep.subr.mxu0 0.0
        %1601 = vmatpush1.msra.mxu0 0.0
        %1602 = vmatprep.subr.mxu0 0.0
        %1603 = vmatpush1.msra.mxu0 0.0
        %1604 = vmatprep.subr.mxu0 0.0
        %1605 = vmatpush1.msra.mxu0 0.0
        %1606 = vmatprep.subr.mxu0 0.0
        %1607 = vmatpush1.msra.mxu0 0.0
        %1608 = vmatprep.subr.mxu0 0.0
        %1609 = vmatpush1.msra.mxu0 0.0
        %1610 = vmatprep.subr.mxu0 0.0
        %1611 = vmatpush1.msra.mxu0 0.0
        %1612 = vmatprep.mubr.f32.mxu0 0.0
        %1613 = vmatmul.mubr.f32.gmra.mrb[0].mxu0 %v1544
        %v1614 = vpop.f32.mrb[0].mxu0
        %v1615 = vadd.f32 %v1537, %v1614
        %v1616 = vpop.f32.mrb[0].mxu0
        %1617 = vdwg.mxu0
        %s1618 = sld [smem:[#allocation2 + $0x18]]
        %v1619 = vstv %s1618
        %v1620 = vmul.f32 %v1032, %v1619
        %s1621 = sld [smem:[#allocation2 + $0x19]]
        %v1622 = vstv %s1621
        %v1623 = vmul.f32 %v1123, %v1622
        %v1624 = vadd.f32 %v1620, %v1623
        %s1625 = sld [smem:[#allocation2 + $0x1a]]
        %v1626 = vstv %s1625
        %v1627 = vmul.f32 %v1213, %v1626
        %v1628 = vadd.f32 %v1624, %v1627
        %s1629 = sld [smem:[#allocation2 + $0x1b]]
        %v1630 = vstv %s1629
        %v1631 = vmul.f32 %v1303, %v1630
        %v1632 = vadd.f32 %v1628, %v1631
        %s1633 = sld [smem:[#allocation2 + $0x1c]]
        %v1634 = vstv %s1633
        %v1635 = vmul.f32 %v1035, %v1634
        %v1636 = vadd.f32 %v1632, %v1635
        %s1637 = sld [smem:[#allocation2 + $0x1d]]
        %v1638 = vstv %s1637
        %v1639 = vmul.f32 %v1126, %v1638
        %v1640 = vadd.f32 %v1636, %v1639
        %s1641 = sld [smem:[#allocation2 + $0x1e]]
        %v1642 = vstv %s1641
        %v1643 = vmul.f32 %v1216, %v1642
        %v1644 = vadd.f32 %v1640, %v1643
        %s1645 = sld [smem:[#allocation2 + $0x1f]]
        %v1646 = vstv %s1645
        %v1647 = vmul.f32 %v1306, %v1646
        %v1648 = vadd.f32 %v1644, %v1647
        %s1649 = sld [smem:[#allocation2 + $0x20]]
        %v1650 = vstv %s1649
        %v1651 = vmul.f32 %v1046, %v1650
        %v1652 = vadd.f32 %v1648, %v1651
        %s1653 = sld [smem:[#allocation2 + $0x21]]
        %v1654 = vstv %s1653
        %v1655 = vmul.f32 %v1136, %v1654
        %v1656 = vadd.f32 %v1652, %v1655
        %s1657 = sld [smem:[#allocation2 + $0x22]]
        %v1658 = vstv %s1657
        %v1659 = vmul.f32 %v1226, %v1658
        %v1660 = vadd.f32 %v1656, %v1659
        %s1661 = sld [smem:[#allocation2 + $0x23]]
        %v1662 = vstv %s1661
        %v1663 = vmul.f32 %v1316, %v1662
        %v1664 = vadd.f32 %v1660, %v1663
        %s1665 = sld [smem:[#allocation5 + $0x2]]
        %v1666 = vstv %s1665
        %v1667 = vadd.f32 %v1664, %v1666
        %v1668 = vsel %vm1367, %v1667, -inf
        %1669 = vmax.xlane.f32.xlu0 %v1668
        %v1670 = vpop.xlane.xlu0 %1669
        %v1671 = vsub.f32 %v1667, %v1670
        %v1672 = vmul.f32 %v1671, 1.442695
        %v1673 = vpow.pop %v1672
        %v1674 = vsel %vm1367, %v1673, 0.0
        %1675 = vadd.xlane.f32.xlu0 %v1674
        %v1676 = vpop.xlane.xlu0 %1675
        %v1677 = vrcp.pop %v1676
        %v1678 = vmul.f32 %v1673, %v1677
        %v1679 = vld [vmem:[%s2 + $0x2] sm:$0x1]
        %v1680 = vlaneseq
        %v1681 = vshrl.u32 %v1680, 7
        %v1682 = vsub.s32 0, %v1681
        %v1683 = vrot.slane %v1679, %v1682
        %1685 = vrot.lane.b32.xlu0 %v1683, 32
        %v1686 = vpop.permute.xlu0 %1685
        %v1688 = vmul.f32 %v792, %v1686
        %1690 = vrot.lane.b32.xlu0 %v1688, 96
        %v1691 = vpop.permute.xlu0 %1690
        %v1693 = vsel %vm1463, %v1678, 0
        %v1695 = vsel %vm1467, %v1691, 0
        %1697 = vmatprep.subr.mxu0 0.0
        %1698 = vmatpush1.msra.mxu0 %v1695
        %1699 = vmatprep.subr.mxu0 0.0
        %1700 = vmatpush1.msra.mxu0 0.0
        %1701 = vmatprep.subr.mxu0 0.0
        %1702 = vmatpush1.msra.mxu0 0.0
        %1703 = vmatprep.subr.mxu0 0.0
        %1704 = vmatpush1.msra.mxu0 0.0
        %1705 = vmatprep.subr.mxu0 0.0
        %1706 = vmatpush1.msra.mxu0 0.0
        %1707 = vmatprep.subr.mxu0 0.0
        %1708 = vmatpush1.msra.mxu0 0.0
        %1709 = vmatprep.subr.mxu0 0.0
        %1710 = vmatpush1.msra.mxu0 0.0
        %1711 = vmatprep.subr.mxu0 0.0
        %1712 = vmatpush1.msra.mxu0 0.0
        %1713 = vmatprep.subr.mxu0 0.0
        %1714 = vmatpush1.msra.mxu0 0.0
        %1715 = vmatprep.subr.mxu0 0.0
        %1716 = vmatpush1.msra.mxu0 0.0
        %1717 = vmatprep.subr.mxu0 0.0
        %1718 = vmatpush1.msra.mxu0 0.0
        %1719 = vmatprep.subr.mxu0 0.0
        %1720 = vmatpush1.msra.mxu0 0.0
        %1721 = vmatprep.subr.mxu0 0.0
        %1722 = vmatpush1.msra.mxu0 0.0
        %1723 = vmatprep.subr.mxu0 0.0
        %1724 = vmatpush1.msra.mxu0 0.0
        %1725 = vmatprep.subr.mxu0 0.0
        %1726 = vmatpush1.msra.mxu0 0.0
        %1727 = vmatprep.subr.mxu0 0.0
        %1728 = vmatpush1.msra.mxu0 0.0
        %1729 = vmatprep.subr.mxu0 0.0
        %1730 = vmatpush1.msra.mxu0 0.0
        %1731 = vmatprep.subr.mxu0 0.0
        %1732 = vmatpush1.msra.mxu0 0.0
        %1733 = vmatprep.subr.mxu0 0.0
        %1734 = vmatpush1.msra.mxu0 0.0
        %1735 = vmatprep.subr.mxu0 0.0
        %1736 = vmatpush1.msra.mxu0 0.0
        %1737 = vmatprep.subr.mxu0 0.0
        %1738 = vmatpush1.msra.mxu0 0.0
        %1739 = vmatprep.subr.mxu0 0.0
        %1740 = vmatpush1.msra.mxu0 0.0
        %1741 = vmatprep.subr.mxu0 0.0
        %1742 = vmatpush1.msra.mxu0 0.0
        %1743 = vmatprep.subr.mxu0 0.0
        %1744 = vmatpush1.msra.mxu0 0.0
        %1745 = vmatprep.subr.mxu0 0.0
        %1746 = vmatpush1.msra.mxu0 0.0
        %1747 = vmatprep.subr.mxu0 0.0
        %1748 = vmatpush1.msra.mxu0 0.0
        %1749 = vmatprep.subr.mxu0 0.0
        %1750 = vmatpush1.msra.mxu0 0.0
        %1751 = vmatprep.subr.mxu0 0.0
        %1752 = vmatpush1.msra.mxu0 0.0
        %1753 = vmatprep.subr.mxu0 0.0
        %1754 = vmatpush1.msra.mxu0 0.0
        %1755 = vmatprep.subr.mxu0 0.0
        %1756 = vmatpush1.msra.mxu0 0.0
        %1757 = vmatprep.subr.mxu0 0.0
        %1758 = vmatpush1.msra.mxu0 0.0
        %1759 = vmatprep.subr.mxu0 0.0
        %1760 = vmatpush1.msra.mxu0 0.0
        %1761 = vmatprep.mubr.f32.mxu0 0.0
        %1762 = vmatmul.mubr.f32.gmra.mrb[0].mxu0 %v1693
        %v1763 = vpop.f32.mrb[0].mxu0
        %v1764 = vadd.f32 0.0, %v1763
        %v1765 = vpop.f32.mrb[0].mxu0
        %1766 = vdwg.mxu0
        %v1767 = vadd.f32 %v1615, %v1764
        %s1768 = sld [smem:[#allocation2 + $0x24]]
        %v1769 = vstv %s1768
        %v1770 = vmul.f32 %v1032, %v1769
        %s1771 = sld [smem:[#allocation2 + $0x25]]
        %v1772 = vstv %s1771
        %v1773 = vmul.f32 %v1123, %v1772
        %v1774 = vadd.f32 %v1770, %v1773
        %s1775 = sld [smem:[#allocation2 + $0x26]]
        %v1776 = vstv %s1775
        %v1777 = vmul.f32 %v1213, %v1776
        %v1778 = vadd.f32 %v1774, %v1777
        %s1779 = sld [smem:[#allocation2 + $0x27]]
        %v1780 = vstv %s1779
        %v1781 = vmul.f32 %v1303, %v1780
        %v1782 = vadd.f32 %v1778, %v1781
        %s1783 = sld [smem:[#allocation2 + $0x28]]
        %v1784 = vstv %s1783
        %v1785 = vmul.f32 %v1035, %v1784
        %v1786 = vadd.f32 %v1782, %v1785
        %s1787 = sld [smem:[#allocation2 + $0x29]]
        %v1788 = vstv %s1787
        %v1789 = vmul.f32 %v1126, %v1788
        %v1790 = vadd.f32 %v1786, %v1789
        %s1791 = sld [smem:[#allocation2 + $0x2a]]
        %v1792 = vstv %s1791
        %v1793 = vmul.f32 %v1216, %v1792
        %v1794 = vadd.f32 %v1790, %v1793
        %s1795 = sld [smem:[#allocation2 + $0x2b]]
        %v1796 = vstv %s1795
        %v1797 = vmul.f32 %v1306, %v1796
        %v1798 = vadd.f32 %v1794, %v1797
        %s1799 = sld [smem:[#allocation2 + $0x2c]]
        %v1800 = vstv %s1799
        %v1801 = vmul.f32 %v1046, %v1800
        %v1802 = vadd.f32 %v1798, %v1801
        %s1803 = sld [smem:[#allocation2 + $0x2d]]
        %v1804 = vstv %s1803
        %v1805 = vmul.f32 %v1136, %v1804
        %v1806 = vadd.f32 %v1802, %v1805
        %s1807 = sld [smem:[#allocation2 + $0x2e]]
        %v1808 = vstv %s1807
        %v1809 = vmul.f32 %v1226, %v1808
        %v1810 = vadd.f32 %v1806, %v1809
        %s1811 = sld [smem:[#allocation2 + $0x2f]]
        %v1812 = vstv %s1811
        %v1813 = vmul.f32 %v1316, %v1812
        %v1814 = vadd.f32 %v1810, %v1813
        %s1815 = sld [smem:[#allocation5 + $0x3]]
        %v1816 = vstv %s1815
        %v1817 = vadd.f32 %v1814, %v1816
        %v1818 = vsel %vm1367, %v1817, -inf
        %1819 = vmax.xlane.f32.xlu0 %v1818
        %v1820 = vpop.xlane.xlu0 %1819
        %v1821 = vsub.f32 %v1817, %v1820
        %v1822 = vmul.f32 %v1821, 1.442695
        %v1823 = vpow.pop %v1822
        %v1824 = vsel %vm1367, %v1823, 0.0
        %1825 = vadd.xlane.f32.xlu0 %v1824
        %v1826 = vpop.xlane.xlu0 %1825
        %v1827 = vrcp.pop %v1826
        %v1828 = vmul.f32 %v1823, %v1827
        %v1829 = vld [vmem:[%s2 + $0x3] sm:$0x1]
        %v1830 = vlaneseq
        %v1831 = vshrl.u32 %v1830, 7
        %v1832 = vsub.s32 0, %v1831
        %v1833 = vrot.slane %v1829, %v1832
        %1835 = vrot.lane.b32.xlu0 %v1833, 32
        %v1836 = vpop.permute.xlu0 %1835
        %v1838 = vmul.f32 %v792, %v1836
        %1840 = vrot.lane.b32.xlu0 %v1838, 96
        %v1841 = vpop.permute.xlu0 %1840
        %v1843 = vsel %vm1463, %v1828, 0
        %v1845 = vsel %vm1467, %v1841, 0
        %1847 = vmatprep.subr.mxu0 0.0
        %1848 = vmatpush1.msra.mxu0 %v1845
        %1849 = vmatprep.subr.mxu0 0.0
        %1850 = vmatpush1.msra.mxu0 0.0
        %1851 = vmatprep.subr.mxu0 0.0
        %1852 = vmatpush1.msra.mxu0 0.0
        %1853 = vmatprep.subr.mxu0 0.0
        %1854 = vmatpush1.msra.mxu0 0.0
        %1855 = vmatprep.subr.mxu0 0.0
        %1856 = vmatpush1.msra.mxu0 0.0
        %1857 = vmatprep.subr.mxu0 0.0
        %1858 = vmatpush1.msra.mxu0 0.0
        %1859 = vmatprep.subr.mxu0 0.0
        %1860 = vmatpush1.msra.mxu0 0.0
        %1861 = vmatprep.subr.mxu0 0.0
        %1862 = vmatpush1.msra.mxu0 0.0
        %1863 = vmatprep.subr.mxu0 0.0
        %1864 = vmatpush1.msra.mxu0 0.0
        %1865 = vmatprep.subr.mxu0 0.0
        %1866 = vmatpush1.msra.mxu0 0.0
        %1867 = vmatprep.subr.mxu0 0.0
        %1868 = vmatpush1.msra.mxu0 0.0
        %1869 = vmatprep.subr.mxu0 0.0
        %1870 = vmatpush1.msra.mxu0 0.0
        %1871 = vmatprep.subr.mxu0 0.0
        %1872 = vmatpush1.msra.mxu0 0.0
        %1873 = vmatprep.subr.mxu0 0.0
        %1874 = vmatpush1.msra.mxu0 0.0
        %1875 = vmatprep.subr.mxu0 0.0
        %1876 = vmatpush1.msra.mxu0 0.0
        %1877 = vmatprep.subr.mxu0 0.0
        %1878 = vmatpush1.msra.mxu0 0.0
        %1879 = vmatprep.subr.mxu0 0.0
        %1880 = vmatpush1.msra.mxu0 0.0
        %1881 = vmatprep.subr.mxu0 0.0
        %1882 = vmatpush1.msra.mxu0 0.0
        %1883 = vmatprep.subr.mxu0 0.0
        %1884 = vmatpush1.msra.mxu0 0.0
        %1885 = vmatprep.subr.mxu0 0.0
        %1886 = vmatpush1.msra.mxu0 0.0
        %1887 = vmatprep.subr.mxu0 0.0
        %1888 = vmatpush1.msra.mxu0 0.0
        %1889 = vmatprep.subr.mxu0 0.0
        %1890 = vmatpush1.msra.mxu0 0.0
        %1891 = vmatprep.subr.mxu0 0.0
        %1892 = vmatpush1.msra.mxu0 0.0
        %1893 = vmatprep.subr.mxu0 0.0
        %1894 = vmatpush1.msra.mxu0 0.0
        %1895 = vmatprep.subr.mxu0 0.0
        %1896 = vmatpush1.msra.mxu0 0.0
        %1897 = vmatprep.subr.mxu0 0.0
        %1898 = vmatpush1.msra.mxu0 0.0
        %1899 = vmatprep.subr.mxu0 0.0
        %1900 = vmatpush1.msra.mxu0 0.0
        %1901 = vmatprep.subr.mxu0 0.0
        %1902 = vmatpush1.msra.mxu0 0.0
        %1903 = vmatprep.subr.mxu0 0.0
        %1904 = vmatpush1.msra.mxu0 0.0
        %1905 = vmatprep.subr.mxu0 0.0
        %1906 = vmatpush1.msra.mxu0 0.0
        %1907 = vmatprep.subr.mxu0 0.0
        %1908 = vmatpush1.msra.mxu0 0.0
        %1909 = vmatprep.subr.mxu0 0.0
        %1910 = vmatpush1.msra.mxu0 0.0
        %1911 = vmatprep.mubr.f32.mxu0 0.0
        %1912 = vmatmul.mubr.f32.gmra.mrb[0].mxu0 %v1843
        %v1913 = vpop.f32.mrb[0].mxu0
        %v1914 = vadd.f32 0.0, %v1913
        %v1915 = vpop.f32.mrb[0].mxu0
        %1916 = vdwg.mxu0
        %v1917 = vadd.f32 %v1767, %v1914
        %v1918 = vld [vmem:[%s7] sm:$0xff]
        %v1919 = vld [vmem:[%s7 + $0x8] sm:$0xff]
        %v1921 = vsel %vm721, %v1917, 0
        %1923 = vmatprep.subr.mxu0 0.0
        %1924 = vmatpush1.msra.mxu0 %v1918
        %1925 = vmatprep.subr.mxu0 0.0
        %1926 = vmatpush1.msra.mxu0 %v1919
        %1927 = vmatprep.subr.mxu0 0.0
        %1928 = vmatpush1.msra.mxu0 0.0
        %1929 = vmatprep.subr.mxu0 0.0
        %1930 = vmatpush1.msra.mxu0 0.0
        %1931 = vmatprep.subr.mxu0 0.0
        %1932 = vmatpush1.msra.mxu0 0.0
        %1933 = vmatprep.subr.mxu0 0.0
        %1934 = vmatpush1.msra.mxu0 0.0
        %1935 = vmatprep.subr.mxu0 0.0
        %1936 = vmatpush1.msra.mxu0 0.0
        %1937 = vmatprep.subr.mxu0 0.0
        %1938 = vmatpush1.msra.mxu0 0.0
        %1939 = vmatprep.subr.mxu0 0.0
        %1940 = vmatpush1.msra.mxu0 0.0
        %1941 = vmatprep.subr.mxu0 0.0
        %1942 = vmatpush1.msra.mxu0 0.0
        %1943 = vmatprep.subr.mxu0 0.0
        %1944 = vmatpush1.msra.mxu0 0.0
        %1945 = vmatprep.subr.mxu0 0.0
        %1946 = vmatpush1.msra.mxu0 0.0
        %1947 = vmatprep.subr.mxu0 0.0
        %1948 = vmatpush1.msra.mxu0 0.0
        %1949 = vmatprep.subr.mxu0 0.0
        %1950 = vmatpush1.msra.mxu0 0.0
        %1951 = vmatprep.subr.mxu0 0.0
        %1952 = vmatpush1.msra.mxu0 0.0
        %1953 = vmatprep.subr.mxu0 0.0
        %1954 = vmatpush1.msra.mxu0 0.0
        %1955 = vmatprep.subr.mxu0 0.0
        %1956 = vmatpush1.msra.mxu0 0.0
        %1957 = vmatprep.subr.mxu0 0.0
        %1958 = vmatpush1.msra.mxu0 0.0
        %1959 = vmatprep.subr.mxu0 0.0
        %1960 = vmatpush1.msra.mxu0 0.0
        %1961 = vmatprep.subr.mxu0 0.0
        %1962 = vmatpush1.msra.mxu0 0.0
        %1963 = vmatprep.subr.mxu0 0.0
        %1964 = vmatpush1.msra.mxu0 0.0
        %1965 = vmatprep.subr.mxu0 0.0
        %1966 = vmatpush1.msra.mxu0 0.0
        %1967 = vmatprep.subr.mxu0 0.0
        %1968 = vmatpush1.msra.mxu0 0.0
        %1969 = vmatprep.subr.mxu0 0.0
        %1970 = vmatpush1.msra.mxu0 0.0
        %1971 = vmatprep.subr.mxu0 0.0
        %1972 = vmatpush1.msra.mxu0 0.0
        %1973 = vmatprep.subr.mxu0 0.0
        %1974 = vmatpush1.msra.mxu0 0.0
        %1975 = vmatprep.subr.mxu0 0.0
        %1976 = vmatpush1.msra.mxu0 0.0
        %1977 = vmatprep.subr.mxu0 0.0
        %1978 = vmatpush1.msra.mxu0 0.0
        %1979 = vmatprep.subr.mxu0 0.0
        %1980 = vmatpush1.msra.mxu0 0.0
        %1981 = vmatprep.subr.mxu0 0.0
        %1982 = vmatpush1.msra.mxu0 0.0
        %1983 = vmatprep.subr.mxu0 0.0
        %1984 = vmatpush1.msra.mxu0 0.0
        %1985 = vmatprep.subr.mxu0 0.0
        %1986 = vmatpush1.msra.mxu0 0.0
        %1987 = vmatprep.mubr.f32.mxu0 0.0
        %1988 = vmatmul.mubr.f32.gmra.mrb[0].mxu0 %v1921
        %v1989 = vpop.f32.mrb[0].mxu0
        %v1990 = vadd.f32 0.0, %v1989
        %v1991 = vpop.f32.mrb[0].mxu0
        %1992 = vdwg.mxu0
        %v1993 = vadd.f32 %v678, %v1990
        %v1994 = vld [vmem:[%s8] sm:$0x1]
        %v1996 = vlaneseq
        %v1997 = vshrl.u32 %v1996, 7
        %v1998 = vsub.s32 0, %v1997
        %v1999 = vrot.slane %v1994, %v1998
        %v2001 = vadd.f32 %v1993, %v1999
        %v2002 = vld [vmem:[%s9] sm:$0x1]
        %v2003 = vld [vmem:[%s10] sm:$0x1]
        %v2004 = vsel %vm683, %v2001, 0.0
        %2005 = vadd.xlane.f32.xlu0 %v2004
        %v2006 = vpop.xlane.xlu0 %2005
        %v2007 = vmul.f32 %v2006, %v687
        %v2008 = vsub.f32 %v2001, %v2007
        %v2009 = vmul.f32 %v2008, %v2008
        %v2010 = vsel %vm683, %v2009, 0.0
        %2011 = vadd.xlane.f32.xlu0 %v2010
        %v2012 = vpop.xlane.xlu0 %2011
        %v2013 = vmul.f32 %v2012, %v687
        %v2014 = vadd.f32 %v2013, 1e-06
        %v2015 = vrsqrt.pop %v2014
        %v2016 = vmul.f32 %v2008, %v2015
        %v2018 = vlaneseq
        %v2019 = vshrl.u32 %v2018, 7
        %v2020 = vsub.s32 0, %v2019
        %v2021 = vrot.slane %v2002, %v2020
        %v2023 = vmul.f32 %v2016, %v2021
        %v2025 = vlaneseq
        %v2026 = vshrl.u32 %v2025, 7
        %v2027 = vsub.s32 0, %v2026
        %v2028 = vrot.slane %v2003, %v2027
        %v2030 = vadd.f32 %v2023, %v2028
        %v2031 = vld [vmem:[%s11] sm:$0xff]
        %v2032 = vld [vmem:[%s11 + $0x8] sm:$0xff]
        %v2033 = vld [vmem:[%s12] sm:$0x1]
        %v2035 = vlaneseq
        %v2036 = vshrl.u32 %v2035, 7
        %v2037 = vsub.s32 0, %v2036
        %v2038 = vrot.slane %v2033, %v2037
        %v2041 = vsel %vm721, %v2030, 0
        %2043 = vmatprep.subr.mxu0 0.0
        %2044 = vmatpush1.msra.mxu0 %v2031
        %2045 = vmatprep.subr.mxu0 0.0
        %2046 = vmatpush1.msra.mxu0 %v2032
        %2047 = vmatprep.subr.mxu0 0.0
        %2048 = vmatpush1.msra.mxu0 0.0
        %2049 = vmatprep.subr.mxu0 0.0
        %2050 = vmatpush1.msra.mxu0 0.0
        %2051 = vmatprep.subr.mxu0 0.0
        %2052 = vmatpush1.msra.mxu0 0.0
        %2053 = vmatprep.subr.mxu0 0.0
        %2054 = vmatpush1.msra.mxu0 0.0
        %2055 = vmatprep.subr.mxu0 0.0
        %2056 = vmatpush1.msra.mxu0 0.0
        %2057 = vmatprep.subr.mxu0 0.0
        %2058 = vmatpush1.msra.mxu0 0.0
        %2059 = vmatprep.subr.mxu0 0.0
        %2060 = vmatpush1.msra.mxu0 0.0
        %2061 = vmatprep.subr.mxu0 0.0
        %2062 = vmatpush1.msra.mxu0 0.0
        %2063 = vmatprep.subr.mxu0 0.0
        %2064 = vmatpush1.msra.mxu0 0.0
        %2065 = vmatprep.subr.mxu0 0.0
        %2066 = vmatpush1.msra.mxu0 0.0
        %2067 = vmatprep.subr.mxu0 0.0
        %2068 = vmatpush1.msra.mxu0 0.0
        %2069 = vmatprep.subr.mxu0 0.0
        %2070 = vmatpush1.msra.mxu0 0.0
        %2071 = vmatprep.subr.mxu0 0.0
        %2072 = vmatpush1.msra.mxu0 0.0
        %2073 = vmatprep.subr.mxu0 0.0
        %2074 = vmatpush1.msra.mxu0 0.0
        %2075 = vmatprep.subr.mxu0 0.0
        %2076 = vmatpush1.msra.mxu0 0.0
        %2077 = vmatprep.subr.mxu0 0.0
        %2078 = vmatpush1.msra.mxu0 0.0
        %2079 = vmatprep.subr.mxu0 0.0
        %2080 = vmatpush1.msra.mxu0 0.0
        %2081 = vmatprep.subr.mxu0 0.0
        %2082 = vmatpush1.msra.mxu0 0.0
        %2083 = vmatprep.subr.mxu0 0.0
        %2084 = vmatpush1.msra.mxu0 0.0
        %2085 = vmatprep.subr.mxu0 0.0
        %2086 = vmatpush1.msra.mxu0 0.0
        %2087 = vmatprep.subr.mxu0 0.0
        %2088 = vmatpush1.msra.mxu0 0.0
        %2089 = vmatprep.subr.mxu0 0.0
        %2090 = vmatpush1.msra.mxu0 0.0
        %2091 = vmatprep.subr.mxu0 0.0
        %2092 = vmatpush1.msra.mxu0 0.0
        %2093 = vmatprep.subr.mxu0 0.0
        %2094 = vmatpush1.msra.mxu0 0.0
        %2095 = vmatprep.subr.mxu0 0.0
        %2096 = vmatpush1.msra.mxu0 0.0
        %2097 = vmatprep.subr.mxu0 0.0
        %2098 = vmatpush1.msra.mxu0 0.0
        %2099 = vmatprep.subr.mxu0 0.0
        %2100 = vmatpush1.msra.mxu0 0.0
        %2101 = vmatprep.subr.mxu0 0.0
        %2102 = vmatpush1.msra.mxu0 0.0
        %2103 = vmatprep.subr.mxu0 0.0
        %2104 = vmatpush1.msra.mxu0 0.0
        %2105 = vmatprep.subr.mxu0 0.0
        %2106 = vmatpush1.msra.mxu0 0.0
        %2107 = vmatprep.mubr.f32.mxu0 0.0
        %2108 = vmatmul.mubr.f32.gmra.mrb[0].mxu0 %v2041
        %v2109 = vpop.f32.mrb[0].mxu0
        %v2110 = vadd.f32 %v2038, %v2109
        %v2111 = vpop.f32.mrb[0].mxu0
        %2112 = vdwg.mxu0
        %v2113 = vmul.f32 %v2110, 0.5
        %v2114 = vmul.f32 %v2110, 0.044715
        %v2115 = vmul.f32 %v2114, %v2110
        %v2116 = vmul.f32 %v2115, %v2110
        %v2117 = vadd.f32 %v2110, %v2116
        %v2118 = vmul.f32 %v2117, 0.7978846
        %v2119 = vtanh.pop %v2118
        %v2120 = vadd.f32 %v2119, 1.0
        %v2121 = vmul.f32 %v2113, %v2120
        %v2122 = vld [vmem:[%s13] sm:$0xff]
        %v2123 = vld [vmem:[%s13 + $0x8] sm:$0xff]
        %v2124 = vld [vmem:[%s13 + $0x10] sm:$0xff]
        %v2125 = vld [vmem:[%s13 + $0x18] sm:$0xff]
        %vm2126 = vcmask 261120
        %v2128 = vsel %vm2126, %v2121, 0
        %2130 = vmatprep.subr.mxu0 0.0
        %2131 = vmatpush1.msra.mxu0 %v2122
        %2132 = vmatprep.subr.mxu0 0.0
        %2133 = vmatpush1.msra.mxu0 %v2123
        %2134 = vmatprep.subr.mxu0 0.0
        %2135 = vmatpush1.msra.mxu0 %v2124
        %2136 = vmatprep.subr.mxu0 0.0
        %2137 = vmatpush1.msra.mxu0 %v2125
        %2138 = vmatprep.subr.mxu0 0.0
        %2139 = vmatpush1.msra.mxu0 0.0
        %2140 = vmatprep.subr.mxu0 0.0
        %2141 = vmatpush1.msra.mxu0 0.0
        %2142 = vmatprep.subr.mxu0 0.0
        %2143 = vmatpush1.msra.mxu0 0.0
        %2144 = vmatprep.subr.mxu0 0.0
        %2145 = vmatpush1.msra.mxu0 0.0
        %2146 = vmatprep.subr.mxu0 0.0
        %2147 = vmatpush1.msra.mxu0 0.0
        %2148 = vmatprep.subr.mxu0 0.0
        %2149 = vmatpush1.msra.mxu0 0.0
        %2150 = vmatprep.subr.mxu0 0.0
        %2151 = vmatpush1.msra.mxu0 0.0
        %2152 = vmatprep.subr.mxu0 0.0
        %2153 = vmatpush1.msra.mxu0 0.0
        %2154 = vmatprep.subr.mxu0 0.0
        %2155 = vmatpush1.msra.mxu0 0.0
        %2156 = vmatprep.subr.mxu0 0.0
        %2157 = vmatpush1.msra.mxu0 0.0
        %2158 = vmatprep.subr.mxu0 0.0
        %2159 = vmatpush1.msra.mxu0 0.0
        %2160 = vmatprep.subr.mxu0 0.0
        %2161 = vmatpush1.msra.mxu0 0.0
        %2162 = vmatprep.subr.mxu0 0.0
        %2163 = vmatpush1.msra.mxu0 0.0
        %2164 = vmatprep.subr.mxu0 0.0
        %2165 = vmatpush1.msra.mxu0 0.0
        %2166 = vmatprep.subr.mxu0 0.0
        %2167 = vmatpush1.msra.mxu0 0.0
        %2168 = vmatprep.subr.mxu0 0.0
        %2169 = vmatpush1.msra.mxu0 0.0
        %2170 = vmatprep.subr.mxu0 0.0
        %2171 = vmatpush1.msra.mxu0 0.0
        %2172 = vmatprep.subr.mxu0 0.0
        %2173 = vmatpush1.msra.mxu0 0.0
        %2174 = vmatprep.subr.mxu0 0.0
        %2175 = vmatpush1.msra.mxu0 0.0
        %2176 = vmatprep.subr.mxu0 0.0
        %2177 = vmatpush1.msra.mxu0 0.0
        %2178 = vmatprep.subr.mxu0 0.0
        %2179 = vmatpush1.msra.mxu0 0.0
        %2180 = vmatprep.subr.mxu0 0.0
        %2181 = vmatpush1.msra.mxu0 0.0
        %2182 = vmatprep.subr.mxu0 0.0
        %2183 = vmatpush1.msra.mxu0 0.0
        %2184 = vmatprep.subr.mxu0 0.0
        %2185 = vmatpush1.msra.mxu0 0.0
        %2186 = vmatprep.subr.mxu0 0.0
        %2187 = vmatpush1.msra.mxu0 0.0
        %2188 = vmatprep.subr.mxu0 0.0
        %2189 = vmatpush1.msra.mxu0 0.0
        %2190 = vmatprep.subr.mxu0 0.0
        %2191 = vmatpush1.msra.mxu0 0.0
        %2192 = vmatprep.subr.mxu0 0.0
        %2193 = vmatpush1.msra.mxu0 0.0
        %2194 = vmatprep.mubr.f32.mxu0 0.0
        %2195 = vmatmul.mubr.f32.gmra.mrb[0].mxu0 %v2128
        %v2196 = vpop.f32.mrb[0].mxu0
        %v2197 = vadd.f32 0.0, %v2196
        %v2198 = vpop.f32.mrb[0].mxu0
        %2199 = vdwg.mxu0
        %v2200 = vadd.f32 %v2001, %v2197
        %v2201 = vld [vmem:[%s14] sm:$0x1]
        %v2203 = vlaneseq
        %v2204 = vshrl.u32 %v2203, 7
        %v2205 = vsub.s32 0, %v2204
        %v2206 = vrot.slane %v2201, %v2205
        %v2208 = vadd.f32 %v2200, %v2206
        %v2209 = vld [vmem:[%s15] sm:$0x1]
        %v2210 = vld [vmem:[%s16] sm:$0x1]
        %vm2211 = vcmask 122880
        %v2212 = vsel %vm2211, %v2208, 0.0
        %2213 = vadd.xlane.f32.xlu0 %v2212
        %v2214 = vpop.xlane.xlu0 %2213
        %v2215 = vmul.f32 %v2214, %v687
        %v2216 = vsub.f32 %v2208, %v2215
        %v2217 = vmul.f32 %v2216, %v2216
        %v2218 = vsel %vm2211, %v2217, 0.0
        %2219 = vadd.xlane.f32.xlu0 %v2218
        %v2220 = vpop.xlane.xlu0 %2219
        %v2221 = vmul.f32 %v2220, %v687
        %v2222 = vadd.f32 %v2221, 1e-06
        %v2223 = vrsqrt.pop %v2222
        %v2224 = vmul.f32 %v2216, %v2223
        %v2225 = vmul.f32 %v2224, %v2209
        %v2226 = vadd.f32 %v2225, %v2210
        %v2227 = vld [vmem:[%s17] sm:$0xff]
        %v2228 = vld [vmem:[%s17 + $0x8] sm:$0xff]
        %v2229 = vld [vmem:[%s18] sm:$0x1]
        %v2231 = vsel %vm721, %v2226, 0
        %2233 = vmatprep.subr.mxu0 0.0
        %2234 = vmatpush1.msra.mxu0 %v2227
        %2235 = vmatprep.subr.mxu0 0.0
        %2236 = vmatpush1.msra.mxu0 %v2228
        %2237 = vmatprep.subr.mxu0 0.0
        %2238 = vmatpush1.msra.mxu0 0.0
        %2239 = vmatprep.subr.mxu0 0.0
        %2240 = vmatpush1.msra.mxu0 0.0
        %2241 = vmatprep.subr.mxu0 0.0
        %2242 = vmatpush1.msra.mxu0 0.0
        %2243 = vmatprep.subr.mxu0 0.0
        %2244 = vmatpush1.msra.mxu0 0.0
        %2245 = vmatprep.subr.mxu0 0.0
        %2246 = vmatpush1.msra.mxu0 0.0
        %2247 = vmatprep.subr.mxu0 0.0
        %2248 = vmatpush1.msra.mxu0 0.0
        %2249 = vmatprep.subr.mxu0 0.0
        %2250 = vmatpush1.msra.mxu0 0.0
        %2251 = vmatprep.subr.mxu0 0.0
        %2252 = vmatpush1.msra.mxu0 0.0
        %2253 = vmatprep.subr.mxu0 0.0
        %2254 = vmatpush1.msra.mxu0 0.0
        %2255 = vmatprep.subr.mxu0 0.0
        %2256 = vmatpush1.msra.mxu0 0.0
        %2257 = vmatprep.subr.mxu0 0.0
        %2258 = vmatpush1.msra.mxu0 0.0
        %2259 = vmatprep.subr.mxu0 0.0
        %2260 = vmatpush1.msra.mxu0 0.0
        %2261 = vmatprep.subr.mxu0 0.0
        %2262 = vmatpush1.msra.mxu0 0.0
        %2263 = vmatprep.subr.mxu0 0.0
        %2264 = vmatpush1.msra.mxu0 0.0
        %2265 = vmatprep.subr.mxu0 0.0
        %2266 = vmatpush1.msra.mxu0 0.0
        %2267 = vmatprep.subr.mxu0 0.0
        %2268 = vmatpush1.msra.mxu0 0.0
        %2269 = vmatprep.subr.mxu0 0.0
        %2270 = vmatpush1.msra.mxu0 0.0
        %2271 = vmatprep.subr.mxu0 0.0
        %2272 = vmatpush1.msra.mxu0 0.0
        %2273 = vmatprep.subr.mxu0 0.0
        %2274 = vmatpush1.msra.mxu0 0.0
        %2275 = vmatprep.subr.mxu0 0.0
        %2276 = vmatpush1.msra.mxu0 0.0
        %2277 = vmatprep.subr.mxu0 0.0
        %2278 = vmatpush1.msra.mxu0 0.0
        %2279 = vmatprep.subr.mxu0 0.0
        %2280 = vmatpush1.msra.mxu0 0.0
        %2281 = vmatprep.subr.mxu0 0.0
        %2282 = vmatpush1.msra.mxu0 0.0
        %2283 = vmatprep.subr.mxu0 0.0
        %2284 = vmatpush1.msra.mxu0 0.0
        %2285 = vmatprep.subr.mxu0 0.0
        %2286 = vmatpush1.msra.mxu0 0.0
        %2287 = vmatprep.subr.mxu0 0.0
        %2288 = vmatpush1.msra.mxu0 0.0
        %2289 = vmatprep.subr.mxu0 0.0
        %2290 = vmatpush1.msra.mxu0 0.0
        %2291 = vmatprep.subr.mxu0 0.0
        %2292 = vmatpush1.msra.mxu0 0.0
        %2293 = vmatprep.subr.mxu0 0.0
        %2294 = vmatpush1.msra.mxu0 0.0
        %2295 = vmatprep.subr.mxu0 0.0
        %2296 = vmatpush1.msra.mxu0 0.0
        %2297 = vmatprep.mubr.f32.mxu0 0.0
        %2298 = vmatmul.mubr.f32.gmra.mrb[0].mxu0 %v2231
        %v2299 = vpop.f32.mrb[0].mxu0
        %v2300 = vadd.f32 %v2229, %v2299
        %v2301 = vpop.f32.mrb[0].mxu0
        %2302 = vdwg.mxu0
        %vm2303 = vcmask 73728
        %2304 = vst.msk [vmem:[%s673] sm:$0x1] %vm2303, %v2300
        %s2305 = sand.u32 %s491, 1
        %s2306 = scalar_lea.sflag [#allocation3], %s2305
        %s2307 = sand.u32 %s491, 1
        %s2308 = scalar_lea.vmem [#allocation7], %s2307
        // Predicated region
        $region113: #{forward.3} parent=103 // pred_check
          %p2309 = pneg %p501
        $region114: #{forward.3} parent=103 // pred_check_branch
          %2311 = sbr.rel (%p2309) target = $region116
        $region115: #{forward.3} parent=103 // pred_region
          %s2313 = ssub.s32 16, 16
          %2314 = vsyncadd %s2306, %s2313
          %s2315 = smul.addr %s37, 16
          %s2316 = scalar_lea.hbm %s21, %s2315
          %s2318 = sshll.u32 %s2308, 4
          %s2319 = int_to_ptr.vmem [resolvable:$true] %s2318
          %2321 = dma.vmem_to_hbm [thread:$0]  %s2319, 16, %s2316, %s2306
        $region116: #{forward.3} parent=103 // pred_fallthru
          _
      $region104: #{forward.3} parent=5 // pred_fallthru
        _
      %p2322 = scmp.le.s32.totalorder 2, %s32
      // Predicated region
      $region117: #{forward.3} parent=5 // pred_check
        %p2323 = pneg %p2322
      $region118: #{forward.3} parent=5 // pred_check_branch
        %2325 = sbr.rel (%p2323) target = $region120
      $region119: #{forward.3} parent=5 // pred_region
        %s2326 = ssub.s32 %s32, 2
        // Predicated region
        $region121: #{forward.3} parent=119 // pred_check
          %p2327 = pneg %p507
        $region122: #{forward.3} parent=119 // pred_check_branch
          %2329 = sbr.rel (%p2327) target = $region124
        $region123: #{forward.3} parent=119 // pred_region
          %s2330 = sand.u32 %s492, 1
          %s2331 = scalar_lea.sflag [#allocation3], %s2330
          %s2332 = sand.u32 %s492, 1
          %s2333 = scalar_lea.vmem [#allocation7], %s2332
          %2334 = dma.done %s2331, 16
        $region124: #{forward.3} parent=119 // pred_fallthru
          _
      $region120: #{forward.3} parent=5 // pred_fallthru
        _
    $region6: #{forward.3} parent=1 // loop_footer
      %s36 = sadd.s32 1, %s32
    $region7: #{forward.3} parent=1 // loop_footer_branch
      %31 = sbr.rel target = $region3
    $region8: #{forward.3} parent=1 // loop_exit
      _
    %2335 = vsyncpa [#allocation3], 1
    %s2336 = scalar_lea.sflag [#allocation3], 1
    %2337 = vsyncpa %s2336, 1
    %2338 = vsyncpa [#allocation4], 1
    %s2339 = scalar_lea.sflag [#allocation4], 1
    %2340 = vsyncpa %s2339, 1
    %2341 = vsyncpa [#allocation6], 1

</llo_original>
